<compile_context>
chip_gen: v7x
topology: tpu7x:2x2x1
jax: 0.10.0
libtpu: 0.0.40
codegen_flags: <defaults>
</compile_context>

<pallas_src>
import functools

import jax
import jax.numpy as jnp
from jax.experimental import pallas as pl
from jax.experimental.pallas import tpu as pltpu

EPS = 1e-5
LANES = 128
VMEM_LIMIT = 40 * 1024 * 1024
MAX_M_ROWS = 2048  # cap on matmul M (= tile_h * N * W_out) rows per grid step


def _rup(c, m=LANES):
    return max(m, ((c + m - 1) // m) * m)


# ============================================================================
# Pallas kernels
# ============================================================================
def _fused_conv_kernel(*refs, scale, prologue_mode, has_bias, out_act,
                       emit_stats, emit_x):
    """Fused:
         prologue (prev BN affine [+ residual [+ residual BN affine]] + ReLU)
         -> nearest-neighbour upsample -> zero halo (padding=1)
         -> im2col -> single MXU matmul with K = 9*Cin
         -> (+ bias) (+ sigmoid)
         -> output [+ per-channel sum/sum^2 partials] [+ materialised prologue]
       Activation layout is (H, N, W, C): batch is folded into the matmul M."""
    i = 0
    a_ref = refs[i]; i += 1                               # (H_in, N, W_in, Cin) bf16
    if prologue_mode >= 1:
        sa_ref, ta_ref = refs[i], refs[i + 1]; i += 2     # (1, Cin) f32
    if prologue_mode >= 2:
        r_ref = refs[i]; i += 1                           # (H_in, N, W_in, Cin) bf16
    if prologue_mode == 3:
        sr_ref, tr_ref = refs[i], refs[i + 1]; i += 2     # (1, Cin) f32
    w_ref = refs[i]; i += 1                               # (9*Cin, Cout) bf16
    if has_bias:
        b_ref = refs[i]; i += 1                           # (1, Cout) f32
    y_ref = refs[i]; i += 1                               # (tile_h, N, W_out, Cout) bf16
    if emit_stats:
        stats_ref = refs[i]; i += 1                       # (8, Cout) f32
    if emit_x:
        xout_ref = refs[i]; i += 1                        # (H_in, N, W_in, Cin) bf16
    pad_ref = refs[i]; i += 1                             # (H_out+2, N, W_out+2, Cin)
    cols_ref = refs[i]                                    # (tile_h*N*W_out, 9*Cin)

    h_in, n, w_in, cin = a_ref.shape
    tile_h, _, w_out, cout = y_ref.shape
    h_out = h_in * scale
    m = tile_h * n * w_out

    # ---- fused prologue: previous BN affine (+ residual [+ affine]) + ReLU ----
    x = a_ref[...]
    if prologue_mode >= 1:
        xf = x.astype(jnp.float32) * sa_ref[...] + ta_ref[...]
        if prologue_mode >= 2:
            rf = r_ref[...].astype(jnp.float32)
            if prologue_mode == 3:
                rf = rf * sr_ref[...] + tr_ref[...]
            xf = xf + rf
        x = jnp.maximum(xf, 0.0).astype(jnp.bfloat16)
    if emit_x:
        xout_ref[...] = x

    # ---- nearest upsample + zero halo, rebuilt every step (parallel-safe) ----
    pad_ref[...] = jnp.zeros_like(pad_ref)
    if scale == 1:
        pad_ref[1:h_out + 1, :, 1:w_out + 1, :] = x
    else:
        xr = jnp.repeat(x, scale, axis=0)                 # row duplication (leading axis)
        for w0 in range(w_in):                            # column duplication
            col = jnp.broadcast_to(xr[:, :, w0:w0 + 1, :], (h_out, n, scale, cin))
            pad_ref[1:h_out + 1, :, 1 + w0 * scale:1 + (w0 + 1) * scale, :] = col

    # ---- im2col for this row tile and one matmul with K = 9*Cin ----
    row0 = pl.multiple_of(pl.program_id(0) * tile_h, tile_h)
    for dh in range(3):
        for dw in range(3):
            tap = dh * 3 + dw
            patch = pad_ref[pl.ds(row0 + dh, tile_h), :, dw:dw + w_out, :]
            cols_ref[:, tap * cin:(tap + 1) * cin] = patch.reshape(m, cin)

    acc = jnp.dot(cols_ref[...], w_ref[...], preferred_element_type=jnp.float32)
    if has_bias:
        acc = acc + b_ref[...]
    if out_act == "sigmoid":
        acc = pl.reciprocal(1.0 + jnp.exp(-acc), approx=True)

    y16 = acc.astype(jnp.bfloat16)
    y_ref[...] = y16.reshape(tile_h, n, w_out, cout)

    if emit_stats:
        ys = y16.astype(jnp.float32)
        ssum = jnp.sum(ys, axis=0, keepdims=True)
        ssq = jnp.sum(ys * ys, axis=0, keepdims=True)
        stats_ref[...] = jnp.concatenate(
            [ssum, ssq, jnp.zeros((6, cout), jnp.float32)], axis=0)


def _linear_kernel(z_ref, w_ref, b_ref, o_ref):
    o_ref[...] = (jnp.dot(z_ref[...], w_ref[...], preferred_element_type=jnp.float32)
                  + b_ref[...]).astype(o_ref.dtype)


# ============================================================================
# Pallas wrappers
# ============================================================================
def fused_conv(a, w, *, scale=1, prologue=None, residual=None,
               residual_affine=None, bias=None, out_act=None,
               emit_stats=True, emit_x=False):
    """a: (H, N, W, Cin) bf16 (Cin multiple of 128); w: (9*Cin, Cout) bf16.
    Returns (y, stats, x_mat):
      y      (H*scale, N, W*scale, Cout) bf16
      stats  (n_h, 8, Cout) f32 partial sums (row 0 = sum, row 1 = sum^2) or None
      x_mat  (H, N, W, Cin) bf16 materialised prologue result, or None."""
    h_in, n, w_in, cin = a.shape
    cout = w.shape[1]
    h_out, w_out = h_in * scale, w_in * scale

    tile_h = max(1, min(h_out, MAX_M_ROWS // max(1, n * w_out)))
    while h_out % tile_h:
        tile_h -= 1
    n_h = h_out // tile_h
    assert not (emit_x and n_h != 1), "x side output requires a single row tile"

    prologue_mode = 0
    if prologue is not None:
        prologue_mode = 1
        if residual is not None:
            prologue_mode = 3 if residual_affine is not None else 2

    img_in = pl.BlockSpec((h_in, n, w_in, cin), lambda hi: (0, 0, 0, 0))

    def vec(c):
        return pl.BlockSpec((1, c), lambda hi: (0, 0))

    inputs, in_specs = [a], [img_in]
    if prologue_mode >= 1:
        inputs += [prologue[0], prologue[1]]
        in_specs += [vec(cin), vec(cin)]
    if prologue_mode >= 2:
        inputs += [residual]
        in_specs += [img_in]
    if prologue_mode == 3:
        inputs += [residual_affine[0], residual_affine[1]]
        in_specs += [vec(cin), vec(cin)]
    inputs += [w]
    in_specs += [pl.BlockSpec((9 * cin, cout), lambda hi: (0, 0))]
    if bias is not None:
        inputs += [bias]
        in_specs += [vec(cout)]

    out_specs = [pl.BlockSpec((tile_h, n, w_out, cout), lambda hi: (hi, 0, 0, 0))]
    out_shape = [jax.ShapeDtypeStruct((h_out, n, w_out, cout), jnp.bfloat16)]
    if emit_stats:
        out_specs.append(pl.BlockSpec((pl.Squeezed(), 8, cout), lambda hi: (hi, 0, 0)))
        out_shape.append(jax.ShapeDtypeStruct((n_h, 8, cout), jnp.float32))
    if emit_x:
        out_specs.append(pl.BlockSpec((h_in, n, w_in, cin), lambda hi: (0, 0, 0, 0)))
        out_shape.append(jax.ShapeDtypeStruct((h_in, n, w_in, cin), jnp.bfloat16))

    kernel = functools.partial(
        _fused_conv_kernel, scale=scale, prologue_mode=prologue_mode,
        has_bias=bias is not None, out_act=out_act,
        emit_stats=emit_stats, emit_x=emit_x)

    res = pl.pallas_call(
        kernel,
        grid=(n_h,),
        in_specs=in_specs,
        out_specs=tuple(out_specs),
        out_shape=tuple(out_shape),
        scratch_shapes=[
            pltpu.VMEM((h_out + 2, n, w_out + 2, cin), jnp.bfloat16),
            pltpu.VMEM((tile_h * n * w_out, 9 * cin), jnp.bfloat16),
        ],
        compiler_params=pltpu.CompilerParams(
            dimension_semantics=("parallel",),
            vmem_limit_bytes=VMEM_LIMIT),
    )(*inputs)

    if not isinstance(res, (tuple, list)):
        res = (res,)
    res = list(res)
    y = res.pop(0)
    stats = res.pop(0) if emit_stats else None
    xmat = res.pop(0) if emit_x else None
    return y, stats, xmat


def linear_pallas(z, w, b):
    n, k = z.shape
    m = w.shape[1]
    return pl.pallas_call(
        _linear_kernel,
        grid=(1,),
        in_specs=[pl.BlockSpec((n, k), lambda i: (0, 0)),
                  pl.BlockSpec((k, m), lambda i: (0, 0)),
                  pl.BlockSpec((1, m), lambda i: (0, 0))],
        out_specs=pl.BlockSpec((n, m), lambda i: (0, 0)),
        out_shape=jax.ShapeDtypeStruct((n, m), jnp.float32),
        compiler_params=pltpu.CompilerParams(vmem_limit_bytes=VMEM_LIMIT),
    )(z, w, b)


# ============================================================================
# Glue: BN scale/shift from kernel-emitted partial sums, parameter handling
# ============================================================================
def bn_from_stats(stats, count, gamma, beta):
    ssum = jnp.sum(stats[:, 0, :], axis=0)
    ssq = jnp.sum(stats[:, 1, :], axis=0)
    mean = ssum / count
    var = jnp.maximum(ssq / count - mean * mean, 0.0)   # biased (training-mode) var
    scale = gamma / jnp.sqrt(var + EPS)
    shift = beta - mean * scale
    return scale.reshape(1, -1), shift.reshape(1, -1)


def _pad_vec(v, cp):
    return jnp.pad(v.astype(jnp.float32), (0, cp - v.shape[0]))


def _pad_last(a, cp):
    p = cp - a.shape[-1]
    if p == 0:
        return a
    return jnp.pad(a, [(0, 0)] * (a.ndim - 1) + [(0, p)])


def _conv_w_kernelform(w_hwio, cin_p, cout_p):
    # (3, 3, cin, cout) -> (9*cin_p, cout_p), K ordered as (kh, kw, cin)
    _, _, cin, cout = w_hwio.shape
    w = jnp.pad(w_hwio, ((0, 0), (0, 0), (0, cin_p - cin), (0, cout_p - cout)))
    return w.reshape(9 * cin_p, cout_p).astype(jnp.bfloat16)


def init_block(key, in_planes, stride):
    planes = in_planes // stride
    ks = jax.random.split(key, 12)

    def cw(k, cin, cout):
        return jax.random.normal(k, (3, 3, cin, cout), jnp.float32) / jnp.sqrt(9.0 * cin)

    p = dict(stride=stride, in_planes=in_planes, planes=planes)
    p["w2"] = cw(ks[0], in_planes, in_planes)                 # conv2 (bias=False)
    p["g2"] = 1.0 + 0.1 * jax.random.normal(ks[1], (in_planes,))
    p["be2"] = 0.1 * jax.random.normal(ks[2], (in_planes,))
    p["w1"] = cw(ks[3], in_planes, planes)                    # conv1
    p["g1"] = 1.0 + 0.1 * jax.random.normal(ks[4], (planes,))
    p["be1"] = 0.1 * jax.random.normal(ks[5], (planes,))
    if stride > 1:                                            # ResizeConv2d paths (bias)
        p["b1"] = 0.1 * jax.random.normal(ks[6], (planes,))
        p["wsc"] = cw(ks[7], in_planes, planes)
        p["bsc"] = 0.1 * jax.random.normal(ks[8], (planes,))
        p["gsc"] = 1.0 + 0.1 * jax.random.normal(ks[9], (planes,))
        p["besc"] = 0.1 * jax.random.normal(ks[10], (planes,))
    return p


def prep_block(p):
    cin_p, cpl_p = _rup(p["in_planes"]), _rup(p["planes"])
    d = dict(p)
    d["cin_p"], d["cpl_p"] = cin_p, cpl_p
    d["w2k"] = _conv_w_kernelform(p["w2"], cin_p, cin_p)
    d["g2p"], d["be2p"] = _pad_vec(p["g2"], cin_p), _pad_vec(p["be2"], cin_p)
    d["w1k"] = _conv_w_kernelform(p["w1"], cin_p, cpl_p)
    d["g1p"], d["be1p"] = _pad_vec(p["g1"], cpl_p), _pad_vec(p["be1"], cpl_p)
    if p["stride"] > 1:
        d["b1k"] = _pad_vec(p["b1"], cpl_p).reshape(1, -1)
        d["wsck"] = _conv_w_kernelform(p["wsc"], cin_p, cpl_p)
        d["bsck"] = _pad_vec(p["bsc"], cpl_p).reshape(1, -1)
        d["gscp"], d["bescp"] = _pad_vec(p["gsc"], cpl_p), _pad_vec(p["besc"], cpl_p)
    return d


# ============================================================================
# BasicBlockDec / ResNet18Dec forward (Pallas, epilogues fused into next conv)
# ============================================================================
def pallas_block_fused(state, p):
    """state: {"kind":"tensor","x":(H,N,W,Cin)}  or fused epilogue
       {"kind":"epi","a","sa","ta","r","sr_tr"} meaning x = relu(a*sa+ta + aff?(r)).
       Returns the new epilogue state of this block (never materialised to HBM)."""
    s = p["stride"]
    if state["kind"] == "tensor":
        x = state["x"]
        c2, st2, _ = fused_conv(x, p["w2k"], scale=1)
    else:
        # the previous block's epilogue is applied as this conv's prologue;
        # its result (this block's input) is emitted once for residual/shortcut use
        c2, st2, x = fused_conv(
            state["a"], p["w2k"], scale=1,
            prologue=(state["sa"], state["ta"]),
            residual=state["r"], residual_affine=state["sr_tr"],
            emit_x=True)
    h, n, w = x.shape[0], x.shape[1], x.shape[2]
    cnt2 = float(n * h * w)
    s2, t2 = bn_from_stats(st2, cnt2, p["g2p"], p["be2p"])

    # conv1 (plain 3x3 or ResizeConv2d) with fused bn2-affine+relu prologue
    c1, st1, _ = fused_conv(c2, p["w1k"], scale=s, prologue=(s2, t2),
                            bias=p["b1k"] if s > 1 else None)
    cnt1 = cnt2 * s * s
    s1, t1 = bn_from_stats(st1, cnt1, p["g1p"], p["be1p"])

    if s == 1:
        return dict(kind="epi", a=c1, sa=s1, ta=t1, r=x, sr_tr=None)
    csc, stsc, _ = fused_conv(x, p["wsck"], scale=s, bias=p["bsck"])
    ssc, tsc = bn_from_stats(stsc, cnt1, p["gscp"], p["bescp"])
    return dict(kind="epi", a=c1, sa=s1, ta=t1, r=csc, sr_tr=(ssc, tsc))


def materialize_state(state):
    """Materialise a fused epilogue state (used only for standalone-block testing;
    the full network keeps epilogues fused into the next conv's prologue)."""
    if state["kind"] == "tensor":
        return state["x"]
    y = state["a"].astype(jnp.float32) * state["sa"] + state["ta"]
    r = state["r"].astype(jnp.float32)
    if state["sr_tr"] is not None:
        r = r * state["sr_tr"][0] + state["sr_tr"][1]
    return jnp.maximum(y + r, 0.0).astype(jnp.bfloat16)


def init_resnet18dec(key, z_dim=10, nc=6):
    ks = jax.random.split(key, 6)
    params = dict(z_dim=z_dim, nc=nc)
    params["lin_w"] = jax.random.normal(ks[0], (z_dim, 512), jnp.float32) / jnp.sqrt(float(z_dim))
    params["lin_b"] = 0.1 * jax.random.normal(ks[1], (512,))
    params["z_pad"] = _rup(z_dim)
    params["lin_wk"] = jnp.pad(params["lin_w"],
                               ((0, params["z_pad"] - z_dim), (0, 0))).astype(jnp.bfloat16)
    params["lin_bk"] = params["lin_b"].reshape(1, -1).astype(jnp.float32)
    # _make_layer builds strides [s] + [1]*(n-1) then reverses -> stride-1 block(s) first
    cfg = [(512, 1), (512, 2),       # layer4
           (256, 1), (256, 2),       # layer3
           (128, 1), (128, 2),       # layer2
           (64, 1), (64, 1)]         # layer1
    bkeys = jax.random.split(ks[2], len(cfg))
    params["blocks"] = [prep_block(init_block(bk, cin, s)) for (cin, s), bk in zip(cfg, bkeys)]
    # final ResizeConv2d(64, nc, kernel_size=3, scale_factor=2) (with bias) + sigmoid
    params["conv1_w"] = jax.random.normal(ks[3], (3, 3, 64, nc), jnp.float32) / jnp.sqrt(9.0 * 64)
    params["conv1_b"] = 0.1 * jax.random.normal(ks[4], (nc,))
    params["conv1_wk"] = _conv_w_kernelform(params["conv1_w"], _rup(64), _rup(nc))
    params["conv1_bk"] = _pad_vec(params["conv1_b"], _rup(nc)).reshape(1, -1)
    return params


def resnet18dec_pallas(z, params):
    n = z.shape[0]
    zk = _pad_last(z.astype(jnp.bfloat16), params["z_pad"])
    lin = linear_pallas(zk, params["lin_wk"], params["lin_bk"])              # (n, 512) f32
    # x = linear(z).view(n,512,1,1); F.interpolate(scale_factor=4,'nearest') == broadcast.
    # Activations are carried in (H, N, W, C) layout so batch folds into matmul M.
    x0 = jnp.broadcast_to(lin.astype(jnp.bfloat16)[None, :, None, :], (4, n, 4, 512))
    state = dict(kind="tensor", x=x0)
    for blk in params["blocks"]:
        state = pallas_block_fused(state, blk)
    # final ResizeConv2d + sigmoid consumes the last block's fused epilogue directly;
    # its (unused) BN statistics are not emitted.
    y, _, _ = fused_conv(state["a"], params["conv1_wk"], scale=2,
                         prologue=(state["sa"], state["ta"]),
                         residual=state["r"], residual_affine=state["sr_tr"],
                         bias=params["conv1_bk"], out_act="sigmoid",
                         emit_stats=False)                                   # (64,n,64,128)
    y = y[..., :params["nc"]].astype(jnp.float32)
    return jnp.transpose(y, (1, 3, 0, 2))                                    # (n, nc, 64, 64)


# ============================================================================
# Pure-JAX reference with identical bf16 rounding points / BN-stat formula
# ============================================================================
def _ref_conv(x, w_hwio, bias):
    y = jax.lax.conv_general_dilated(
        x.astype(jnp.bfloat16), w_hwio.astype(jnp.bfloat16), (1, 1), "SAME",
        dimension_numbers=("NHWC", "HWIO", "NHWC"),
        preferred_element_type=jnp.float32)
    if bias is not None:
        y = y + bias
    return y


def _bn_ref(c, gamma, beta):
    cf = c.astype(jnp.float32)
    cnt = cf.shape[0] * cf.shape[1] * cf.shape[2]
    mean = jnp.sum(cf, axis=(0, 1, 2)) / cnt
    var = jnp.maximum(jnp.sum(cf * cf, axis=(0, 1, 2)) / cnt - mean * mean, 0.0)
    scale = gamma / jnp.sqrt(var + EPS)
    return scale, beta - mean * scale


def _up(x, s):
    return jnp.repeat(jnp.repeat(x, s, axis=1), s, axis=2)


def ref_block(x, p):
    s = p["stride"]
    c2 = _ref_conv(x, p["w2"], None).astype(jnp.bfloat16)
    sc2, sh2 = _bn_ref(c2, p["g2"], p["be2"])
    h = jnp.maximum(c2.astype(jnp.float32) * sc2 + sh2, 0.0).astype(jnp.bfloat16)
    if s > 1:
        h = _up(h, s)
    c1 = _ref_conv(h, p["w1"], p["b1"] if s > 1 else None).astype(jnp.bfloat16)
    sc1, sh1 = _bn_ref(c1, p["g1"], p["be1"])
    y = c1.astype(jnp.float32) * sc1 + sh1
    if s == 1:
        y = y + x.astype(jnp.float32)
    else:
        csc = _ref_conv(_up(x, s), p["wsc"], p["bsc"]).astype(jnp.bfloat16)
        scc, shc = _bn_ref(csc, p["gsc"], p["besc"])
        y = y + csc.astype(jnp.float32) * scc + shc
    return jnp.maximum(y, 0.0).astype(jnp.bfloat16)


def resnet18dec_ref(z, params):
    n = z.shape[0]
    lin = jnp.dot(z.astype(jnp.bfloat16), params["lin_w"].astype(jnp.bfloat16),
                  preferred_element_type=jnp.float32) + params["lin_b"]
    x = jnp.broadcast_to(lin.astype(jnp.bfloat16)[:, None, None, :], (n, 4, 4, 512))
    for blk in params["blocks"]:
        x = ref_block(x, blk)
    y = _ref_conv(_up(x, 2), params["conv1_w"], params["conv1_b"])
    y = 1.0 / (1.0 + jnp.exp(-y))
    return jnp.transpose(y, (0, 3, 1, 2))


# ============================================================================
if __name__ == "__main__":
    key = jax.random.PRNGKey(0)
    k_blk, k_x, k_net, k_z = jax.random.split(key, 4)

    # --- 1. single BasicBlockDec, stride=2 (ResizeConv2d + BN shortcut path) ---
    blk = prep_block(init_block(k_blk, in_planes=128, stride=2))
    x_nhwc = jax.random.normal(k_x, (2, 8, 8, 128), jnp.float32).astype(jnp.bfloat16)
    x_hnwc = jnp.transpose(x_nhwc, (1, 0, 2, 3))                # (H, N, W, C) layout
    st = pallas_block_fused(dict(kind="tensor", x=x_hnwc), blk)
    out_blk = jax.block_until_ready(materialize_state(st))      # (16, 2, 16, 128)
    assert out_blk.shape == (16, 2, 16, 128), out_blk.shape
    ref_blk = ref_block(x_nhwc, blk).astype(jnp.float32)        # (2, 16, 16, 64)
    out_cmp = jnp.transpose(out_blk[..., :blk["planes"]], (1, 0, 2, 3)).astype(jnp.float32)
    rel_blk = float(jnp.max(jnp.abs(out_cmp - ref_blk))
                    / jnp.maximum(jnp.max(jnp.abs(ref_blk)), 1.0))
    assert rel_blk < 3e-2, f"BasicBlockDec mismatch (relative): {rel_blk}"

    # --- 2. full ResNet18Dec forward: z (2, 10) -> image (2, 6, 64, 64) ---
    params = init_resnet18dec(k_net, z_dim=10, nc=6)
    z = jax.random.normal(k_z, (2, 10), jnp.float32)
    out = jax.block_until_ready(resnet18dec_pallas(z, params))
    assert out.shape == (2, 6, 64, 64), out.shape
    ref = resnet18dec_ref(z, params).astype(jnp.float32)
    d = jnp.abs(out - ref)
    d_max, d_mean = float(jnp.max(d)), float(jnp.mean(d))
    assert d_max < 1e-1 and d_mean < 1.2e-2, \
        f"ResNet18Dec mismatch: max={d_max} mean={d_mean}"

    print("KERNEL_OK")
</pallas_src>

<mosaic_0001>
module attributes {stable_mosaic.version = 11 : i64} {
  func.func @_fused_conv_kernel(%arg0: i32, %arg1: memref<8x2x8x128xbf16, #tpu.memory_space<vmem>>, %arg2: memref<1152x128xbf16, #tpu.memory_space<vmem>>, %arg3: memref<8x2x8x128xbf16, #tpu.memory_space<vmem>>, %arg4: memref<1x8x128xf32, #tpu.memory_space<vmem>>, %arg5: memref<10x2x10x128xbf16, #tpu.memory_space<vmem>>, %arg6: memref<128x1152xbf16, #tpu.memory_space<vmem>>) attributes {dimension_semantics = [#tpu.dimension_semantics<parallel>], iteration_bounds = array<i64: 1>, scalar_prefetch = 0 : i64, scratch_operands = 2 : i64, tpu.core_type = #tpu.core_type<tc>, window_params = [{pipeline_mode = #tpu.pipeline_mode<synchronous>, transform_indices = @transform_0, window_bounds = array<i64: 8, 2, 8, 128>}, {pipeline_mode = #tpu.pipeline_mode<synchronous>, transform_indices = @transform_1, window_bounds = array<i64: 1152, 128>}, {transform_indices = @transform_2, window_bounds = array<i64: 8, 2, 8, 128>}, {transform_indices = @transform_3, window_bounds = array<i64: 1, 8, 128>}]} {
    %c0 = arith.constant 0 : index
    %c0_0 = arith.constant 0 : index
    %c0_1 = arith.constant 0 : index
    %c0_2 = arith.constant 0 : index
    %0 = vector.load %arg1[%c0, %c0_0, %c0_1, %c0_2] : memref<8x2x8x128xbf16, #tpu.memory_space<vmem>>, vector<8x2x8x128xbf16>
    %cst = arith.constant 0.000000e+00 : bf16
    %1 = vector.broadcast %cst : bf16 to vector<10x2x10x128xbf16>
    %c0_3 = arith.constant 0 : index
    %c0_4 = arith.constant 0 : index
    %c0_5 = arith.constant 0 : index
    %c0_6 = arith.constant 0 : index
    %2 = vector.load %arg5[%c0_3, %c0_4, %c0_5, %c0_6] : memref<10x2x10x128xbf16, #tpu.memory_space<vmem>>, vector<10x2x10x128xbf16>
    tpu.vector_store %arg5[%c0_3, %c0_4, %c0_5, %c0_6], %1 {strides = array<i32>} : memref<10x2x10x128xbf16, #tpu.memory_space<vmem>>, vector<10x2x10x128xbf16>,
    %c1 = arith.constant 1 : index
    %c0_7 = arith.constant 0 : index
    %c1_8 = arith.constant 1 : index
    %c0_9 = arith.constant 0 : index
    %3 = vector.load %arg5[%c1, %c0_7, %c1_8, %c0_9] : memref<10x2x10x128xbf16, #tpu.memory_space<vmem>>, vector<8x2x8x128xbf16>
    tpu.vector_store %arg5[%c1, %c0_7, %c1_8, %c0_9], %0 {strides = array<i32>} : memref<10x2x10x128xbf16, #tpu.memory_space<vmem>>, vector<8x2x8x128xbf16>,
    %c8_i32 = arith.constant 8 : i32
    %4 = arith.muli %arg0, %c8_i32 : i32
    %5 = tpu.assume_multiple %4, 8 : i32
    %c0_i32 = arith.constant 0 : i32
    %6 = arith.addi %5, %c0_i32 : i32
    %7 = arith.index_cast %6 : i32 to index
    %c0_10 = arith.constant 0 : index
    %c0_11 = arith.constant 0 : index
    %c0_12 = arith.constant 0 : index
    %8 = vector.load %arg5[%7, %c0_10, %c0_11, %c0_12] : memref<10x2x10x128xbf16, #tpu.memory_space<vmem>>, vector<8x2x8x128xbf16>
    %9 = vector.shape_cast %8 : vector<8x2x8x128xbf16> to vector<128x128xbf16>
    %c0_13 = arith.constant 0 : index
    %c0_14 = arith.constant 0 : index
    %10 = vector.load %arg6[%c0_13, %c0_14] : memref<128x1152xbf16, #tpu.memory_space<vmem>>, vector<128x128xbf16>
    tpu.vector_store %arg6[%c0_13, %c0_14], %9 {strides = array<i32>} : memref<128x1152xbf16, #tpu.memory_space<vmem>>, vector<128x128xbf16>,
    %c0_i32_15 = arith.constant 0 : i32
    %11 = arith.addi %5, %c0_i32_15 : i32
    %12 = arith.index_cast %11 : i32 to index
    %c0_16 = arith.constant 0 : index
    %c1_17 = arith.constant 1 : index
    %c0_18 = arith.constant 0 : index
    %13 = vector.load %arg5[%12, %c0_16, %c1_17, %c0_18] : memref<10x2x10x128xbf16, #tpu.memory_space<vmem>>, vector<8x2x8x128xbf16>
    %14 = vector.shape_cast %13 : vector<8x2x8x128xbf16> to vector<128x128xbf16>
    %c0_19 = arith.constant 0 : index
    %c128 = arith.constant 128 : index
    %15 = vector.load %arg6[%c0_19, %c128] : memref<128x1152xbf16, #tpu.memory_space<vmem>>, vector<128x128xbf16>
    tpu.vector_store %arg6[%c0_19, %c128], %14 {strides = array<i32>} : memref<128x1152xbf16, #tpu.memory_space<vmem>>, vector<128x128xbf16>,
    %c0_i32_20 = arith.constant 0 : i32
    %16 = arith.addi %5, %c0_i32_20 : i32
    %17 = arith.index_cast %16 : i32 to index
    %c0_21 = arith.constant 0 : index
    %c2 = arith.constant 2 : index
    %c0_22 = arith.constant 0 : index
    %18 = vector.load %arg5[%17, %c0_21, %c2, %c0_22] : memref<10x2x10x128xbf16, #tpu.memory_space<vmem>>, vector<8x2x8x128xbf16>
    %19 = vector.shape_cast %18 : vector<8x2x8x128xbf16> to vector<128x128xbf16>
    %c0_23 = arith.constant 0 : index
    %c256 = arith.constant 256 : index
    %20 = vector.load %arg6[%c0_23, %c256] : memref<128x1152xbf16, #tpu.memory_space<vmem>>, vector<128x128xbf16>
    tpu.vector_store %arg6[%c0_23, %c256], %19 {strides = array<i32>} : memref<128x1152xbf16, #tpu.memory_space<vmem>>, vector<128x128xbf16>,
    %c1_i32 = arith.constant 1 : i32
    %21 = arith.addi %5, %c1_i32 : i32
    %22 = arith.index_cast %21 : i32 to index
    %c0_24 = arith.constant 0 : index
    %c0_25 = arith.constant 0 : index
    %c0_26 = arith.constant 0 : index
    %23 = vector.load %arg5[%22, %c0_24, %c0_25, %c0_26] : memref<10x2x10x128xbf16, #tpu.memory_space<vmem>>, vector<8x2x8x128xbf16>
    %24 = vector.shape_cast %23 : vector<8x2x8x128xbf16> to vector<128x128xbf16>
    %c0_27 = arith.constant 0 : index
    %c384 = arith.constant 384 : index
    %25 = vector.load %arg6[%c0_27, %c384] : memref<128x1152xbf16, #tpu.memory_space<vmem>>, vector<128x128xbf16>
    tpu.vector_store %arg6[%c0_27, %c384], %24 {strides = array<i32>} : memref<128x1152xbf16, #tpu.memory_space<vmem>>, vector<128x128xbf16>,
    %c1_i32_28 = arith.constant 1 : i32
    %26 = arith.addi %5, %c1_i32_28 : i32
    %27 = arith.index_cast %26 : i32 to index
    %c0_29 = arith.constant 0 : index
    %c1_30 = arith.constant 1 : index
    %c0_31 = arith.constant 0 : index
    %28 = vector.load %arg5[%27, %c0_29, %c1_30, %c0_31] : memref<10x2x10x128xbf16, #tpu.memory_space<vmem>>, vector<8x2x8x128xbf16>
    %29 = vector.shape_cast %28 : vector<8x2x8x128xbf16> to vector<128x128xbf16>
    %c0_32 = arith.constant 0 : index
    %c512 = arith.constant 512 : index
    %30 = vector.load %arg6[%c0_32, %c512] : memref<128x1152xbf16, #tpu.memory_space<vmem>>, vector<128x128xbf16>
    tpu.vector_store %arg6[%c0_32, %c512], %29 {strides = array<i32>} : memref<128x1152xbf16, #tpu.memory_space<vmem>>, vector<128x128xbf16>,
    %c1_i32_33 = arith.constant 1 : i32
    %31 = arith.addi %5, %c1_i32_33 : i32
    %32 = arith.index_cast %31 : i32 to index
    %c0_34 = arith.constant 0 : index
    %c2_35 = arith.constant 2 : index
    %c0_36 = arith.constant 0 : index
    %33 = vector.load %arg5[%32, %c0_34, %c2_35, %c0_36] : memref<10x2x10x128xbf16, #tpu.memory_space<vmem>>, vector<8x2x8x128xbf16>
    %34 = vector.shape_cast %33 : vector<8x2x8x128xbf16> to vector<128x128xbf16>
    %c0_37 = arith.constant 0 : index
    %c640 = arith.constant 640 : index
    %35 = vector.load %arg6[%c0_37, %c640] : memref<128x1152xbf16, #tpu.memory_space<vmem>>, vector<128x128xbf16>
    tpu.vector_store %arg6[%c0_37, %c640], %34 {strides = array<i32>} : memref<128x1152xbf16, #tpu.memory_space<vmem>>, vector<128x128xbf16>,
    %c2_i32 = arith.constant 2 : i32
    %36 = arith.addi %5, %c2_i32 : i32
    %37 = arith.index_cast %36 : i32 to index
    %c0_38 = arith.constant 0 : index
    %c0_39 = arith.constant 0 : index
    %c0_40 = arith.constant 0 : index
    %38 = vector.load %arg5[%37, %c0_38, %c0_39, %c0_40] : memref<10x2x10x128xbf16, #tpu.memory_space<vmem>>, vector<8x2x8x128xbf16>
    %39 = vector.shape_cast %38 : vector<8x2x8x128xbf16> to vector<128x128xbf16>
    %c0_41 = arith.constant 0 : index
    %c768 = arith.constant 768 : index
    %40 = vector.load %arg6[%c0_41, %c768] : memref<128x1152xbf16, #tpu.memory_space<vmem>>, vector<128x128xbf16>
    tpu.vector_store %arg6[%c0_41, %c768], %39 {strides = array<i32>} : memref<128x1152xbf16, #tpu.memory_space<vmem>>, vector<128x128xbf16>,
    %c2_i32_42 = arith.constant 2 : i32
    %41 = arith.addi %5, %c2_i32_42 : i32
    %42 = arith.index_cast %41 : i32 to index
    %c0_43 = arith.constant 0 : index
    %c1_44 = arith.constant 1 : index
    %c0_45 = arith.constant 0 : index
    %43 = vector.load %arg5[%42, %c0_43, %c1_44, %c0_45] : memref<10x2x10x128xbf16, #tpu.memory_space<vmem>>, vector<8x2x8x128xbf16>
    %44 = vector.shape_cast %43 : vector<8x2x8x128xbf16> to vector<128x128xbf16>
    %c0_46 = arith.constant 0 : index
    %c896 = arith.constant 896 : index
    %45 = vector.load %arg6[%c0_46, %c896] : memref<128x1152xbf16, #tpu.memory_space<vmem>>, vector<128x128xbf16>
    tpu.vector_store %arg6[%c0_46, %c896], %44 {strides = array<i32>} : memref<128x1152xbf16, #tpu.memory_space<vmem>>, vector<128x128xbf16>,
    %c2_i32_47 = arith.constant 2 : i32
    %46 = arith.addi %5, %c2_i32_47 : i32
    %47 = arith.index_cast %46 : i32 to index
    %c0_48 = arith.constant 0 : index
    %c2_49 = arith.constant 2 : index
    %c0_50 = arith.constant 0 : index
    %48 = vector.load %arg5[%47, %c0_48, %c2_49, %c0_50] : memref<10x2x10x128xbf16, #tpu.memory_space<vmem>>, vector<8x2x8x128xbf16>
    %49 = vector.shape_cast %48 : vector<8x2x8x128xbf16> to vector<128x128xbf16>
    %c0_51 = arith.constant 0 : index
    %c1024 = arith.constant 1024 : index
    %50 = vector.load %arg6[%c0_51, %c1024] : memref<128x1152xbf16, #tpu.memory_space<vmem>>, vector<128x128xbf16>
    tpu.vector_store %arg6[%c0_51, %c1024], %49 {strides = array<i32>} : memref<128x1152xbf16, #tpu.memory_space<vmem>>, vector<128x128xbf16>,
    %c0_52 = arith.constant 0 : index
    %c0_53 = arith.constant 0 : index
    %51 = vector.load %arg6[%c0_52, %c0_53] : memref<128x1152xbf16, #tpu.memory_space<vmem>>, vector<128x1152xbf16>
    %c0_54 = arith.constant 0 : index
    %c0_55 = arith.constant 0 : index
    %52 = vector.load %arg2[%c0_54, %c0_55] : memref<1152x128xbf16, #tpu.memory_space<vmem>>, vector<1152x128xbf16>
    %cst_56 = arith.constant dense<0.000000e+00> : vector<128x128xf32>
    %53 = tpu.matmul %51, %52, %cst_56 {dimension_numbers = #tpu.dot_dimension_numbers<[1], [0], [0], [1], [0, 0, 1, 1], [], []>} : vector<128x1152xbf16>, vector<1152x128xbf16>, vector<128x128xf32> -> vector<128x128xf32>
    %54 = arith.truncf %53 : vector<128x128xf32> to vector<128x128xbf16>
    %55 = vector.shape_cast %54 : vector<128x128xbf16> to vector<8x2x8x128xbf16>
    %c0_57 = arith.constant 0 : index
    %c0_58 = arith.constant 0 : index
    %c0_59 = arith.constant 0 : index
    %c0_60 = arith.constant 0 : index
    %56 = vector.load %arg3[%c0_57, %c0_58, %c0_59, %c0_60] : memref<8x2x8x128xbf16, #tpu.memory_space<vmem>>, vector<8x2x8x128xbf16>
    tpu.vector_store %arg3[%c0_57, %c0_58, %c0_59, %c0_60], %55 {strides = array<i32>} : memref<8x2x8x128xbf16, #tpu.memory_space<vmem>>, vector<8x2x8x128xbf16>,
    %57 = arith.extf %54 : vector<128x128xbf16> to vector<128x128xf32>
    %cst_61 = arith.constant dense<0.000000e+00> : vector<128xf32>
    %58 = vector.multi_reduction <add>, %57, %cst_61 [0] : vector<128x128xf32> to vector<128xf32>
    %59 = vector.shape_cast %58 : vector<128xf32> to vector<1x128xf32>
    %60 = arith.mulf %57, %57 : vector<128x128xf32>
    %cst_62 = arith.constant dense<0.000000e+00> : vector<128xf32>
    %61 = vector.multi_reduction <add>, %60, %cst_62 [0] : vector<128x128xf32> to vector<128xf32>
    %62 = vector.shape_cast %61 : vector<128xf32> to vector<1x128xf32>
    %cst_63 = arith.constant 0.000000e+00 : f32
    %63 = vector.broadcast %cst_63 : f32 to vector<6x128xf32>
    %64 = tpu.concatenate %59, %62, %63 in 0 : vector<1x128xf32>, vector<1x128xf32>, vector<6x128xf32> -> vector<8x128xf32>
    %c0_64 = arith.constant 0 : index
    %c0_65 = arith.constant 0 : index
    %c0_66 = arith.constant 0 : index
    %65 = vector.load %arg4[%c0_64, %c0_65, %c0_66] : memref<1x8x128xf32, #tpu.memory_space<vmem>>, vector<1x8x128xf32>
    %66 = vector.shape_cast %65 : vector<1x8x128xf32> to vector<8x128xf32>
    %67 = vector.shape_cast %64 : vector<8x128xf32> to vector<1x8x128xf32>
    tpu.vector_store %arg4[%c0_64, %c0_65, %c0_66], %67 {strides = array<i32>} : memref<1x8x128xf32, #tpu.memory_space<vmem>>, vector<1x8x128xf32>,
    return
  }
  func.func @transform_0(%arg0: i32) -> (i32, i32, i32, i32) {
    %c0_i32 = arith.constant 0 : i32
    %c0_i32_0 = arith.constant 0 : i32
    %c0_i32_1 = arith.constant 0 : i32
    %c0_i32_2 = arith.constant 0 : i32
    %c0_i32_3 = arith.constant 0 : i32
    return %c0_i32, %c0_i32_0, %c0_i32_1, %c0_i32_2 : i32, i32, i32, i32
  }
  func.func @transform_1(%arg0: i32) -> (i32, i32) {
    %c0_i32 = arith.constant 0 : i32
    %c0_i32_0 = arith.constant 0 : i32
    %c0_i32_1 = arith.constant 0 : i32
    return %c0_i32, %c0_i32_0 : i32, i32
  }
  func.func @transform_2(%arg0: i32) -> (i32, i32, i32, i32) {
    %c0_i32 = arith.constant 0 : i32
    %c0_i32_0 = arith.constant 0 : i32
    %c0_i32_1 = arith.constant 0 : i32
    %c0_i32_2 = arith.constant 0 : i32
    return %arg0, %c0_i32, %c0_i32_0, %c0_i32_1 : i32, i32, i32, i32
  }
  func.func @transform_3(%arg0: i32) -> (i32, i32, i32) {
    %c0_i32 = arith.constant 0 : i32
    %c0_i32_0 = arith.constant 0 : i32
    %c0_i32_1 = arith.constant 0 : i32
    return %arg0, %c0_i32, %c0_i32_0 : i32, i32, i32
  }
}

</mosaic_0001>

<llo_original>
// kernel: tpu_custom_call.1
$region0: #{tpu_custom_call.1}
  #allocation0 [shape = 'u32[]', space=smem, size = 0x4, offset = 0x4, fixed_abs, tag = 'smem constant byte address 0x4 - core index']
  #allocation1 [shape = 'u32[144,128]{1,0:T(1,128)}', space=vmem, size = 0x12000, scoped, tag = 'internal scratch']
  #allocation2 [shape = 'bf16[10,2,10,128]{3,2,1,0:T(8,128)(2,1)}', space=vmem, size = 0x14000, scoped, tag = 'scratch operand']
  #allocation3 [shape = 'bf16[128,1152]{1,0:T(16,128)(2,1)}', space=vmem, size = 0x48000, scoped, tag = 'scratch operand']
  %s0 = inlined_call_operand.hbm [shape: bf16[8,2,8,128], index: 0, kind: input, shape index: {}]
  %s1 = inlined_call_operand.hbm [shape: bf16[1152,128], index: 1, kind: input, shape index: {}]
  %s2 = inlined_call_operand.hbm [shape: bf16[8,2,8,128], index: 2, kind: output, shape index: {0}]
  %s3 = inlined_call_operand.hbm [shape: f32[1,8,128], index: 3, kind: output, shape index: {1}]
  %4 = xla_tuple %s2, %s3
  %s5 = sld [smem:[#allocation0]]
  $region34: #{tpu_custom_call.1} parent=0
    _
  %s7 = ssub.s32 1, %s5
  %s8 = scalar_select 0, %s7, %s5
  $region1: #{tpu_custom_call.1} parent=0
    #allocation4 [shape = 'u8[32768]{0}', space=vmem, size = 0x8000, scoped, tag = 'input window, operand 0, single buffered']
    #allocation5 [shape = 's32[1]{0}', space=sflag, size = 0x4, scoped, tag = 'scoped memory for tpu_custom_call.1']
    #allocation6 [shape = 's32[1]{0}', space=sflag, size = 0x4, scoped, tag = 'scoped memory for tpu_custom_call.1']
    #allocation7 [shape = 'u8[294912]{0}', space=vmem, size = 0x48000, scoped, tag = 'input window, operand 1, single buffered']
    #allocation8 [shape = 's32[1]{0}', space=sflag, size = 0x4, scoped, tag = 'scoped memory for tpu_custom_call.1']
    #allocation9 [shape = 'u8[32768]{0}', space=vmem, size = 0x8000, scoped, tag = 'output window, operand 0, single buffered']
    #allocation10 [shape = 'u8[4096]{0}', space=vmem, size = 0x1000, scoped, tag = 'output window, operand 1, single buffered']
    #allocation11 [shape = 's32[1]{0}', space=sflag, size = 0x4, scoped, tag = 'scoped memory for tpu_custom_call.1']
    %9 = vsyncpa [#allocation5], 0
    %10 = vsyncpa [#allocation8], 0
    %11 = vsyncpa [#allocation6], 0
    %12 = vsyncpa [#allocation11], 0
    // Predicated region
    $region2: #{tpu_custom_call.1} parent=1 // pred_check
      _
    $region3: #{tpu_custom_call.1} parent=1 // pred_check_branch
      %14 = sbr.rel (0) target = $region5
    $region4: #{tpu_custom_call.1} parent=1 // pred_region
      %s16 = ssub.s32 1024, 1024
      %17 = vsyncadd [#allocation5], %s16
      %s18 = sshll.u32 [#allocation4], 4
      %s19 = int_to_ptr.vmem [resolvable:$true] %s18
      %24 = dma.hbm_to_vmem [thread:$0]  %s0, 1024, %s19, [#allocation5], 64, 64, 4
    $region5: #{tpu_custom_call.1} parent=1 // pred_fallthru
      _
    // Predicated region
    $region6: #{tpu_custom_call.1} parent=1 // pred_check
      _
    $region7: #{tpu_custom_call.1} parent=1 // pred_check_branch
      %26 = sbr.rel (0) target = $region9
    $region8: #{tpu_custom_call.1} parent=1 // pred_region
      %s28 = ssub.s32 9216, 9216
      %29 = vsyncadd [#allocation8], %s28
      %s30 = sshll.u32 [#allocation7], 4
      %s31 = int_to_ptr.vmem [resolvable:$true] %s30
      %36 = dma.hbm_to_vmem [thread:$0]  %s1, 9216, %s31, [#allocation8], 64, 64, 4
    $region9: #{tpu_custom_call.1} parent=1 // pred_fallthru
      _
    // Predicated region
    $region10: #{tpu_custom_call.1} parent=1 // pred_check
      _
    $region11: #{tpu_custom_call.1} parent=1 // pred_check_branch
      %38 = sbr.rel (0) target = $region13
    $region12: #{tpu_custom_call.1} parent=1 // pred_region
      %39 = dma.done [#allocation5], 1024
    $region13: #{tpu_custom_call.1} parent=1 // pred_fallthru
      _
    // Predicated region
    $region14: #{tpu_custom_call.1} parent=1 // pred_check
      _
    $region15: #{tpu_custom_call.1} parent=1 // pred_check_branch
      %41 = sbr.rel (0) target = $region17
    $region16: #{tpu_custom_call.1} parent=1 // pred_region
      %42 = dma.done [#allocation8], 9216
    $region17: #{tpu_custom_call.1} parent=1 // pred_fallthru
      _
    %v44 = vld [vmem:[#allocation4] sm:$0xf]
    %v45 = vld [vmem:[#allocation4 + $0x4] sm:$0xf]
    %v46 = vld [vmem:[#allocation4 + $0x8] sm:$0xf]
    %v47 = vld [vmem:[#allocation4 + $0xc] sm:$0xf]
    %v48 = vld [vmem:[#allocation4 + $0x10] sm:$0xf]
    %v49 = vld [vmem:[#allocation4 + $0x14] sm:$0xf]
    %v50 = vld [vmem:[#allocation4 + $0x18] sm:$0xf]
    %v51 = vld [vmem:[#allocation4 + $0x1c] sm:$0xf]
    %v52 = vld [vmem:[#allocation4 + $0x20] sm:$0xf]
    %v53 = vld [vmem:[#allocation4 + $0x24] sm:$0xf]
    %v54 = vld [vmem:[#allocation4 + $0x28] sm:$0xf]
    %v55 = vld [vmem:[#allocation4 + $0x2c] sm:$0xf]
    %v56 = vld [vmem:[#allocation4 + $0x30] sm:$0xf]
    %v57 = vld [vmem:[#allocation4 + $0x34] sm:$0xf]
    %v58 = vld [vmem:[#allocation4 + $0x38] sm:$0xf]
    %v59 = vld [vmem:[#allocation4 + $0x3c] sm:$0xf]
    %60 = vst [vmem:[#allocation2] sm:$0xf] 0
    %61 = vst [vmem:[#allocation2 + $0x4] sm:$0x1] 0
    %62 = vst [vmem:[#allocation2 + $0x8] sm:$0xf] 0
    %63 = vst [vmem:[#allocation2 + $0xc] sm:$0x1] 0
    %64 = vst [vmem:[#allocation2 + $0x10] sm:$0xf] 0
    %65 = vst [vmem:[#allocation2 + $0x14] sm:$0x1] 0
    %66 = vst [vmem:[#allocation2 + $0x18] sm:$0xf] 0
    %67 = vst [vmem:[#allocation2 + $0x1c] sm:$0x1] 0
    %68 = vst [vmem:[#allocation2 + $0x20] sm:$0xf] 0
    %69 = vst [vmem:[#allocation2 + $0x24] sm:$0x1] 0
    %70 = vst [vmem:[#allocation2 + $0x28] sm:$0xf] 0
    %71 = vst [vmem:[#allocation2 + $0x2c] sm:$0x1] 0
    %72 = vst [vmem:[#allocation2 + $0x30] sm:$0xf] 0
    %73 = vst [vmem:[#allocation2 + $0x34] sm:$0x1] 0
    %74 = vst [vmem:[#allocation2 + $0x38] sm:$0xf] 0
    %75 = vst [vmem:[#allocation2 + $0x3c] sm:$0x1] 0
    %76 = vst [vmem:[#allocation2 + $0x40] sm:$0xf] 0
    %77 = vst [vmem:[#allocation2 + $0x44] sm:$0x1] 0
    %78 = vst [vmem:[#allocation2 + $0x48] sm:$0xf] 0
    %79 = vst [vmem:[#allocation2 + $0x4c] sm:$0x1] 0
    %80 = vst [vmem:[#allocation2 + $0x50] sm:$0xf] 0
    %81 = vst [vmem:[#allocation2 + $0x54] sm:$0x1] 0
    %82 = vst [vmem:[#allocation2 + $0x58] sm:$0xf] 0
    %83 = vst [vmem:[#allocation2 + $0x5c] sm:$0x1] 0
    %84 = vst [vmem:[#allocation2 + $0x60] sm:$0xf] 0
    %85 = vst [vmem:[#allocation2 + $0x64] sm:$0x1] 0
    %86 = vst [vmem:[#allocation2 + $0x68] sm:$0xf] 0
    %87 = vst [vmem:[#allocation2 + $0x6c] sm:$0x1] 0
    %88 = vst [vmem:[#allocation2 + $0x70] sm:$0xf] 0
    %89 = vst [vmem:[#allocation2 + $0x74] sm:$0x1] 0
    %90 = vst [vmem:[#allocation2 + $0x78] sm:$0xf] 0
    %91 = vst [vmem:[#allocation2 + $0x7c] sm:$0x1] 0
    %92 = vst [vmem:[#allocation2 + $0x80] sm:$0xf] 0
    %93 = vst [vmem:[#allocation2 + $0x84] sm:$0x1] 0
    %94 = vst [vmem:[#allocation2 + $0x88] sm:$0xf] 0
    %95 = vst [vmem:[#allocation2 + $0x8c] sm:$0x1] 0
    %96 = vst [vmem:[#allocation2 + $0x90] sm:$0xf] 0
    %97 = vst [vmem:[#allocation2 + $0x94] sm:$0x1] 0
    %98 = vst [vmem:[#allocation2 + $0x98] sm:$0xf] 0
    %99 = vst [vmem:[#allocation2 + $0x9c] sm:$0x1] 0
    %v101 = vshrl.u32 %v44, 16
    %v103 = vrot.slane %v101, 7
    %v104 = vshll.u32 %v44, 16
    %v106 = vor.u32 %v103, %v104
    %v107 = vrot.slane %v103, 4
    %v109 = vshrl.u32 %v45, 16
    %v111 = vrot.slane %v109, 7
    %v112 = vshll.u32 %v45, 16
    %v114 = vor.u32 %v111, %v112
    %v115 = vrot.slane %v111, 4
    %v117 = vshrl.u32 %v46, 16
    %v119 = vrot.slane %v117, 7
    %v120 = vshll.u32 %v46, 16
    %v122 = vor.u32 %v119, %v120
    %v123 = vrot.slane %v119, 4
    %v125 = vshrl.u32 %v47, 16
    %v127 = vrot.slane %v125, 7
    %v128 = vshll.u32 %v47, 16
    %v130 = vor.u32 %v127, %v128
    %v131 = vrot.slane %v127, 4
    %v133 = vshrl.u32 %v48, 16
    %v135 = vrot.slane %v133, 7
    %v136 = vshll.u32 %v48, 16
    %v138 = vor.u32 %v135, %v136
    %v139 = vrot.slane %v135, 4
    %v141 = vshrl.u32 %v49, 16
    %v143 = vrot.slane %v141, 7
    %v144 = vshll.u32 %v49, 16
    %v146 = vor.u32 %v143, %v144
    %v147 = vrot.slane %v143, 4
    %v149 = vshrl.u32 %v50, 16
    %v151 = vrot.slane %v149, 7
    %v152 = vshll.u32 %v50, 16
    %v154 = vor.u32 %v151, %v152
    %v155 = vrot.slane %v151, 4
    %v157 = vshrl.u32 %v51, 16
    %v159 = vrot.slane %v157, 7
    %v160 = vshll.u32 %v51, 16
    %v162 = vor.u32 %v159, %v160
    %v163 = vrot.slane %v159, 4
    %v165 = vshrl.u32 %v52, 16
    %v167 = vrot.slane %v165, 7
    %v168 = vshll.u32 %v52, 16
    %v170 = vor.u32 %v167, %v168
    %v171 = vrot.slane %v167, 4
    %v173 = vshrl.u32 %v53, 16
    %v175 = vrot.slane %v173, 7
    %v176 = vshll.u32 %v53, 16
    %v178 = vor.u32 %v175, %v176
    %v179 = vrot.slane %v175, 4
    %v181 = vshrl.u32 %v54, 16
    %v183 = vrot.slane %v181, 7
    %v184 = vshll.u32 %v54, 16
    %v186 = vor.u32 %v183, %v184
    %v187 = vrot.slane %v183, 4
    %v189 = vshrl.u32 %v55, 16
    %v191 = vrot.slane %v189, 7
    %v192 = vshll.u32 %v55, 16
    %v194 = vor.u32 %v191, %v192
    %v195 = vrot.slane %v191, 4
    %v197 = vshrl.u32 %v56, 16
    %v199 = vrot.slane %v197, 7
    %v200 = vshll.u32 %v56, 16
    %v202 = vor.u32 %v199, %v200
    %v203 = vrot.slane %v199, 4
    %v205 = vshrl.u32 %v57, 16
    %v207 = vrot.slane %v205, 7
    %v208 = vshll.u32 %v57, 16
    %v210 = vor.u32 %v207, %v208
    %v211 = vrot.slane %v207, 4
    %v213 = vshrl.u32 %v58, 16
    %v215 = vrot.slane %v213, 7
    %v216 = vshll.u32 %v58, 16
    %v218 = vor.u32 %v215, %v216
    %v219 = vrot.slane %v215, 4
    %v221 = vshrl.u32 %v59, 16
    %v223 = vrot.slane %v221, 7
    %v224 = vshll.u32 %v59, 16
    %v226 = vor.u32 %v223, %v224
    %v227 = vrot.slane %v223, 4
    %s260 = scalar_lea.vmem [#allocation2], 16
    %vm261 = vcmask 1043456
    %vm262 = vsmask.f32 7938
    %vm263 = vmand %vm261, %vm262
    %v264 = vld [vmem:[%s260] sm:$0xf]
    %v265 = vsel %vm263, %v106, %v264
    %266 = vst [vmem:[%s260] sm:$0xf] %v265
    %vm267 = vcmask 1040384
    %vm268 = vsmask.f32 256
    %vm269 = vmand %vm267, %vm268
    %v270 = vld [vmem:[%s260 + $0x4] sm:$0x1]
    %v271 = vsel %vm269, %v107, %v270
    %272 = vst [vmem:[%s260 + $0x4] sm:$0x1] %v271
    %v273 = vld [vmem:[%s260 + $0x8] sm:$0xf]
    %v274 = vsel %vm263, %v114, %v273
    %275 = vst [vmem:[%s260 + $0x8] sm:$0xf] %v274
    %v276 = vld [vmem:[%s260 + $0xc] sm:$0x1]
    %v277 = vsel %vm269, %v115, %v276
    %278 = vst [vmem:[%s260 + $0xc] sm:$0x1] %v277
    %v279 = vld [vmem:[%s260 + $0x10] sm:$0xf]
    %v280 = vsel %vm263, %v122, %v279
    %281 = vst [vmem:[%s260 + $0x10] sm:$0xf] %v280
    %v282 = vld [vmem:[%s260 + $0x14] sm:$0x1]
    %v283 = vsel %vm269, %v123, %v282
    %284 = vst [vmem:[%s260 + $0x14] sm:$0x1] %v283
    %v285 = vld [vmem:[%s260 + $0x18] sm:$0xf]
    %v286 = vsel %vm263, %v130, %v285
    %287 = vst [vmem:[%s260 + $0x18] sm:$0xf] %v286
    %v288 = vld [vmem:[%s260 + $0x1c] sm:$0x1]
    %v289 = vsel %vm269, %v131, %v288
    %290 = vst [vmem:[%s260 + $0x1c] sm:$0x1] %v289
    %v291 = vld [vmem:[%s260 + $0x20] sm:$0xf]
    %v292 = vsel %vm263, %v138, %v291
    %293 = vst [vmem:[%s260 + $0x20] sm:$0xf] %v292
    %v294 = vld [vmem:[%s260 + $0x24] sm:$0x1]
    %v295 = vsel %vm269, %v139, %v294
    %296 = vst [vmem:[%s260 + $0x24] sm:$0x1] %v295
    %v297 = vld [vmem:[%s260 + $0x28] sm:$0xf]
    %v298 = vsel %vm263, %v146, %v297
    %299 = vst [vmem:[%s260 + $0x28] sm:$0xf] %v298
    %v300 = vld [vmem:[%s260 + $0x2c] sm:$0x1]
    %v301 = vsel %vm269, %v147, %v300
    %302 = vst [vmem:[%s260 + $0x2c] sm:$0x1] %v301
    %v303 = vld [vmem:[%s260 + $0x30] sm:$0xf]
    %v304 = vsel %vm263, %v154, %v303
    %305 = vst [vmem:[%s260 + $0x30] sm:$0xf] %v304
    %v306 = vld [vmem:[%s260 + $0x34] sm:$0x1]
    %v307 = vsel %vm269, %v155, %v306
    %308 = vst [vmem:[%s260 + $0x34] sm:$0x1] %v307
    %v309 = vld [vmem:[%s260 + $0x38] sm:$0xf]
    %v310 = vsel %vm263, %v162, %v309
    %311 = vst [vmem:[%s260 + $0x38] sm:$0xf] %v310
    %v312 = vld [vmem:[%s260 + $0x3c] sm:$0x1]
    %v313 = vsel %vm269, %v163, %v312
    %314 = vst [vmem:[%s260 + $0x3c] sm:$0x1] %v313
    %v315 = vld [vmem:[%s260 + $0x40] sm:$0xf]
    %v316 = vsel %vm263, %v170, %v315
    %317 = vst [vmem:[%s260 + $0x40] sm:$0xf] %v316
    %v318 = vld [vmem:[%s260 + $0x44] sm:$0x1]
    %v319 = vsel %vm269, %v171, %v318
    %320 = vst [vmem:[%s260 + $0x44] sm:$0x1] %v319
    %v321 = vld [vmem:[%s260 + $0x48] sm:$0xf]
    %v322 = vsel %vm263, %v178, %v321
    %323 = vst [vmem:[%s260 + $0x48] sm:$0xf] %v322
    %v324 = vld [vmem:[%s260 + $0x4c] sm:$0x1]
    %v325 = vsel %vm269, %v179, %v324
    %326 = vst [vmem:[%s260 + $0x4c] sm:$0x1] %v325
    %v327 = vld [vmem:[%s260 + $0x50] sm:$0xf]
    %v328 = vsel %vm263, %v186, %v327
    %329 = vst [vmem:[%s260 + $0x50] sm:$0xf] %v328
    %v330 = vld [vmem:[%s260 + $0x54] sm:$0x1]
    %v331 = vsel %vm269, %v187, %v330
    %332 = vst [vmem:[%s260 + $0x54] sm:$0x1] %v331
    %v333 = vld [vmem:[%s260 + $0x58] sm:$0xf]
    %v334 = vsel %vm263, %v194, %v333
    %335 = vst [vmem:[%s260 + $0x58] sm:$0xf] %v334
    %v336 = vld [vmem:[%s260 + $0x5c] sm:$0x1]
    %v337 = vsel %vm269, %v195, %v336
    %338 = vst [vmem:[%s260 + $0x5c] sm:$0x1] %v337
    %v339 = vld [vmem:[%s260 + $0x60] sm:$0xf]
    %v340 = vsel %vm263, %v202, %v339
    %341 = vst [vmem:[%s260 + $0x60] sm:$0xf] %v340
    %v342 = vld [vmem:[%s260 + $0x64] sm:$0x1]
    %v343 = vsel %vm269, %v203, %v342
    %344 = vst [vmem:[%s260 + $0x64] sm:$0x1] %v343
    %v345 = vld [vmem:[%s260 + $0x68] sm:$0xf]
    %v346 = vsel %vm263, %v210, %v345
    %347 = vst [vmem:[%s260 + $0x68] sm:$0xf] %v346
    %v348 = vld [vmem:[%s260 + $0x6c] sm:$0x1]
    %v349 = vsel %vm269, %v211, %v348
    %350 = vst [vmem:[%s260 + $0x6c] sm:$0x1] %v349
    %v351 = vld [vmem:[%s260 + $0x70] sm:$0xf]
    %v352 = vsel %vm263, %v218, %v351
    %353 = vst [vmem:[%s260 + $0x70] sm:$0xf] %v352
    %v354 = vld [vmem:[%s260 + $0x74] sm:$0x1]
    %v355 = vsel %vm269, %v219, %v354
    %356 = vst [vmem:[%s260 + $0x74] sm:$0x1] %v355
    %v357 = vld [vmem:[%s260 + $0x78] sm:$0xf]
    %v358 = vsel %vm263, %v226, %v357
    %359 = vst [vmem:[%s260 + $0x78] sm:$0xf] %v358
    %v360 = vld [vmem:[%s260 + $0x7c] sm:$0x1]
    %v361 = vsel %vm269, %v227, %v360
    %362 = vst [vmem:[%s260 + $0x7c] sm:$0x1] %v361
    %s363 = smul.u32 0, 8
    %s364 = smul.u32 %s363, 4
    %s365 = smul.addr %s364, 4
    %s366 = scalar_lea.vmem [#allocation2], %s365
    %v367 = vld [vmem:[%s366] sm:$0xf]
    %v368 = vld [vmem:[%s366 + $0x8] sm:$0xf]
    %v369 = vld [vmem:[%s366 + $0x10] sm:$0xf]
    %v370 = vld [vmem:[%s366 + $0x18] sm:$0xf]
    %v371 = vld [vmem:[%s366 + $0x20] sm:$0xf]
    %v372 = vld [vmem:[%s366 + $0x28] sm:$0xf]
    %v373 = vld [vmem:[%s366 + $0x30] sm:$0xf]
    %v374 = vld [vmem:[%s366 + $0x38] sm:$0xf]
    %v375 = vld [vmem:[%s366 + $0x40] sm:$0xf]
    %v376 = vld [vmem:[%s366 + $0x48] sm:$0xf]
    %v377 = vld [vmem:[%s366 + $0x50] sm:$0xf]
    %v378 = vld [vmem:[%s366 + $0x58] sm:$0xf]
    %v379 = vld [vmem:[%s366 + $0x60] sm:$0xf]
    %v380 = vld [vmem:[%s366 + $0x68] sm:$0xf]
    %v381 = vld [vmem:[%s366 + $0x70] sm:$0xf]
    %v382 = vld [vmem:[%s366 + $0x78] sm:$0xf]
    %v399 = vunpack.c.l.b16 %v367
    %v400 = vunpack.c.l.b16 %v368
    %v401 = vunpack.c.l.b16 %v369
    %v402 = vunpack.c.l.b16 %v370
    %v403 = vunpack.c.l.b16 %v371
    %v404 = vunpack.c.l.b16 %v372
    %v405 = vunpack.c.l.b16 %v373
    %v406 = vunpack.c.l.b16 %v374
    %v407 = vunpack.c.l.b16 %v375
    %v408 = vunpack.c.l.b16 %v376
    %v409 = vunpack.c.l.b16 %v377
    %v410 = vunpack.c.l.b16 %v378
    %v411 = vunpack.c.l.b16 %v379
    %v412 = vunpack.c.l.b16 %v380
    %v413 = vunpack.c.l.b16 %v381
    %v414 = vunpack.c.l.b16 %v382
    %v415 = vpack.c.b16 %v400, %v399
    %v416 = vpack.c.b16 %v402, %v401
    %v417 = vpack.c.b16 %v404, %v403
    %v418 = vpack.c.b16 %v406, %v405
    %v419 = vpack.c.b16 %v408, %v407
    %v420 = vpack.c.b16 %v410, %v409
    %v421 = vpack.c.b16 %v412, %v411
    %v422 = vpack.c.b16 %v414, %v413
    %431 = vst [vmem:[#allocation3] sm:$0xff] %v415
    %432 = vst [vmem:[#allocation3 + $0x48] sm:$0xff] %v416
    %433 = vst [vmem:[#allocation3 + $0x90] sm:$0xff] %v417
    %434 = vst [vmem:[#allocation3 + $0xd8] sm:$0xff] %v418
    %435 = vst [vmem:[#allocation3 + $0x120] sm:$0xff] %v419
    %436 = vst [vmem:[#allocation3 + $0x168] sm:$0xff] %v420
    %437 = vst [vmem:[#allocation3 + $0x1b0] sm:$0xff] %v421
    %438 = vst [vmem:[#allocation3 + $0x1f8] sm:$0xff] %v422
    %v439 = vld [vmem:[%s366] sm:$0xf]
    %v440 = vld [vmem:[%s366 + $0x4] sm:$0x1]
    %v441 = vld [vmem:[%s366 + $0x8] sm:$0xf]
    %v442 = vld [vmem:[%s366 + $0xc] sm:$0x1]
    %v443 = vld [vmem:[%s366 + $0x10] sm:$0xf]
    %v444 = vld [vmem:[%s366 + $0x14] sm:$0x1]
    %v445 = vld [vmem:[%s366 + $0x18] sm:$0xf]
    %v446 = vld [vmem:[%s366 + $0x1c] sm:$0x1]
    %v447 = vld [vmem:[%s366 + $0x20] sm:$0xf]
    %v448 = vld [vmem:[%s366 + $0x24] sm:$0x1]
    %v449 = vld [vmem:[%s366 + $0x28] sm:$0xf]
    %v450 = vld [vmem:[%s366 + $0x2c] sm:$0x1]
    %v451 = vld [vmem:[%s366 + $0x30] sm:$0xf]
    %v452 = vld [vmem:[%s366 + $0x34] sm:$0x1]
    %v453 = vld [vmem:[%s366 + $0x38] sm:$0xf]
    %v454 = vld [vmem:[%s366 + $0x3c] sm:$0x1]
    %v455 = vld [vmem:[%s366 + $0x40] sm:$0xf]
    %v456 = vld [vmem:[%s366 + $0x44] sm:$0x1]
    %v457 = vld [vmem:[%s366 + $0x48] sm:$0xf]
    %v458 = vld [vmem:[%s366 + $0x4c] sm:$0x1]
    %v459 = vld [vmem:[%s366 + $0x50] sm:$0xf]
    %v460 = vld [vmem:[%s366 + $0x54] sm:$0x1]
    %v461 = vld [vmem:[%s366 + $0x58] sm:$0xf]
    %v462 = vld [vmem:[%s366 + $0x5c] sm:$0x1]
    %v463 = vld [vmem:[%s366 + $0x60] sm:$0xf]
    %v464 = vld [vmem:[%s366 + $0x64] sm:$0x1]
    %v465 = vld [vmem:[%s366 + $0x68] sm:$0xf]
    %v466 = vld [vmem:[%s366 + $0x6c] sm:$0x1]
    %v467 = vld [vmem:[%s366 + $0x70] sm:$0xf]
    %v468 = vld [vmem:[%s366 + $0x74] sm:$0x1]
    %v469 = vld [vmem:[%s366 + $0x78] sm:$0xf]
    %v470 = vld [vmem:[%s366 + $0x7c] sm:$0x1]
    %vm471 = vsmask.f32 3328
    %vm472 = vsmask.f32 7440
    %vm473 = vmor %vm471, %vm472
    %v475 = vshrl.u32 %v439, 16
    %v477 = vrot.slane %v475, 4
    %v478 = vshll.u32 %v439, 16
    %v480 = vrot.slane %v478, 5
    %v481 = vor.u32 %v477, %v480
    %v482 = vrot.slane %v481, 4
    %v484 = vshll.u32 %v440, 16
    %v486 = vrot.slane %v484, 5
    %v487 = vsel %vm473, %v482, %v486
    %v489 = vshrl.u32 %v441, 16
    %v491 = vrot.slane %v489, 4
    %v492 = vshll.u32 %v441, 16
    %v494 = vrot.slane %v492, 5
    %v495 = vor.u32 %v491, %v494
    %v496 = vrot.slane %v495, 4
    %v498 = vshll.u32 %v442, 16
    %v500 = vrot.slane %v498, 5
    %v501 = vsel %vm473, %v496, %v500
    %v503 = vshrl.u32 %v443, 16
    %v505 = vrot.slane %v503, 4
    %v506 = vshll.u32 %v443, 16
    %v508 = vrot.slane %v506, 5
    %v509 = vor.u32 %v505, %v508
    %v510 = vrot.slane %v509, 4
    %v512 = vshll.u32 %v444, 16
    %v514 = vrot.slane %v512, 5
    %v515 = vsel %vm473, %v510, %v514
    %v517 = vshrl.u32 %v445, 16
    %v519 = vrot.slane %v517, 4
    %v520 = vshll.u32 %v445, 16
    %v522 = vrot.slane %v520, 5
    %v523 = vor.u32 %v519, %v522
    %v524 = vrot.slane %v523, 4
    %v526 = vshll.u32 %v446, 16
    %v528 = vrot.slane %v526, 5
    %v529 = vsel %vm473, %v524, %v528
    %v531 = vshrl.u32 %v447, 16
    %v533 = vrot.slane %v531, 4
    %v534 = vshll.u32 %v447, 16
    %v536 = vrot.slane %v534, 5
    %v537 = vor.u32 %v533, %v536
    %v538 = vrot.slane %v537, 4
    %v540 = vshll.u32 %v448, 16
    %v542 = vrot.slane %v540, 5
    %v543 = vsel %vm473, %v538, %v542
    %v545 = vshrl.u32 %v449, 16
    %v547 = vrot.slane %v545, 4
    %v548 = vshll.u32 %v449, 16
    %v550 = vrot.slane %v548, 5
    %v551 = vor.u32 %v547, %v550
    %v552 = vrot.slane %v551, 4
    %v554 = vshll.u32 %v450, 16
    %v556 = vrot.slane %v554, 5
    %v557 = vsel %vm473, %v552, %v556
    %v559 = vshrl.u32 %v451, 16
    %v561 = vrot.slane %v559, 4
    %v562 = vshll.u32 %v451, 16
    %v564 = vrot.slane %v562, 5
    %v565 = vor.u32 %v561, %v564
    %v566 = vrot.slane %v565, 4
    %v568 = vshll.u32 %v452, 16
    %v570 = vrot.slane %v568, 5
    %v571 = vsel %vm473, %v566, %v570
    %v573 = vshrl.u32 %v453, 16
    %v575 = vrot.slane %v573, 4
    %v576 = vshll.u32 %v453, 16
    %v578 = vrot.slane %v576, 5
    %v579 = vor.u32 %v575, %v578
    %v580 = vrot.slane %v579, 4
    %v582 = vshll.u32 %v454, 16
    %v584 = vrot.slane %v582, 5
    %v585 = vsel %vm473, %v580, %v584
    %v587 = vshrl.u32 %v455, 16
    %v589 = vrot.slane %v587, 4
    %v590 = vshll.u32 %v455, 16
    %v592 = vrot.slane %v590, 5
    %v593 = vor.u32 %v589, %v592
    %v594 = vrot.slane %v593, 4
    %v596 = vshll.u32 %v456, 16
    %v598 = vrot.slane %v596, 5
    %v599 = vsel %vm473, %v594, %v598
    %v601 = vshrl.u32 %v457, 16
    %v603 = vrot.slane %v601, 4
    %v604 = vshll.u32 %v457, 16
    %v606 = vrot.slane %v604, 5
    %v607 = vor.u32 %v603, %v606
    %v608 = vrot.slane %v607, 4
    %v610 = vshll.u32 %v458, 16
    %v612 = vrot.slane %v610, 5
    %v613 = vsel %vm473, %v608, %v612
    %v615 = vshrl.u32 %v459, 16
    %v617 = vrot.slane %v615, 4
    %v618 = vshll.u32 %v459, 16
    %v620 = vrot.slane %v618, 5
    %v621 = vor.u32 %v617, %v620
    %v622 = vrot.slane %v621, 4
    %v624 = vshll.u32 %v460, 16
    %v626 = vrot.slane %v624, 5
    %v627 = vsel %vm473, %v622, %v626
    %v629 = vshrl.u32 %v461, 16
    %v631 = vrot.slane %v629, 4
    %v632 = vshll.u32 %v461, 16
    %v634 = vrot.slane %v632, 5
    %v635 = vor.u32 %v631, %v634
    %v636 = vrot.slane %v635, 4
    %v638 = vshll.u32 %v462, 16
    %v640 = vrot.slane %v638, 5
    %v641 = vsel %vm473, %v636, %v640
    %v643 = vshrl.u32 %v463, 16
    %v645 = vrot.slane %v643, 4
    %v646 = vshll.u32 %v463, 16
    %v648 = vrot.slane %v646, 5
    %v649 = vor.u32 %v645, %v648
    %v650 = vrot.slane %v649, 4
    %v652 = vshll.u32 %v464, 16
    %v654 = vrot.slane %v652, 5
    %v655 = vsel %vm473, %v650, %v654
    %v657 = vshrl.u32 %v465, 16
    %v659 = vrot.slane %v657, 4
    %v660 = vshll.u32 %v465, 16
    %v662 = vrot.slane %v660, 5
    %v663 = vor.u32 %v659, %v662
    %v664 = vrot.slane %v663, 4
    %v666 = vshll.u32 %v466, 16
    %v668 = vrot.slane %v666, 5
    %v669 = vsel %vm473, %v664, %v668
    %v671 = vshrl.u32 %v467, 16
    %v673 = vrot.slane %v671, 4
    %v674 = vshll.u32 %v467, 16
    %v676 = vrot.slane %v674, 5
    %v677 = vor.u32 %v673, %v676
    %v678 = vrot.slane %v677, 4
    %v680 = vshll.u32 %v468, 16
    %v682 = vrot.slane %v680, 5
    %v683 = vsel %vm473, %v678, %v682
    %v685 = vshrl.u32 %v469, 16
    %v687 = vrot.slane %v685, 4
    %v688 = vshll.u32 %v469, 16
    %v690 = vrot.slane %v688, 5
    %v691 = vor.u32 %v687, %v690
    %v692 = vrot.slane %v691, 4
    %v694 = vshll.u32 %v470, 16
    %v696 = vrot.slane %v694, 5
    %v697 = vsel %vm473, %v692, %v696
    %v698 = vunpack.c.l.b16 %v487
    %v699 = vunpack.c.l.b16 %v501
    %v700 = vunpack.c.l.b16 %v515
    %v701 = vunpack.c.l.b16 %v529
    %v702 = vunpack.c.l.b16 %v543
    %v703 = vunpack.c.l.b16 %v557
    %v704 = vunpack.c.l.b16 %v571
    %v705 = vunpack.c.l.b16 %v585
    %v706 = vunpack.c.l.b16 %v599
    %v707 = vunpack.c.l.b16 %v613
    %v708 = vunpack.c.l.b16 %v627
    %v709 = vunpack.c.l.b16 %v641
    %v710 = vunpack.c.l.b16 %v655
    %v711 = vunpack.c.l.b16 %v669
    %v712 = vunpack.c.l.b16 %v683
    %v713 = vunpack.c.l.b16 %v697
    %v714 = vpack.c.b16 %v699, %v698
    %v715 = vpack.c.b16 %v701, %v700
    %v716 = vpack.c.b16 %v703, %v702
    %v717 = vpack.c.b16 %v705, %v704
    %v718 = vpack.c.b16 %v707, %v706
    %v719 = vpack.c.b16 %v709, %v708
    %v720 = vpack.c.b16 %v711, %v710
    %v721 = vpack.c.b16 %v713, %v712
    %730 = vst [vmem:[#allocation3 + $0x8] sm:$0xff] %v714
    %731 = vst [vmem:[#allocation3 + $0x50] sm:$0xff] %v715
    %732 = vst [vmem:[#allocation3 + $0x98] sm:$0xff] %v716
    %733 = vst [vmem:[#allocation3 + $0xe0] sm:$0xff] %v717
    %734 = vst [vmem:[#allocation3 + $0x128] sm:$0xff] %v718
    %735 = vst [vmem:[#allocation3 + $0x170] sm:$0xff] %v719
    %736 = vst [vmem:[#allocation3 + $0x1b8] sm:$0xff] %v720
    %737 = vst [vmem:[#allocation3 + $0x200] sm:$0xff] %v721
    %v738 = vld [vmem:[%s366] sm:$0xe]
    %v739 = vld [vmem:[%s366 + $0x4] sm:$0x1]
    %v740 = vld [vmem:[%s366 + $0x8] sm:$0xe]
    %v741 = vld [vmem:[%s366 + $0xc] sm:$0x1]
    %v742 = vld [vmem:[%s366 + $0x10] sm:$0xe]
    %v743 = vld [vmem:[%s366 + $0x14] sm:$0x1]
    %v744 = vld [vmem:[%s366 + $0x18] sm:$0xe]
    %v745 = vld [vmem:[%s366 + $0x1c] sm:$0x1]
    %v746 = vld [vmem:[%s366 + $0x20] sm:$0xe]
    %v747 = vld [vmem:[%s366 + $0x24] sm:$0x1]
    %v748 = vld [vmem:[%s366 + $0x28] sm:$0xe]
    %v749 = vld [vmem:[%s366 + $0x2c] sm:$0x1]
    %v750 = vld [vmem:[%s366 + $0x30] sm:$0xe]
    %v751 = vld [vmem:[%s366 + $0x34] sm:$0x1]
    %v752 = vld [vmem:[%s366 + $0x38] sm:$0xe]
    %v753 = vld [vmem:[%s366 + $0x3c] sm:$0x1]
    %v754 = vld [vmem:[%s366 + $0x40] sm:$0xe]
    %v755 = vld [vmem:[%s366 + $0x44] sm:$0x1]
    %v756 = vld [vmem:[%s366 + $0x48] sm:$0xe]
    %v757 = vld [vmem:[%s366 + $0x4c] sm:$0x1]
    %v758 = vld [vmem:[%s366 + $0x50] sm:$0xe]
    %v759 = vld [vmem:[%s366 + $0x54] sm:$0x1]
    %v760 = vld [vmem:[%s366 + $0x58] sm:$0xe]
    %v761 = vld [vmem:[%s366 + $0x5c] sm:$0x1]
    %v762 = vld [vmem:[%s366 + $0x60] sm:$0xe]
    %v763 = vld [vmem:[%s366 + $0x64] sm:$0x1]
    %v764 = vld [vmem:[%s366 + $0x68] sm:$0xe]
    %v765 = vld [vmem:[%s366 + $0x6c] sm:$0x1]
    %v766 = vld [vmem:[%s366 + $0x70] sm:$0xe]
    %v767 = vld [vmem:[%s366 + $0x74] sm:$0x1]
    %v768 = vld [vmem:[%s366 + $0x78] sm:$0xe]
    %v769 = vld [vmem:[%s366 + $0x7c] sm:$0x1]
    %vm802 = vcmask 1042432
    %vm803 = vcmask 1046532
    %vm804 = vmor %vm802, %vm803
    %v805 = vrot.slane %v738, 5
    %v806 = vrot.slane %v805, 4
    %v807 = vrot.slane %v739, 5
    %v808 = vsel %vm804, %v806, %v807
    %v809 = vrot.slane %v740, 5
    %v810 = vrot.slane %v809, 4
    %v811 = vrot.slane %v741, 5
    %v812 = vsel %vm804, %v810, %v811
    %v813 = vrot.slane %v742, 5
    %v814 = vrot.slane %v813, 4
    %v815 = vrot.slane %v743, 5
    %v816 = vsel %vm804, %v814, %v815
    %v817 = vrot.slane %v744, 5
    %v818 = vrot.slane %v817, 4
    %v819 = vrot.slane %v745, 5
    %v820 = vsel %vm804, %v818, %v819
    %v821 = vrot.slane %v746, 5
    %v822 = vrot.slane %v821, 4
    %v823 = vrot.slane %v747, 5
    %v824 = vsel %vm804, %v822, %v823
    %v825 = vrot.slane %v748, 5
    %v826 = vrot.slane %v825, 4
    %v827 = vrot.slane %v749, 5
    %v828 = vsel %vm804, %v826, %v827
    %v829 = vrot.slane %v750, 5
    %v830 = vrot.slane %v829, 4
    %v831 = vrot.slane %v751, 5
    %v832 = vsel %vm804, %v830, %v831
    %v833 = vrot.slane %v752, 5
    %v834 = vrot.slane %v833, 4
    %v835 = vrot.slane %v753, 5
    %v836 = vsel %vm804, %v834, %v835
    %v837 = vrot.slane %v754, 5
    %v838 = vrot.slane %v837, 4
    %v839 = vrot.slane %v755, 5
    %v840 = vsel %vm804, %v838, %v839
    %v841 = vrot.slane %v756, 5
    %v842 = vrot.slane %v841, 4
    %v843 = vrot.slane %v757, 5
    %v844 = vsel %vm804, %v842, %v843
    %v845 = vrot.slane %v758, 5
    %v846 = vrot.slane %v845, 4
    %v847 = vrot.slane %v759, 5
    %v848 = vsel %vm804, %v846, %v847
    %v849 = vrot.slane %v760, 5
    %v850 = vrot.slane %v849, 4
    %v851 = vrot.slane %v761, 5
    %v852 = vsel %vm804, %v850, %v851
    %v853 = vrot.slane %v762, 5
    %v854 = vrot.slane %v853, 4
    %v855 = vrot.slane %v763, 5
    %v856 = vsel %vm804, %v854, %v855
    %v857 = vrot.slane %v764, 5
    %v858 = vrot.slane %v857, 4
    %v859 = vrot.slane %v765, 5
    %v860 = vsel %vm804, %v858, %v859
    %v861 = vrot.slane %v766, 5
    %v862 = vrot.slane %v861, 4
    %v863 = vrot.slane %v767, 5
    %v864 = vsel %vm804, %v862, %v863
    %v865 = vrot.slane %v768, 5
    %v866 = vrot.slane %v865, 4
    %v867 = vrot.slane %v769, 5
    %v868 = vsel %vm804, %v866, %v867
    %v869 = vunpack.c.l.b16 %v808
    %v870 = vunpack.c.l.b16 %v812
    %v871 = vunpack.c.l.b16 %v816
    %v872 = vunpack.c.l.b16 %v820
    %v873 = vunpack.c.l.b16 %v824
    %v874 = vunpack.c.l.b16 %v828
    %v875 = vunpack.c.l.b16 %v832
    %v876 = vunpack.c.l.b16 %v836
    %v877 = vunpack.c.l.b16 %v840
    %v878 = vunpack.c.l.b16 %v844
    %v879 = vunpack.c.l.b16 %v848
    %v880 = vunpack.c.l.b16 %v852
    %v881 = vunpack.c.l.b16 %v856
    %v882 = vunpack.c.l.b16 %v860
    %v883 = vunpack.c.l.b16 %v864
    %v884 = vunpack.c.l.b16 %v868
    %v885 = vpack.c.b16 %v870, %v869
    %v886 = vpack.c.b16 %v872, %v871
    %v887 = vpack.c.b16 %v874, %v873
    %v888 = vpack.c.b16 %v876, %v875
    %v889 = vpack.c.b16 %v878, %v877
    %v890 = vpack.c.b16 %v880, %v879
    %v891 = vpack.c.b16 %v882, %v881
    %v892 = vpack.c.b16 %v884, %v883
    %901 = vst [vmem:[#allocation3 + $0x10] sm:$0xff] %v885
    %902 = vst [vmem:[#allocation3 + $0x58] sm:$0xff] %v886
    %903 = vst [vmem:[#allocation3 + $0xa0] sm:$0xff] %v887
    %904 = vst [vmem:[#allocation3 + $0xe8] sm:$0xff] %v888
    %905 = vst [vmem:[#allocation3 + $0x130] sm:$0xff] %v889
    %906 = vst [vmem:[#allocation3 + $0x178] sm:$0xff] %v890
    %907 = vst [vmem:[#allocation3 + $0x1c0] sm:$0xff] %v891
    %908 = vst [vmem:[#allocation3 + $0x208] sm:$0xff] %v892
    %s909 = sadd.s32 %s363, 1
    %s910 = smul.u32 %s909, 4
    %s911 = smul.addr %s910, 4
    %s912 = scalar_lea.vmem [#allocation2], %s911
    %v913 = vld [vmem:[%s912] sm:$0xf]
    %v914 = vld [vmem:[%s912 + $0x8] sm:$0xf]
    %v915 = vld [vmem:[%s912 + $0x10] sm:$0xf]
    %v916 = vld [vmem:[%s912 + $0x18] sm:$0xf]
    %v917 = vld [vmem:[%s912 + $0x20] sm:$0xf]
    %v918 = vld [vmem:[%s912 + $0x28] sm:$0xf]
    %v919 = vld [vmem:[%s912 + $0x30] sm:$0xf]
    %v920 = vld [vmem:[%s912 + $0x38] sm:$0xf]
    %v921 = vld [vmem:[%s912 + $0x40] sm:$0xf]
    %v922 = vld [vmem:[%s912 + $0x48] sm:$0xf]
    %v923 = vld [vmem:[%s912 + $0x50] sm:$0xf]
    %v924 = vld [vmem:[%s912 + $0x58] sm:$0xf]
    %v925 = vld [vmem:[%s912 + $0x60] sm:$0xf]
    %v926 = vld [vmem:[%s912 + $0x68] sm:$0xf]
    %v927 = vld [vmem:[%s912 + $0x70] sm:$0xf]
    %v928 = vld [vmem:[%s912 + $0x78] sm:$0xf]
    %v945 = vunpack.c.l.b16 %v913
    %v946 = vunpack.c.l.b16 %v914
    %v947 = vunpack.c.l.b16 %v915
    %v948 = vunpack.c.l.b16 %v916
    %v949 = vunpack.c.l.b16 %v917
    %v950 = vunpack.c.l.b16 %v918
    %v951 = vunpack.c.l.b16 %v919
    %v952 = vunpack.c.l.b16 %v920
    %v953 = vunpack.c.l.b16 %v921
    %v954 = vunpack.c.l.b16 %v922
    %v955 = vunpack.c.l.b16 %v923
    %v956 = vunpack.c.l.b16 %v924
    %v957 = vunpack.c.l.b16 %v925
    %v958 = vunpack.c.l.b16 %v926
    %v959 = vunpack.c.l.b16 %v927
    %v960 = vunpack.c.l.b16 %v928
    %v961 = vpack.c.b16 %v946, %v945
    %v962 = vpack.c.b16 %v948, %v947
    %v963 = vpack.c.b16 %v950, %v949
    %v964 = vpack.c.b16 %v952, %v951
    %v965 = vpack.c.b16 %v954, %v953
    %v966 = vpack.c.b16 %v956, %v955
    %v967 = vpack.c.b16 %v958, %v957
    %v968 = vpack.c.b16 %v960, %v959
    %977 = vst [vmem:[#allocation3 + $0x18] sm:$0xff] %v961
    %978 = vst [vmem:[#allocation3 + $0x60] sm:$0xff] %v962
    %979 = vst [vmem:[#allocation3 + $0xa8] sm:$0xff] %v963
    %980 = vst [vmem:[#allocation3 + $0xf0] sm:$0xff] %v964
    %981 = vst [vmem:[#allocation3 + $0x138] sm:$0xff] %v965
    %982 = vst [vmem:[#allocation3 + $0x180] sm:$0xff] %v966
    %983 = vst [vmem:[#allocation3 + $0x1c8] sm:$0xff] %v967
    %984 = vst [vmem:[#allocation3 + $0x210] sm:$0xff] %v968
    %v985 = vld [vmem:[%s912] sm:$0xf]
    %v986 = vld [vmem:[%s912 + $0x4] sm:$0x1]
    %v987 = vld [vmem:[%s912 + $0x8] sm:$0xf]
    %v988 = vld [vmem:[%s912 + $0xc] sm:$0x1]
    %v989 = vld [vmem:[%s912 + $0x10] sm:$0xf]
    %v990 = vld [vmem:[%s912 + $0x14] sm:$0x1]
    %v991 = vld [vmem:[%s912 + $0x18] sm:$0xf]
    %v992 = vld [vmem:[%s912 + $0x1c] sm:$0x1]
    %v993 = vld [vmem:[%s912 + $0x20] sm:$0xf]
    %v994 = vld [vmem:[%s912 + $0x24] sm:$0x1]
    %v995 = vld [vmem:[%s912 + $0x28] sm:$0xf]
    %v996 = vld [vmem:[%s912 + $0x2c] sm:$0x1]
    %v997 = vld [vmem:[%s912 + $0x30] sm:$0xf]
    %v998 = vld [vmem:[%s912 + $0x34] sm:$0x1]
    %v999 = vld [vmem:[%s912 + $0x38] sm:$0xf]
    %v1000 = vld [vmem:[%s912 + $0x3c] sm:$0x1]
    %v1001 = vld [vmem:[%s912 + $0x40] sm:$0xf]
    %v1002 = vld [vmem:[%s912 + $0x44] sm:$0x1]
    %v1003 = vld [vmem:[%s912 + $0x48] sm:$0xf]
    %v1004 = vld [vmem:[%s912 + $0x4c] sm:$0x1]
    %v1005 = vld [vmem:[%s912 + $0x50] sm:$0xf]
    %v1006 = vld [vmem:[%s912 + $0x54] sm:$0x1]
    %v1007 = vld [vmem:[%s912 + $0x58] sm:$0xf]
    %v1008 = vld [vmem:[%s912 + $0x5c] sm:$0x1]
    %v1009 = vld [vmem:[%s912 + $0x60] sm:$0xf]
    %v1010 = vld [vmem:[%s912 + $0x64] sm:$0x1]
    %v1011 = vld [vmem:[%s912 + $0x68] sm:$0xf]
    %v1012 = vld [vmem:[%s912 + $0x6c] sm:$0x1]
    %v1013 = vld [vmem:[%s912 + $0x70] sm:$0xf]
    %v1014 = vld [vmem:[%s912 + $0x74] sm:$0x1]
    %v1015 = vld [vmem:[%s912 + $0x78] sm:$0xf]
    %v1016 = vld [vmem:[%s912 + $0x7c] sm:$0x1]
    %v1018 = vshrl.u32 %v985, 16
    %v1020 = vrot.slane %v1018, 4
    %v1021 = vshll.u32 %v985, 16
    %v1023 = vrot.slane %v1021, 5
    %v1024 = vor.u32 %v1020, %v1023
    %v1025 = vrot.slane %v1024, 4
    %v1027 = vshll.u32 %v986, 16
    %v1029 = vrot.slane %v1027, 5
    %v1030 = vsel %vm473, %v1025, %v1029
    %v1032 = vshrl.u32 %v987, 16
    %v1034 = vrot.slane %v1032, 4
    %v1035 = vshll.u32 %v987, 16
    %v1037 = vrot.slane %v1035, 5
    %v1038 = vor.u32 %v1034, %v1037
    %v1039 = vrot.slane %v1038, 4
    %v1041 = vshll.u32 %v988, 16
    %v1043 = vrot.slane %v1041, 5
    %v1044 = vsel %vm473, %v1039, %v1043
    %v1046 = vshrl.u32 %v989, 16
    %v1048 = vrot.slane %v1046, 4
    %v1049 = vshll.u32 %v989, 16
    %v1051 = vrot.slane %v1049, 5
    %v1052 = vor.u32 %v1048, %v1051
    %v1053 = vrot.slane %v1052, 4
    %v1055 = vshll.u32 %v990, 16
    %v1057 = vrot.slane %v1055, 5
    %v1058 = vsel %vm473, %v1053, %v1057
    %v1060 = vshrl.u32 %v991, 16
    %v1062 = vrot.slane %v1060, 4
    %v1063 = vshll.u32 %v991, 16
    %v1065 = vrot.slane %v1063, 5
    %v1066 = vor.u32 %v1062, %v1065
    %v1067 = vrot.slane %v1066, 4
    %v1069 = vshll.u32 %v992, 16
    %v1071 = vrot.slane %v1069, 5
    %v1072 = vsel %vm473, %v1067, %v1071
    %v1074 = vshrl.u32 %v993, 16
    %v1076 = vrot.slane %v1074, 4
    %v1077 = vshll.u32 %v993, 16
    %v1079 = vrot.slane %v1077, 5
    %v1080 = vor.u32 %v1076, %v1079
    %v1081 = vrot.slane %v1080, 4
    %v1083 = vshll.u32 %v994, 16
    %v1085 = vrot.slane %v1083, 5
    %v1086 = vsel %vm473, %v1081, %v1085
    %v1088 = vshrl.u32 %v995, 16
    %v1090 = vrot.slane %v1088, 4
    %v1091 = vshll.u32 %v995, 16
    %v1093 = vrot.slane %v1091, 5
    %v1094 = vor.u32 %v1090, %v1093
    %v1095 = vrot.slane %v1094, 4
    %v1097 = vshll.u32 %v996, 16
    %v1099 = vrot.slane %v1097, 5
    %v1100 = vsel %vm473, %v1095, %v1099
    %v1102 = vshrl.u32 %v997, 16
    %v1104 = vrot.slane %v1102, 4
    %v1105 = vshll.u32 %v997, 16
    %v1107 = vrot.slane %v1105, 5
    %v1108 = vor.u32 %v1104, %v1107
    %v1109 = vrot.slane %v1108, 4
    %v1111 = vshll.u32 %v998, 16
    %v1113 = vrot.slane %v1111, 5
    %v1114 = vsel %vm473, %v1109, %v1113
    %v1116 = vshrl.u32 %v999, 16
    %v1118 = vrot.slane %v1116, 4
    %v1119 = vshll.u32 %v999, 16
    %v1121 = vrot.slane %v1119, 5
    %v1122 = vor.u32 %v1118, %v1121
    %v1123 = vrot.slane %v1122, 4
    %v1125 = vshll.u32 %v1000, 16
    %v1127 = vrot.slane %v1125, 5
    %v1128 = vsel %vm473, %v1123, %v1127
    %v1130 = vshrl.u32 %v1001, 16
    %v1132 = vrot.slane %v1130, 4
    %v1133 = vshll.u32 %v1001, 16
    %v1135 = vrot.slane %v1133, 5
    %v1136 = vor.u32 %v1132, %v1135
    %v1137 = vrot.slane %v1136, 4
    %v1139 = vshll.u32 %v1002, 16
    %v1141 = vrot.slane %v1139, 5
    %v1142 = vsel %vm473, %v1137, %v1141
    %v1144 = vshrl.u32 %v1003, 16
    %v1146 = vrot.slane %v1144, 4
    %v1147 = vshll.u32 %v1003, 16
    %v1149 = vrot.slane %v1147, 5
    %v1150 = vor.u32 %v1146, %v1149
    %v1151 = vrot.slane %v1150, 4
    %v1153 = vshll.u32 %v1004, 16
    %v1155 = vrot.slane %v1153, 5
    %v1156 = vsel %vm473, %v1151, %v1155
    %v1158 = vshrl.u32 %v1005, 16
    %v1160 = vrot.slane %v1158, 4
    %v1161 = vshll.u32 %v1005, 16
    %v1163 = vrot.slane %v1161, 5
    %v1164 = vor.u32 %v1160, %v1163
    %v1165 = vrot.slane %v1164, 4
    %v1167 = vshll.u32 %v1006, 16
    %v1169 = vrot.slane %v1167, 5
    %v1170 = vsel %vm473, %v1165, %v1169
    %v1172 = vshrl.u32 %v1007, 16
    %v1174 = vrot.slane %v1172, 4
    %v1175 = vshll.u32 %v1007, 16
    %v1177 = vrot.slane %v1175, 5
    %v1178 = vor.u32 %v1174, %v1177
    %v1179 = vrot.slane %v1178, 4
    %v1181 = vshll.u32 %v1008, 16
    %v1183 = vrot.slane %v1181, 5
    %v1184 = vsel %vm473, %v1179, %v1183
    %v1186 = vshrl.u32 %v1009, 16
    %v1188 = vrot.slane %v1186, 4
    %v1189 = vshll.u32 %v1009, 16
    %v1191 = vrot.slane %v1189, 5
    %v1192 = vor.u32 %v1188, %v1191
    %v1193 = vrot.slane %v1192, 4
    %v1195 = vshll.u32 %v1010, 16
    %v1197 = vrot.slane %v1195, 5
    %v1198 = vsel %vm473, %v1193, %v1197
    %v1200 = vshrl.u32 %v1011, 16
    %v1202 = vrot.slane %v1200, 4
    %v1203 = vshll.u32 %v1011, 16
    %v1205 = vrot.slane %v1203, 5
    %v1206 = vor.u32 %v1202, %v1205
    %v1207 = vrot.slane %v1206, 4
    %v1209 = vshll.u32 %v1012, 16
    %v1211 = vrot.slane %v1209, 5
    %v1212 = vsel %vm473, %v1207, %v1211
    %v1214 = vshrl.u32 %v1013, 16
    %v1216 = vrot.slane %v1214, 4
    %v1217 = vshll.u32 %v1013, 16
    %v1219 = vrot.slane %v1217, 5
    %v1220 = vor.u32 %v1216, %v1219
    %v1221 = vrot.slane %v1220, 4
    %v1223 = vshll.u32 %v1014, 16
    %v1225 = vrot.slane %v1223, 5
    %v1226 = vsel %vm473, %v1221, %v1225
    %v1228 = vshrl.u32 %v1015, 16
    %v1230 = vrot.slane %v1228, 4
    %v1231 = vshll.u32 %v1015, 16
    %v1233 = vrot.slane %v1231, 5
    %v1234 = vor.u32 %v1230, %v1233
    %v1235 = vrot.slane %v1234, 4
    %v1237 = vshll.u32 %v1016, 16
    %v1239 = vrot.slane %v1237, 5
    %v1240 = vsel %vm473, %v1235, %v1239
    %v1241 = vunpack.c.l.b16 %v1030
    %v1242 = vunpack.c.l.b16 %v1044
    %v1243 = vunpack.c.l.b16 %v1058
    %v1244 = vunpack.c.l.b16 %v1072
    %v1245 = vunpack.c.l.b16 %v1086
    %v1246 = vunpack.c.l.b16 %v1100
    %v1247 = vunpack.c.l.b16 %v1114
    %v1248 = vunpack.c.l.b16 %v1128
    %v1249 = vunpack.c.l.b16 %v1142
    %v1250 = vunpack.c.l.b16 %v1156
    %v1251 = vunpack.c.l.b16 %v1170
    %v1252 = vunpack.c.l.b16 %v1184
    %v1253 = vunpack.c.l.b16 %v1198
    %v1254 = vunpack.c.l.b16 %v1212
    %v1255 = vunpack.c.l.b16 %v1226
    %v1256 = vunpack.c.l.b16 %v1240
    %v1257 = vpack.c.b16 %v1242, %v1241
    %v1258 = vpack.c.b16 %v1244, %v1243
    %v1259 = vpack.c.b16 %v1246, %v1245
    %v1260 = vpack.c.b16 %v1248, %v1247
    %v1261 = vpack.c.b16 %v1250, %v1249
    %v1262 = vpack.c.b16 %v1252, %v1251
    %v1263 = vpack.c.b16 %v1254, %v1253
    %v1264 = vpack.c.b16 %v1256, %v1255
    %1273 = vst [vmem:[#allocation3 + $0x20] sm:$0xff] %v1257
    %1274 = vst [vmem:[#allocation3 + $0x68] sm:$0xff] %v1258
    %1275 = vst [vmem:[#allocation3 + $0xb0] sm:$0xff] %v1259
    %1276 = vst [vmem:[#allocation3 + $0xf8] sm:$0xff] %v1260
    %1277 = vst [vmem:[#allocation3 + $0x140] sm:$0xff] %v1261
    %1278 = vst [vmem:[#allocation3 + $0x188] sm:$0xff] %v1262
    %1279 = vst [vmem:[#allocation3 + $0x1d0] sm:$0xff] %v1263
    %1280 = vst [vmem:[#allocation3 + $0x218] sm:$0xff] %v1264
    %v1281 = vld [vmem:[%s912] sm:$0xe]
    %v1282 = vld [vmem:[%s912 + $0x4] sm:$0x1]
    %v1283 = vld [vmem:[%s912 + $0x8] sm:$0xe]
    %v1284 = vld [vmem:[%s912 + $0xc] sm:$0x1]
    %v1285 = vld [vmem:[%s912 + $0x10] sm:$0xe]
    %v1286 = vld [vmem:[%s912 + $0x14] sm:$0x1]
    %v1287 = vld [vmem:[%s912 + $0x18] sm:$0xe]
    %v1288 = vld [vmem:[%s912 + $0x1c] sm:$0x1]
    %v1289 = vld [vmem:[%s912 + $0x20] sm:$0xe]
    %v1290 = vld [vmem:[%s912 + $0x24] sm:$0x1]
    %v1291 = vld [vmem:[%s912 + $0x28] sm:$0xe]
    %v1292 = vld [vmem:[%s912 + $0x2c] sm:$0x1]
    %v1293 = vld [vmem:[%s912 + $0x30] sm:$0xe]
    %v1294 = vld [vmem:[%s912 + $0x34] sm:$0x1]
    %v1295 = vld [vmem:[%s912 + $0x38] sm:$0xe]
    %v1296 = vld [vmem:[%s912 + $0x3c] sm:$0x1]
    %v1297 = vld [vmem:[%s912 + $0x40] sm:$0xe]
    %v1298 = vld [vmem:[%s912 + $0x44] sm:$0x1]
    %v1299 = vld [vmem:[%s912 + $0x48] sm:$0xe]
    %v1300 = vld [vmem:[%s912 + $0x4c] sm:$0x1]
    %v1301 = vld [vmem:[%s912 + $0x50] sm:$0xe]
    %v1302 = vld [vmem:[%s912 + $0x54] sm:$0x1]
    %v1303 = vld [vmem:[%s912 + $0x58] sm:$0xe]
    %v1304 = vld [vmem:[%s912 + $0x5c] sm:$0x1]
    %v1305 = vld [vmem:[%s912 + $0x60] sm:$0xe]
    %v1306 = vld [vmem:[%s912 + $0x64] sm:$0x1]
    %v1307 = vld [vmem:[%s912 + $0x68] sm:$0xe]
    %v1308 = vld [vmem:[%s912 + $0x6c] sm:$0x1]
    %v1309 = vld [vmem:[%s912 + $0x70] sm:$0xe]
    %v1310 = vld [vmem:[%s912 + $0x74] sm:$0x1]
    %v1311 = vld [vmem:[%s912 + $0x78] sm:$0xe]
    %v1312 = vld [vmem:[%s912 + $0x7c] sm:$0x1]
    %v1345 = vrot.slane %v1281, 5
    %v1346 = vrot.slane %v1345, 4
    %v1347 = vrot.slane %v1282, 5
    %v1348 = vsel %vm804, %v1346, %v1347
    %v1349 = vrot.slane %v1283, 5
    %v1350 = vrot.slane %v1349, 4
    %v1351 = vrot.slane %v1284, 5
    %v1352 = vsel %vm804, %v1350, %v1351
    %v1353 = vrot.slane %v1285, 5
    %v1354 = vrot.slane %v1353, 4
    %v1355 = vrot.slane %v1286, 5
    %v1356 = vsel %vm804, %v1354, %v1355
    %v1357 = vrot.slane %v1287, 5
    %v1358 = vrot.slane %v1357, 4
    %v1359 = vrot.slane %v1288, 5
    %v1360 = vsel %vm804, %v1358, %v1359
    %v1361 = vrot.slane %v1289, 5
    %v1362 = vrot.slane %v1361, 4
    %v1363 = vrot.slane %v1290, 5
    %v1364 = vsel %vm804, %v1362, %v1363
    %v1365 = vrot.slane %v1291, 5
    %v1366 = vrot.slane %v1365, 4
    %v1367 = vrot.slane %v1292, 5
    %v1368 = vsel %vm804, %v1366, %v1367
    %v1369 = vrot.slane %v1293, 5
    %v1370 = vrot.slane %v1369, 4
    %v1371 = vrot.slane %v1294, 5
    %v1372 = vsel %vm804, %v1370, %v1371
    %v1373 = vrot.slane %v1295, 5
    %v1374 = vrot.slane %v1373, 4
    %v1375 = vrot.slane %v1296, 5
    %v1376 = vsel %vm804, %v1374, %v1375
    %v1377 = vrot.slane %v1297, 5
    %v1378 = vrot.slane %v1377, 4
    %v1379 = vrot.slane %v1298, 5
    %v1380 = vsel %vm804, %v1378, %v1379
    %v1381 = vrot.slane %v1299, 5
    %v1382 = vrot.slane %v1381, 4
    %v1383 = vrot.slane %v1300, 5
    %v1384 = vsel %vm804, %v1382, %v1383
    %v1385 = vrot.slane %v1301, 5
    %v1386 = vrot.slane %v1385, 4
    %v1387 = vrot.slane %v1302, 5
    %v1388 = vsel %vm804, %v1386, %v1387
    %v1389 = vrot.slane %v1303, 5
    %v1390 = vrot.slane %v1389, 4
    %v1391 = vrot.slane %v1304, 5
    %v1392 = vsel %vm804, %v1390, %v1391
    %v1393 = vrot.slane %v1305, 5
    %v1394 = vrot.slane %v1393, 4
    %v1395 = vrot.slane %v1306, 5
    %v1396 = vsel %vm804, %v1394, %v1395
    %v1397 = vrot.slane %v1307, 5
    %v1398 = vrot.slane %v1397, 4
    %v1399 = vrot.slane %v1308, 5
    %v1400 = vsel %vm804, %v1398, %v1399
    %v1401 = vrot.slane %v1309, 5
    %v1402 = vrot.slane %v1401, 4
    %v1403 = vrot.slane %v1310, 5
    %v1404 = vsel %vm804, %v1402, %v1403
    %v1405 = vrot.slane %v1311, 5
    %v1406 = vrot.slane %v1405, 4
    %v1407 = vrot.slane %v1312, 5
    %v1408 = vsel %vm804, %v1406, %v1407
    %v1409 = vunpack.c.l.b16 %v1348
    %v1410 = vunpack.c.l.b16 %v1352
    %v1411 = vunpack.c.l.b16 %v1356
    %v1412 = vunpack.c.l.b16 %v1360
    %v1413 = vunpack.c.l.b16 %v1364
    %v1414 = vunpack.c.l.b16 %v1368
    %v1415 = vunpack.c.l.b16 %v1372
    %v1416 = vunpack.c.l.b16 %v1376
    %v1417 = vunpack.c.l.b16 %v1380
    %v1418 = vunpack.c.l.b16 %v1384
    %v1419 = vunpack.c.l.b16 %v1388
    %v1420 = vunpack.c.l.b16 %v1392
    %v1421 = vunpack.c.l.b16 %v1396
    %v1422 = vunpack.c.l.b16 %v1400
    %v1423 = vunpack.c.l.b16 %v1404
    %v1424 = vunpack.c.l.b16 %v1408
    %v1425 = vpack.c.b16 %v1410, %v1409
    %v1426 = vpack.c.b16 %v1412, %v1411
    %v1427 = vpack.c.b16 %v1414, %v1413
    %v1428 = vpack.c.b16 %v1416, %v1415
    %v1429 = vpack.c.b16 %v1418, %v1417
    %v1430 = vpack.c.b16 %v1420, %v1419
    %v1431 = vpack.c.b16 %v1422, %v1421
    %v1432 = vpack.c.b16 %v1424, %v1423
    %1441 = vst [vmem:[#allocation3 + $0x28] sm:$0xff] %v1425
    %1442 = vst [vmem:[#allocation3 + $0x70] sm:$0xff] %v1426
    %1443 = vst [vmem:[#allocation3 + $0xb8] sm:$0xff] %v1427
    %1444 = vst [vmem:[#allocation3 + $0x100] sm:$0xff] %v1428
    %1445 = vst [vmem:[#allocation3 + $0x148] sm:$0xff] %v1429
    %1446 = vst [vmem:[#allocation3 + $0x190] sm:$0xff] %v1430
    %1447 = vst [vmem:[#allocation3 + $0x1d8] sm:$0xff] %v1431
    %1448 = vst [vmem:[#allocation3 + $0x220] sm:$0xff] %v1432
    %s1449 = sadd.s32 %s363, 2
    %s1450 = smul.u32 %s1449, 4
    %s1451 = smul.addr %s1450, 4
    %s1452 = scalar_lea.vmem [#allocation2], %s1451
    %v1453 = vld [vmem:[%s1452] sm:$0xf]
    %v1454 = vld [vmem:[%s1452 + $0x8] sm:$0xf]
    %v1455 = vld [vmem:[%s1452 + $0x10] sm:$0xf]
    %v1456 = vld [vmem:[%s1452 + $0x18] sm:$0xf]
    %v1457 = vld [vmem:[%s1452 + $0x20] sm:$0xf]
    %v1458 = vld [vmem:[%s1452 + $0x28] sm:$0xf]
    %v1459 = vld [vmem:[%s1452 + $0x30] sm:$0xf]
    %v1460 = vld [vmem:[%s1452 + $0x38] sm:$0xf]
    %v1461 = vld [vmem:[%s1452 + $0x40] sm:$0xf]
    %v1462 = vld [vmem:[%s1452 + $0x48] sm:$0xf]
    %v1463 = vld [vmem:[%s1452 + $0x50] sm:$0xf]
    %v1464 = vld [vmem:[%s1452 + $0x58] sm:$0xf]
    %v1465 = vld [vmem:[%s1452 + $0x60] sm:$0xf]
    %v1466 = vld [vmem:[%s1452 + $0x68] sm:$0xf]
    %v1467 = vld [vmem:[%s1452 + $0x70] sm:$0xf]
    %v1468 = vld [vmem:[%s1452 + $0x78] sm:$0xf]
    %v1485 = vunpack.c.l.b16 %v1453
    %v1486 = vunpack.c.l.b16 %v1454
    %v1487 = vunpack.c.l.b16 %v1455
    %v1488 = vunpack.c.l.b16 %v1456
    %v1489 = vunpack.c.l.b16 %v1457
    %v1490 = vunpack.c.l.b16 %v1458
    %v1491 = vunpack.c.l.b16 %v1459
    %v1492 = vunpack.c.l.b16 %v1460
    %v1493 = vunpack.c.l.b16 %v1461
    %v1494 = vunpack.c.l.b16 %v1462
    %v1495 = vunpack.c.l.b16 %v1463
    %v1496 = vunpack.c.l.b16 %v1464
    %v1497 = vunpack.c.l.b16 %v1465
    %v1498 = vunpack.c.l.b16 %v1466
    %v1499 = vunpack.c.l.b16 %v1467
    %v1500 = vunpack.c.l.b16 %v1468
    %v1501 = vpack.c.b16 %v1486, %v1485
    %v1502 = vpack.c.b16 %v1488, %v1487
    %v1503 = vpack.c.b16 %v1490, %v1489
    %v1504 = vpack.c.b16 %v1492, %v1491
    %v1505 = vpack.c.b16 %v1494, %v1493
    %v1506 = vpack.c.b16 %v1496, %v1495
    %v1507 = vpack.c.b16 %v1498, %v1497
    %v1508 = vpack.c.b16 %v1500, %v1499
    %1517 = vst [vmem:[#allocation3 + $0x30] sm:$0xff] %v1501
    %1518 = vst [vmem:[#allocation3 + $0x78] sm:$0xff] %v1502
    %1519 = vst [vmem:[#allocation3 + $0xc0] sm:$0xff] %v1503
    %1520 = vst [vmem:[#allocation3 + $0x108] sm:$0xff] %v1504
    %1521 = vst [vmem:[#allocation3 + $0x150] sm:$0xff] %v1505
    %1522 = vst [vmem:[#allocation3 + $0x198] sm:$0xff] %v1506
    %1523 = vst [vmem:[#allocation3 + $0x1e0] sm:$0xff] %v1507
    %1524 = vst [vmem:[#allocation3 + $0x228] sm:$0xff] %v1508
    %v1525 = vld [vmem:[%s1452] sm:$0xf]
    %v1526 = vld [vmem:[%s1452 + $0x4] sm:$0x1]
    %v1527 = vld [vmem:[%s1452 + $0x8] sm:$0xf]
    %v1528 = vld [vmem:[%s1452 + $0xc] sm:$0x1]
    %v1529 = vld [vmem:[%s1452 + $0x10] sm:$0xf]
    %v1530 = vld [vmem:[%s1452 + $0x14] sm:$0x1]
    %v1531 = vld [vmem:[%s1452 + $0x18] sm:$0xf]
    %v1532 = vld [vmem:[%s1452 + $0x1c] sm:$0x1]
    %v1533 = vld [vmem:[%s1452 + $0x20] sm:$0xf]
    %v1534 = vld [vmem:[%s1452 + $0x24] sm:$0x1]
    %v1535 = vld [vmem:[%s1452 + $0x28] sm:$0xf]
    %v1536 = vld [vmem:[%s1452 + $0x2c] sm:$0x1]
    %v1537 = vld [vmem:[%s1452 + $0x30] sm:$0xf]
    %v1538 = vld [vmem:[%s1452 + $0x34] sm:$0x1]
    %v1539 = vld [vmem:[%s1452 + $0x38] sm:$0xf]
    %v1540 = vld [vmem:[%s1452 + $0x3c] sm:$0x1]
    %v1541 = vld [vmem:[%s1452 + $0x40] sm:$0xf]
    %v1542 = vld [vmem:[%s1452 + $0x44] sm:$0x1]
    %v1543 = vld [vmem:[%s1452 + $0x48] sm:$0xf]
    %v1544 = vld [vmem:[%s1452 + $0x4c] sm:$0x1]
    %v1545 = vld [vmem:[%s1452 + $0x50] sm:$0xf]
    %v1546 = vld [vmem:[%s1452 + $0x54] sm:$0x1]
    %v1547 = vld [vmem:[%s1452 + $0x58] sm:$0xf]
    %v1548 = vld [vmem:[%s1452 + $0x5c] sm:$0x1]
    %v1549 = vld [vmem:[%s1452 + $0x60] sm:$0xf]
    %v1550 = vld [vmem:[%s1452 + $0x64] sm:$0x1]
    %v1551 = vld [vmem:[%s1452 + $0x68] sm:$0xf]
    %v1552 = vld [vmem:[%s1452 + $0x6c] sm:$0x1]
    %v1553 = vld [vmem:[%s1452 + $0x70] sm:$0xf]
    %v1554 = vld [vmem:[%s1452 + $0x74] sm:$0x1]
    %v1555 = vld [vmem:[%s1452 + $0x78] sm:$0xf]
    %v1556 = vld [vmem:[%s1452 + $0x7c] sm:$0x1]
    %v1558 = vshrl.u32 %v1525, 16
    %v1560 = vrot.slane %v1558, 4
    %v1561 = vshll.u32 %v1525, 16
    %v1563 = vrot.slane %v1561, 5
    %v1564 = vor.u32 %v1560, %v1563
    %v1565 = vrot.slane %v1564, 4
    %v1567 = vshll.u32 %v1526, 16
    %v1569 = vrot.slane %v1567, 5
    %v1570 = vsel %vm473, %v1565, %v1569
    %v1572 = vshrl.u32 %v1527, 16
    %v1574 = vrot.slane %v1572, 4
    %v1575 = vshll.u32 %v1527, 16
    %v1577 = vrot.slane %v1575, 5
    %v1578 = vor.u32 %v1574, %v1577
    %v1579 = vrot.slane %v1578, 4
    %v1581 = vshll.u32 %v1528, 16
    %v1583 = vrot.slane %v1581, 5
    %v1584 = vsel %vm473, %v1579, %v1583
    %v1586 = vshrl.u32 %v1529, 16
    %v1588 = vrot.slane %v1586, 4
    %v1589 = vshll.u32 %v1529, 16
    %v1591 = vrot.slane %v1589, 5
    %v1592 = vor.u32 %v1588, %v1591
    %v1593 = vrot.slane %v1592, 4
    %v1595 = vshll.u32 %v1530, 16
    %v1597 = vrot.slane %v1595, 5
    %v1598 = vsel %vm473, %v1593, %v1597
    %v1600 = vshrl.u32 %v1531, 16
    %v1602 = vrot.slane %v1600, 4
    %v1603 = vshll.u32 %v1531, 16
    %v1605 = vrot.slane %v1603, 5
    %v1606 = vor.u32 %v1602, %v1605
    %v1607 = vrot.slane %v1606, 4
    %v1609 = vshll.u32 %v1532, 16
    %v1611 = vrot.slane %v1609, 5
    %v1612 = vsel %vm473, %v1607, %v1611
    %v1614 = vshrl.u32 %v1533, 16
    %v1616 = vrot.slane %v1614, 4
    %v1617 = vshll.u32 %v1533, 16
    %v1619 = vrot.slane %v1617, 5
    %v1620 = vor.u32 %v1616, %v1619
    %v1621 = vrot.slane %v1620, 4
    %v1623 = vshll.u32 %v1534, 16
    %v1625 = vrot.slane %v1623, 5
    %v1626 = vsel %vm473, %v1621, %v1625
    %v1628 = vshrl.u32 %v1535, 16
    %v1630 = vrot.slane %v1628, 4
    %v1631 = vshll.u32 %v1535, 16
    %v1633 = vrot.slane %v1631, 5
    %v1634 = vor.u32 %v1630, %v1633
    %v1635 = vrot.slane %v1634, 4
    %v1637 = vshll.u32 %v1536, 16
    %v1639 = vrot.slane %v1637, 5
    %v1640 = vsel %vm473, %v1635, %v1639
    %v1642 = vshrl.u32 %v1537, 16
    %v1644 = vrot.slane %v1642, 4
    %v1645 = vshll.u32 %v1537, 16
    %v1647 = vrot.slane %v1645, 5
    %v1648 = vor.u32 %v1644, %v1647
    %v1649 = vrot.slane %v1648, 4
    %v1651 = vshll.u32 %v1538, 16
    %v1653 = vrot.slane %v1651, 5
    %v1654 = vsel %vm473, %v1649, %v1653
    %v1656 = vshrl.u32 %v1539, 16
    %v1658 = vrot.slane %v1656, 4
    %v1659 = vshll.u32 %v1539, 16
    %v1661 = vrot.slane %v1659, 5
    %v1662 = vor.u32 %v1658, %v1661
    %v1663 = vrot.slane %v1662, 4
    %v1665 = vshll.u32 %v1540, 16
    %v1667 = vrot.slane %v1665, 5
    %v1668 = vsel %vm473, %v1663, %v1667
    %v1670 = vshrl.u32 %v1541, 16
    %v1672 = vrot.slane %v1670, 4
    %v1673 = vshll.u32 %v1541, 16
    %v1675 = vrot.slane %v1673, 5
    %v1676 = vor.u32 %v1672, %v1675
    %v1677 = vrot.slane %v1676, 4
    %v1679 = vshll.u32 %v1542, 16
    %v1681 = vrot.slane %v1679, 5
    %v1682 = vsel %vm473, %v1677, %v1681
    %v1684 = vshrl.u32 %v1543, 16
    %v1686 = vrot.slane %v1684, 4
    %v1687 = vshll.u32 %v1543, 16
    %v1689 = vrot.slane %v1687, 5
    %v1690 = vor.u32 %v1686, %v1689
    %v1691 = vrot.slane %v1690, 4
    %v1693 = vshll.u32 %v1544, 16
    %v1695 = vrot.slane %v1693, 5
    %v1696 = vsel %vm473, %v1691, %v1695
    %v1698 = vshrl.u32 %v1545, 16
    %v1700 = vrot.slane %v1698, 4
    %v1701 = vshll.u32 %v1545, 16
    %v1703 = vrot.slane %v1701, 5
    %v1704 = vor.u32 %v1700, %v1703
    %v1705 = vrot.slane %v1704, 4
    %v1707 = vshll.u32 %v1546, 16
    %v1709 = vrot.slane %v1707, 5
    %v1710 = vsel %vm473, %v1705, %v1709
    %v1712 = vshrl.u32 %v1547, 16
    %v1714 = vrot.slane %v1712, 4
    %v1715 = vshll.u32 %v1547, 16
    %v1717 = vrot.slane %v1715, 5
    %v1718 = vor.u32 %v1714, %v1717
    %v1719 = vrot.slane %v1718, 4
    %v1721 = vshll.u32 %v1548, 16
    %v1723 = vrot.slane %v1721, 5
    %v1724 = vsel %vm473, %v1719, %v1723
    %v1726 = vshrl.u32 %v1549, 16
    %v1728 = vrot.slane %v1726, 4
    %v1729 = vshll.u32 %v1549, 16
    %v1731 = vrot.slane %v1729, 5
    %v1732 = vor.u32 %v1728, %v1731
    %v1733 = vrot.slane %v1732, 4
    %v1735 = vshll.u32 %v1550, 16
    %v1737 = vrot.slane %v1735, 5
    %v1738 = vsel %vm473, %v1733, %v1737
    %v1740 = vshrl.u32 %v1551, 16
    %v1742 = vrot.slane %v1740, 4
    %v1743 = vshll.u32 %v1551, 16
    %v1745 = vrot.slane %v1743, 5
    %v1746 = vor.u32 %v1742, %v1745
    %v1747 = vrot.slane %v1746, 4
    %v1749 = vshll.u32 %v1552, 16
    %v1751 = vrot.slane %v1749, 5
    %v1752 = vsel %vm473, %v1747, %v1751
    %v1754 = vshrl.u32 %v1553, 16
    %v1756 = vrot.slane %v1754, 4
    %v1757 = vshll.u32 %v1553, 16
    %v1759 = vrot.slane %v1757, 5
    %v1760 = vor.u32 %v1756, %v1759
    %v1761 = vrot.slane %v1760, 4
    %v1763 = vshll.u32 %v1554, 16
    %v1765 = vrot.slane %v1763, 5
    %v1766 = vsel %vm473, %v1761, %v1765
    %v1768 = vshrl.u32 %v1555, 16
    %v1770 = vrot.slane %v1768, 4
    %v1771 = vshll.u32 %v1555, 16
    %v1773 = vrot.slane %v1771, 5
    %v1774 = vor.u32 %v1770, %v1773
    %v1775 = vrot.slane %v1774, 4
    %v1777 = vshll.u32 %v1556, 16
    %v1779 = vrot.slane %v1777, 5
    %v1780 = vsel %vm473, %v1775, %v1779
    %v1781 = vunpack.c.l.b16 %v1570
    %v1782 = vunpack.c.l.b16 %v1584
    %v1783 = vunpack.c.l.b16 %v1598
    %v1784 = vunpack.c.l.b16 %v1612
    %v1785 = vunpack.c.l.b16 %v1626
    %v1786 = vunpack.c.l.b16 %v1640
    %v1787 = vunpack.c.l.b16 %v1654
    %v1788 = vunpack.c.l.b16 %v1668
    %v1789 = vunpack.c.l.b16 %v1682
    %v1790 = vunpack.c.l.b16 %v1696
    %v1791 = vunpack.c.l.b16 %v1710
    %v1792 = vunpack.c.l.b16 %v1724
    %v1793 = vunpack.c.l.b16 %v1738
    %v1794 = vunpack.c.l.b16 %v1752
    %v1795 = vunpack.c.l.b16 %v1766
    %v1796 = vunpack.c.l.b16 %v1780
    %v1797 = vpack.c.b16 %v1782, %v1781
    %v1798 = vpack.c.b16 %v1784, %v1783
    %v1799 = vpack.c.b16 %v1786, %v1785
    %v1800 = vpack.c.b16 %v1788, %v1787
    %v1801 = vpack.c.b16 %v1790, %v1789
    %v1802 = vpack.c.b16 %v1792, %v1791
    %v1803 = vpack.c.b16 %v1794, %v1793
    %v1804 = vpack.c.b16 %v1796, %v1795
    %1813 = vst [vmem:[#allocation3 + $0x38] sm:$0xff] %v1797
    %1814 = vst [vmem:[#allocation3 + $0x80] sm:$0xff] %v1798
    %1815 = vst [vmem:[#allocation3 + $0xc8] sm:$0xff] %v1799
    %1816 = vst [vmem:[#allocation3 + $0x110] sm:$0xff] %v1800
    %1817 = vst [vmem:[#allocation3 + $0x158] sm:$0xff] %v1801
    %1818 = vst [vmem:[#allocation3 + $0x1a0] sm:$0xff] %v1802
    %1819 = vst [vmem:[#allocation3 + $0x1e8] sm:$0xff] %v1803
    %1820 = vst [vmem:[#allocation3 + $0x230] sm:$0xff] %v1804
    %v1821 = vld [vmem:[%s1452] sm:$0xe]
    %v1822 = vld [vmem:[%s1452 + $0x4] sm:$0x1]
    %v1823 = vld [vmem:[%s1452 + $0x8] sm:$0xe]
    %v1824 = vld [vmem:[%s1452 + $0xc] sm:$0x1]
    %v1825 = vld [vmem:[%s1452 + $0x10] sm:$0xe]
    %v1826 = vld [vmem:[%s1452 + $0x14] sm:$0x1]
    %v1827 = vld [vmem:[%s1452 + $0x18] sm:$0xe]
    %v1828 = vld [vmem:[%s1452 + $0x1c] sm:$0x1]
    %v1829 = vld [vmem:[%s1452 + $0x20] sm:$0xe]
    %v1830 = vld [vmem:[%s1452 + $0x24] sm:$0x1]
    %v1831 = vld [vmem:[%s1452 + $0x28] sm:$0xe]
    %v1832 = vld [vmem:[%s1452 + $0x2c] sm:$0x1]
    %v1833 = vld [vmem:[%s1452 + $0x30] sm:$0xe]
    %v1834 = vld [vmem:[%s1452 + $0x34] sm:$0x1]
    %v1835 = vld [vmem:[%s1452 + $0x38] sm:$0xe]
    %v1836 = vld [vmem:[%s1452 + $0x3c] sm:$0x1]
    %v1837 = vld [vmem:[%s1452 + $0x40] sm:$0xe]
    %v1838 = vld [vmem:[%s1452 + $0x44] sm:$0x1]
    %v1839 = vld [vmem:[%s1452 + $0x48] sm:$0xe]
    %v1840 = vld [vmem:[%s1452 + $0x4c] sm:$0x1]
    %v1841 = vld [vmem:[%s1452 + $0x50] sm:$0xe]
    %v1842 = vld [vmem:[%s1452 + $0x54] sm:$0x1]
    %v1843 = vld [vmem:[%s1452 + $0x58] sm:$0xe]
    %v1844 = vld [vmem:[%s1452 + $0x5c] sm:$0x1]
    %v1845 = vld [vmem:[%s1452 + $0x60] sm:$0xe]
    %v1846 = vld [vmem:[%s1452 + $0x64] sm:$0x1]
    %v1847 = vld [vmem:[%s1452 + $0x68] sm:$0xe]
    %v1848 = vld [vmem:[%s1452 + $0x6c] sm:$0x1]
    %v1849 = vld [vmem:[%s1452 + $0x70] sm:$0xe]
    %v1850 = vld [vmem:[%s1452 + $0x74] sm:$0x1]
    %v1851 = vld [vmem:[%s1452 + $0x78] sm:$0xe]
    %v1852 = vld [vmem:[%s1452 + $0x7c] sm:$0x1]
    %v1885 = vrot.slane %v1821, 5
    %v1886 = vrot.slane %v1885, 4
    %v1887 = vrot.slane %v1822, 5
    %v1888 = vsel %vm804, %v1886, %v1887
    %v1889 = vrot.slane %v1823, 5
    %v1890 = vrot.slane %v1889, 4
    %v1891 = vrot.slane %v1824, 5
    %v1892 = vsel %vm804, %v1890, %v1891
    %v1893 = vrot.slane %v1825, 5
    %v1894 = vrot.slane %v1893, 4
    %v1895 = vrot.slane %v1826, 5
    %v1896 = vsel %vm804, %v1894, %v1895
    %v1897 = vrot.slane %v1827, 5
    %v1898 = vrot.slane %v1897, 4
    %v1899 = vrot.slane %v1828, 5
    %v1900 = vsel %vm804, %v1898, %v1899
    %v1901 = vrot.slane %v1829, 5
    %v1902 = vrot.slane %v1901, 4
    %v1903 = vrot.slane %v1830, 5
    %v1904 = vsel %vm804, %v1902, %v1903
    %v1905 = vrot.slane %v1831, 5
    %v1906 = vrot.slane %v1905, 4
    %v1907 = vrot.slane %v1832, 5
    %v1908 = vsel %vm804, %v1906, %v1907
    %v1909 = vrot.slane %v1833, 5
    %v1910 = vrot.slane %v1909, 4
    %v1911 = vrot.slane %v1834, 5
    %v1912 = vsel %vm804, %v1910, %v1911
    %v1913 = vrot.slane %v1835, 5
    %v1914 = vrot.slane %v1913, 4
    %v1915 = vrot.slane %v1836, 5
    %v1916 = vsel %vm804, %v1914, %v1915
    %v1917 = vrot.slane %v1837, 5
    %v1918 = vrot.slane %v1917, 4
    %v1919 = vrot.slane %v1838, 5
    %v1920 = vsel %vm804, %v1918, %v1919
    %v1921 = vrot.slane %v1839, 5
    %v1922 = vrot.slane %v1921, 4
    %v1923 = vrot.slane %v1840, 5
    %v1924 = vsel %vm804, %v1922, %v1923
    %v1925 = vrot.slane %v1841, 5
    %v1926 = vrot.slane %v1925, 4
    %v1927 = vrot.slane %v1842, 5
    %v1928 = vsel %vm804, %v1926, %v1927
    %v1929 = vrot.slane %v1843, 5
    %v1930 = vrot.slane %v1929, 4
    %v1931 = vrot.slane %v1844, 5
    %v1932 = vsel %vm804, %v1930, %v1931
    %v1933 = vrot.slane %v1845, 5
    %v1934 = vrot.slane %v1933, 4
    %v1935 = vrot.slane %v1846, 5
    %v1936 = vsel %vm804, %v1934, %v1935
    %v1937 = vrot.slane %v1847, 5
    %v1938 = vrot.slane %v1937, 4
    %v1939 = vrot.slane %v1848, 5
    %v1940 = vsel %vm804, %v1938, %v1939
    %v1941 = vrot.slane %v1849, 5
    %v1942 = vrot.slane %v1941, 4
    %v1943 = vrot.slane %v1850, 5
    %v1944 = vsel %vm804, %v1942, %v1943
    %v1945 = vrot.slane %v1851, 5
    %v1946 = vrot.slane %v1945, 4
    %v1947 = vrot.slane %v1852, 5
    %v1948 = vsel %vm804, %v1946, %v1947
    %v1949 = vunpack.c.l.b16 %v1888
    %v1950 = vunpack.c.l.b16 %v1892
    %v1951 = vunpack.c.l.b16 %v1896
    %v1952 = vunpack.c.l.b16 %v1900
    %v1953 = vunpack.c.l.b16 %v1904
    %v1954 = vunpack.c.l.b16 %v1908
    %v1955 = vunpack.c.l.b16 %v1912
    %v1956 = vunpack.c.l.b16 %v1916
    %v1957 = vunpack.c.l.b16 %v1920
    %v1958 = vunpack.c.l.b16 %v1924
    %v1959 = vunpack.c.l.b16 %v1928
    %v1960 = vunpack.c.l.b16 %v1932
    %v1961 = vunpack.c.l.b16 %v1936
    %v1962 = vunpack.c.l.b16 %v1940
    %v1963 = vunpack.c.l.b16 %v1944
    %v1964 = vunpack.c.l.b16 %v1948
    %v1965 = vpack.c.b16 %v1950, %v1949
    %v1966 = vpack.c.b16 %v1952, %v1951
    %v1967 = vpack.c.b16 %v1954, %v1953
    %v1968 = vpack.c.b16 %v1956, %v1955
    %v1969 = vpack.c.b16 %v1958, %v1957
    %v1970 = vpack.c.b16 %v1960, %v1959
    %v1971 = vpack.c.b16 %v1962, %v1961
    %v1972 = vpack.c.b16 %v1964, %v1963
    %1981 = vst [vmem:[#allocation3 + $0x40] sm:$0xff] %v1965
    %1982 = vst [vmem:[#allocation3 + $0x88] sm:$0xff] %v1966
    %1983 = vst [vmem:[#allocation3 + $0xd0] sm:$0xff] %v1967
    %1984 = vst [vmem:[#allocation3 + $0x118] sm:$0xff] %v1968
    %1985 = vst [vmem:[#allocation3 + $0x160] sm:$0xff] %v1969
    %1986 = vst [vmem:[#allocation3 + $0x1a8] sm:$0xff] %v1970
    %1987 = vst [vmem:[#allocation3 + $0x1f0] sm:$0xff] %v1971
    %1988 = vst [vmem:[#allocation3 + $0x238] sm:$0xff] %v1972
    %v1989 = vld [vmem:[#allocation3] sm:$0xff]
    %v1990 = vld [vmem:[#allocation3 + $0x8] sm:$0xff]
    %v1991 = vld [vmem:[#allocation3 + $0x10] sm:$0xff]
    %v1992 = vld [vmem:[#allocation3 + $0x18] sm:$0xff]
    %v1993 = vld [vmem:[#allocation3 + $0x20] sm:$0xff]
    %v1994 = vld [vmem:[#allocation3 + $0x28] sm:$0xff]
    %v1995 = vld [vmem:[#allocation3 + $0x30] sm:$0xff]
    %v1996 = vld [vmem:[#allocation3 + $0x38] sm:$0xff]
    %v1997 = vld [vmem:[#allocation3 + $0x40] sm:$0xff]
    %v1998 = vld [vmem:[#allocation3 + $0x48] sm:$0xff]
    %v1999 = vld [vmem:[#allocation3 + $0x50] sm:$0xff]
    %v2000 = vld [vmem:[#allocation3 + $0x58] sm:$0xff]
    %v2001 = vld [vmem:[#allocation3 + $0x60] sm:$0xff]
    %v2002 = vld [vmem:[#allocation3 + $0x68] sm:$0xff]
    %v2003 = vld [vmem:[#allocation3 + $0x70] sm:$0xff]
    %v2004 = vld [vmem:[#allocation3 + $0x78] sm:$0xff]
    %v2005 = vld [vmem:[#allocation3 + $0x80] sm:$0xff]
    %v2006 = vld [vmem:[#allocation3 + $0x88] sm:$0xff]
    %v2007 = vld [vmem:[#allocation3 + $0x90] sm:$0xff]
    %v2008 = vld [vmem:[#allocation3 + $0x98] sm:$0xff]
    %v2009 = vld [vmem:[#allocation3 + $0xa0] sm:$0xff]
    %v2010 = vld [vmem:[#allocation3 + $0xa8] sm:$0xff]
    %v2011 = vld [vmem:[#allocation3 + $0xb0] sm:$0xff]
    %v2012 = vld [vmem:[#allocation3 + $0xb8] sm:$0xff]
    %v2013 = vld [vmem:[#allocation3 + $0xc0] sm:$0xff]
    %v2014 = vld [vmem:[#allocation3 + $0xc8] sm:$0xff]
    %v2015 = vld [vmem:[#allocation3 + $0xd0] sm:$0xff]
    %v2016 = vld [vmem:[#allocation3 + $0xd8] sm:$0xff]
    %v2017 = vld [vmem:[#allocation3 + $0xe0] sm:$0xff]
    %v2018 = vld [vmem:[#allocation3 + $0xe8] sm:$0xff]
    %v2019 = vld [vmem:[#allocation3 + $0xf0] sm:$0xff]
    %v2020 = vld [vmem:[#allocation3 + $0xf8] sm:$0xff]
    %v2021 = vld [vmem:[#allocation3 + $0x100] sm:$0xff]
    %v2022 = vld [vmem:[#allocation3 + $0x108] sm:$0xff]
    %v2023 = vld [vmem:[#allocation3 + $0x110] sm:$0xff]
    %v2024 = vld [vmem:[#allocation3 + $0x118] sm:$0xff]
    %v2025 = vld [vmem:[#allocation3 + $0x120] sm:$0xff]
    %v2026 = vld [vmem:[#allocation3 + $0x128] sm:$0xff]
    %v2027 = vld [vmem:[#allocation3 + $0x130] sm:$0xff]
    %v2028 = vld [vmem:[#allocation3 + $0x138] sm:$0xff]
    %v2029 = vld [vmem:[#allocation3 + $0x140] sm:$0xff]
    %v2030 = vld [vmem:[#allocation3 + $0x148] sm:$0xff]
    %v2031 = vld [vmem:[#allocation3 + $0x150] sm:$0xff]
    %v2032 = vld [vmem:[#allocation3 + $0x158] sm:$0xff]
    %v2033 = vld [vmem:[#allocation3 + $0x160] sm:$0xff]
    %v2034 = vld [vmem:[#allocation3 + $0x168] sm:$0xff]
    %v2035 = vld [vmem:[#allocation3 + $0x170] sm:$0xff]
    %v2036 = vld [vmem:[#allocation3 + $0x178] sm:$0xff]
    %v2037 = vld [vmem:[#allocation3 + $0x180] sm:$0xff]
    %v2038 = vld [vmem:[#allocation3 + $0x188] sm:$0xff]
    %v2039 = vld [vmem:[#allocation3 + $0x190] sm:$0xff]
    %v2040 = vld [vmem:[#allocation3 + $0x198] sm:$0xff]
    %v2041 = vld [vmem:[#allocation3 + $0x1a0] sm:$0xff]
    %v2042 = vld [vmem:[#allocation3 + $0x1a8] sm:$0xff]
    %v2043 = vld [vmem:[#allocation3 + $0x1b0] sm:$0xff]
    %v2044 = vld [vmem:[#allocation3 + $0x1b8] sm:$0xff]
    %v2045 = vld [vmem:[#allocation3 + $0x1c0] sm:$0xff]
    %v2046 = vld [vmem:[#allocation3 + $0x1c8] sm:$0xff]
    %v2047 = vld [vmem:[#allocation3 + $0x1d0] sm:$0xff]
    %v2048 = vld [vmem:[#allocation3 + $0x1d8] sm:$0xff]
    %v2049 = vld [vmem:[#allocation3 + $0x1e0] sm:$0xff]
    %v2050 = vld [vmem:[#allocation3 + $0x1e8] sm:$0xff]
    %v2051 = vld [vmem:[#allocation3 + $0x1f0] sm:$0xff]
    %v2052 = vld [vmem:[#allocation3 + $0x1f8] sm:$0xff]
    %v2053 = vld [vmem:[#allocation3 + $0x200] sm:$0xff]
    %v2054 = vld [vmem:[#allocation3 + $0x208] sm:$0xff]
    %v2055 = vld [vmem:[#allocation3 + $0x210] sm:$0xff]
    %v2056 = vld [vmem:[#allocation3 + $0x218] sm:$0xff]
    %v2057 = vld [vmem:[#allocation3 + $0x220] sm:$0xff]
    %v2058 = vld [vmem:[#allocation3 + $0x228] sm:$0xff]
    %v2059 = vld [vmem:[#allocation3 + $0x230] sm:$0xff]
    %v2060 = vld [vmem:[#allocation3 + $0x238] sm:$0xff]
    %v2061 = vld [vmem:[#allocation7] sm:$0xf]
    %v2062 = vld [vmem:[#allocation7 + $0x4] sm:$0xf]
    %v2063 = vld [vmem:[#allocation7 + $0x8] sm:$0xf]
    %v2064 = vld [vmem:[#allocation7 + $0xc] sm:$0xf]
    %v2065 = vld [vmem:[#allocation7 + $0x10] sm:$0xf]
    %v2066 = vld [vmem:[#allocation7 + $0x14] sm:$0xf]
    %v2067 = vld [vmem:[#allocation7 + $0x18] sm:$0xf]
    %v2068 = vld [vmem:[#allocation7 + $0x1c] sm:$0xf]
    %v2069 = vld [vmem:[#allocation7 + $0x20] sm:$0xf]
    %v2070 = vld [vmem:[#allocation7 + $0x24] sm:$0xf]
    %v2071 = vld [vmem:[#allocation7 + $0x28] sm:$0xf]
    %v2072 = vld [vmem:[#allocation7 + $0x2c] sm:$0xf]
    %v2073 = vld [vmem:[#allocation7 + $0x30] sm:$0xf]
    %v2074 = vld [vmem:[#allocation7 + $0x34] sm:$0xf]
    %v2075 = vld [vmem:[#allocation7 + $0x38] sm:$0xf]
    %v2076 = vld [vmem:[#allocation7 + $0x3c] sm:$0xf]
    %v2077 = vld [vmem:[#allocation7 + $0x40] sm:$0xf]
    %v2078 = vld [vmem:[#allocation7 + $0x44] sm:$0xf]
    %v2079 = vld [vmem:[#allocation7 + $0x48] sm:$0xf]
    %v2080 = vld [vmem:[#allocation7 + $0x4c] sm:$0xf]
    %v2081 = vld [vmem:[#allocation7 + $0x50] sm:$0xf]
    %v2082 = vld [vmem:[#allocation7 + $0x54] sm:$0xf]
    %v2083 = vld [vmem:[#allocation7 + $0x58] sm:$0xf]
    %v2084 = vld [vmem:[#allocation7 + $0x5c] sm:$0xf]
    %v2085 = vld [vmem:[#allocation7 + $0x60] sm:$0xf]
    %v2086 = vld [vmem:[#allocation7 + $0x64] sm:$0xf]
    %v2087 = vld [vmem:[#allocation7 + $0x68] sm:$0xf]
    %v2088 = vld [vmem:[#allocation7 + $0x6c] sm:$0xf]
    %v2089 = vld [vmem:[#allocation7 + $0x70] sm:$0xf]
    %v2090 = vld [vmem:[#allocation7 + $0x74] sm:$0xf]
    %v2091 = vld [vmem:[#allocation7 + $0x78] sm:$0xf]
    %v2092 = vld [vmem:[#allocation7 + $0x7c] sm:$0xf]
    %v2093 = vld [vmem:[#allocation7 + $0x80] sm:$0xf]
    %v2094 = vld [vmem:[#allocation7 + $0x84] sm:$0xf]
    %v2095 = vld [vmem:[#allocation7 + $0x88] sm:$0xf]
    %v2096 = vld [vmem:[#allocation7 + $0x8c] sm:$0xf]
    %v2097 = vld [vmem:[#allocation7 + $0x90] sm:$0xf]
    %v2098 = vld [vmem:[#allocation7 + $0x94] sm:$0xf]
    %v2099 = vld [vmem:[#allocation7 + $0x98] sm:$0xf]
    %v2100 = vld [vmem:[#allocation7 + $0x9c] sm:$0xf]
    %v2101 = vld [vmem:[#allocation7 + $0xa0] sm:$0xf]
    %v2102 = vld [vmem:[#allocation7 + $0xa4] sm:$0xf]
    %v2103 = vld [vmem:[#allocation7 + $0xa8] sm:$0xf]
    %v2104 = vld [vmem:[#allocation7 + $0xac] sm:$0xf]
    %v2105 = vld [vmem:[#allocation7 + $0xb0] sm:$0xf]
    %v2106 = vld [vmem:[#allocation7 + $0xb4] sm:$0xf]
    %v2107 = vld [vmem:[#allocation7 + $0xb8] sm:$0xf]
    %v2108 = vld [vmem:[#allocation7 + $0xbc] sm:$0xf]
    %v2109 = vld [vmem:[#allocation7 + $0xc0] sm:$0xf]
    %v2110 = vld [vmem:[#allocation7 + $0xc4] sm:$0xf]
    %v2111 = vld [vmem:[#allocation7 + $0xc8] sm:$0xf]
    %v2112 = vld [vmem:[#allocation7 + $0xcc] sm:$0xf]
    %v2113 = vld [vmem:[#allocation7 + $0xd0] sm:$0xf]
    %v2114 = vld [vmem:[#allocation7 + $0xd4] sm:$0xf]
    %v2115 = vld [vmem:[#allocation7 + $0xd8] sm:$0xf]
    %v2116 = vld [vmem:[#allocation7 + $0xdc] sm:$0xf]
    %v2117 = vld [vmem:[#allocation7 + $0xe0] sm:$0xf]
    %v2118 = vld [vmem:[#allocation7 + $0xe4] sm:$0xf]
    %v2119 = vld [vmem:[#allocation7 + $0xe8] sm:$0xf]
    %v2120 = vld [vmem:[#allocation7 + $0xec] sm:$0xf]
    %v2121 = vld [vmem:[#allocation7 + $0xf0] sm:$0xf]
    %v2122 = vld [vmem:[#allocation7 + $0xf4] sm:$0xf]
    %v2123 = vld [vmem:[#allocation7 + $0xf8] sm:$0xf]
    %v2124 = vld [vmem:[#allocation7 + $0xfc] sm:$0xf]
    %v2125 = vld [vmem:[#allocation7 + $0x100] sm:$0xf]
    %v2126 = vld [vmem:[#allocation7 + $0x104] sm:$0xf]
    %v2127 = vld [vmem:[#allocation7 + $0x108] sm:$0xf]
    %v2128 = vld [vmem:[#allocation7 + $0x10c] sm:$0xf]
    %v2129 = vld [vmem:[#allocation7 + $0x110] sm:$0xf]
    %v2130 = vld [vmem:[#allocation7 + $0x114] sm:$0xf]
    %v2131 = vld [vmem:[#allocation7 + $0x118] sm:$0xf]
    %v2132 = vld [vmem:[#allocation7 + $0x11c] sm:$0xf]
    %v2133 = vld [vmem:[#allocation7 + $0x120] sm:$0xf]
    %v2134 = vld [vmem:[#allocation7 + $0x124] sm:$0xf]
    %v2135 = vld [vmem:[#allocation7 + $0x128] sm:$0xf]
    %v2136 = vld [vmem:[#allocation7 + $0x12c] sm:$0xf]
    %v2137 = vld [vmem:[#allocation7 + $0x130] sm:$0xf]
    %v2138 = vld [vmem:[#allocation7 + $0x134] sm:$0xf]
    %v2139 = vld [vmem:[#allocation7 + $0x138] sm:$0xf]
    %v2140 = vld [vmem:[#allocation7 + $0x13c] sm:$0xf]
    %v2141 = vld [vmem:[#allocation7 + $0x140] sm:$0xf]
    %v2142 = vld [vmem:[#allocation7 + $0x144] sm:$0xf]
    %v2143 = vld [vmem:[#allocation7 + $0x148] sm:$0xf]
    %v2144 = vld [vmem:[#allocation7 + $0x14c] sm:$0xf]
    %v2145 = vld [vmem:[#allocation7 + $0x150] sm:$0xf]
    %v2146 = vld [vmem:[#allocation7 + $0x154] sm:$0xf]
    %v2147 = vld [vmem:[#allocation7 + $0x158] sm:$0xf]
    %v2148 = vld [vmem:[#allocation7 + $0x15c] sm:$0xf]
    %v2149 = vld [vmem:[#allocation7 + $0x160] sm:$0xf]
    %v2150 = vld [vmem:[#allocation7 + $0x164] sm:$0xf]
    %v2151 = vld [vmem:[#allocation7 + $0x168] sm:$0xf]
    %v2152 = vld [vmem:[#allocation7 + $0x16c] sm:$0xf]
    %v2153 = vld [vmem:[#allocation7 + $0x170] sm:$0xf]
    %v2154 = vld [vmem:[#allocation7 + $0x174] sm:$0xf]
    %v2155 = vld [vmem:[#allocation7 + $0x178] sm:$0xf]
    %v2156 = vld [vmem:[#allocation7 + $0x17c] sm:$0xf]
    %v2157 = vld [vmem:[#allocation7 + $0x180] sm:$0xf]
    %v2158 = vld [vmem:[#allocation7 + $0x184] sm:$0xf]
    %v2159 = vld [vmem:[#allocation7 + $0x188] sm:$0xf]
    %v2160 = vld [vmem:[#allocation7 + $0x18c] sm:$0xf]
    %v2161 = vld [vmem:[#allocation7 + $0x190] sm:$0xf]
    %v2162 = vld [vmem:[#allocation7 + $0x194] sm:$0xf]
    %v2163 = vld [vmem:[#allocation7 + $0x198] sm:$0xf]
    %v2164 = vld [vmem:[#allocation7 + $0x19c] sm:$0xf]
    %v2165 = vld [vmem:[#allocation7 + $0x1a0] sm:$0xf]
    %v2166 = vld [vmem:[#allocation7 + $0x1a4] sm:$0xf]
    %v2167 = vld [vmem:[#allocation7 + $0x1a8] sm:$0xf]
    %v2168 = vld [vmem:[#allocation7 + $0x1ac] sm:$0xf]
    %v2169 = vld [vmem:[#allocation7 + $0x1b0] sm:$0xf]
    %v2170 = vld [vmem:[#allocation7 + $0x1b4] sm:$0xf]
    %v2171 = vld [vmem:[#allocation7 + $0x1b8] sm:$0xf]
    %v2172 = vld [vmem:[#allocation7 + $0x1bc] sm:$0xf]
    %v2173 = vld [vmem:[#allocation7 + $0x1c0] sm:$0xf]
    %v2174 = vld [vmem:[#allocation7 + $0x1c4] sm:$0xf]
    %v2175 = vld [vmem:[#allocation7 + $0x1c8] sm:$0xf]
    %v2176 = vld [vmem:[#allocation7 + $0x1cc] sm:$0xf]
    %v2177 = vld [vmem:[#allocation7 + $0x1d0] sm:$0xf]
    %v2178 = vld [vmem:[#allocation7 + $0x1d4] sm:$0xf]
    %v2179 = vld [vmem:[#allocation7 + $0x1d8] sm:$0xf]
    %v2180 = vld [vmem:[#allocation7 + $0x1dc] sm:$0xf]
    %v2181 = vld [vmem:[#allocation7 + $0x1e0] sm:$0xf]
    %v2182 = vld [vmem:[#allocation7 + $0x1e4] sm:$0xf]
    %v2183 = vld [vmem:[#allocation7 + $0x1e8] sm:$0xf]
    %v2184 = vld [vmem:[#allocation7 + $0x1ec] sm:$0xf]
    %v2185 = vld [vmem:[#allocation7 + $0x1f0] sm:$0xf]
    %v2186 = vld [vmem:[#allocation7 + $0x1f4] sm:$0xf]
    %v2187 = vld [vmem:[#allocation7 + $0x1f8] sm:$0xf]
    %v2188 = vld [vmem:[#allocation7 + $0x1fc] sm:$0xf]
    %v2189 = vld [vmem:[#allocation7 + $0x200] sm:$0xf]
    %v2190 = vld [vmem:[#allocation7 + $0x204] sm:$0xf]
    %v2191 = vld [vmem:[#allocation7 + $0x208] sm:$0xf]
    %v2192 = vld [vmem:[#allocation7 + $0x20c] sm:$0xf]
    %v2193 = vld [vmem:[#allocation7 + $0x210] sm:$0xf]
    %v2194 = vld [vmem:[#allocation7 + $0x214] sm:$0xf]
    %v2195 = vld [vmem:[#allocation7 + $0x218] sm:$0xf]
    %v2196 = vld [vmem:[#allocation7 + $0x21c] sm:$0xf]
    %v2197 = vld [vmem:[#allocation7 + $0x220] sm:$0xf]
    %v2198 = vld [vmem:[#allocation7 + $0x224] sm:$0xf]
    %v2199 = vld [vmem:[#allocation7 + $0x228] sm:$0xf]
    %v2200 = vld [vmem:[#allocation7 + $0x22c] sm:$0xf]
    %v2201 = vld [vmem:[#allocation7 + $0x230] sm:$0xf]
    %v2202 = vld [vmem:[#allocation7 + $0x234] sm:$0xf]
    %v2203 = vld [vmem:[#allocation7 + $0x238] sm:$0xf]
    %v2204 = vld [vmem:[#allocation7 + $0x23c] sm:$0xf]
    %v2349 = vunpack.c.l.b16 %v2061
    %v2350 = vunpack.c.l.b16 %v2062
    %v2351 = vunpack.c.l.b16 %v2063
    %v2352 = vunpack.c.l.b16 %v2064
    %v2353 = vunpack.c.l.b16 %v2065
    %v2354 = vunpack.c.l.b16 %v2066
    %v2355 = vunpack.c.l.b16 %v2067
    %v2356 = vunpack.c.l.b16 %v2068
    %v2357 = vunpack.c.l.b16 %v2069
    %v2358 = vunpack.c.l.b16 %v2070
    %v2359 = vunpack.c.l.b16 %v2071
    %v2360 = vunpack.c.l.b16 %v2072
    %v2361 = vunpack.c.l.b16 %v2073
    %v2362 = vunpack.c.l.b16 %v2074
    %v2363 = vunpack.c.l.b16 %v2075
    %v2364 = vunpack.c.l.b16 %v2076
    %v2365 = vunpack.c.l.b16 %v2077
    %v2366 = vunpack.c.l.b16 %v2078
    %v2367 = vunpack.c.l.b16 %v2079
    %v2368 = vunpack.c.l.b16 %v2080
    %v2369 = vunpack.c.l.b16 %v2081
    %v2370 = vunpack.c.l.b16 %v2082
    %v2371 = vunpack.c.l.b16 %v2083
    %v2372 = vunpack.c.l.b16 %v2084
    %v2373 = vunpack.c.l.b16 %v2085
    %v2374 = vunpack.c.l.b16 %v2086
    %v2375 = vunpack.c.l.b16 %v2087
    %v2376 = vunpack.c.l.b16 %v2088
    %v2377 = vunpack.c.l.b16 %v2089
    %v2378 = vunpack.c.l.b16 %v2090
    %v2379 = vunpack.c.l.b16 %v2091
    %v2380 = vunpack.c.l.b16 %v2092
    %v2381 = vunpack.c.l.b16 %v2093
    %v2382 = vunpack.c.l.b16 %v2094
    %v2383 = vunpack.c.l.b16 %v2095
    %v2384 = vunpack.c.l.b16 %v2096
    %v2385 = vunpack.c.l.b16 %v2097
    %v2386 = vunpack.c.l.b16 %v2098
    %v2387 = vunpack.c.l.b16 %v2099
    %v2388 = vunpack.c.l.b16 %v2100
    %v2389 = vunpack.c.l.b16 %v2101
    %v2390 = vunpack.c.l.b16 %v2102
    %v2391 = vunpack.c.l.b16 %v2103
    %v2392 = vunpack.c.l.b16 %v2104
    %v2393 = vunpack.c.l.b16 %v2105
    %v2394 = vunpack.c.l.b16 %v2106
    %v2395 = vunpack.c.l.b16 %v2107
    %v2396 = vunpack.c.l.b16 %v2108
    %v2397 = vunpack.c.l.b16 %v2109
    %v2398 = vunpack.c.l.b16 %v2110
    %v2399 = vunpack.c.l.b16 %v2111
    %v2400 = vunpack.c.l.b16 %v2112
    %v2401 = vunpack.c.l.b16 %v2113
    %v2402 = vunpack.c.l.b16 %v2114
    %v2403 = vunpack.c.l.b16 %v2115
    %v2404 = vunpack.c.l.b16 %v2116
    %v2405 = vunpack.c.l.b16 %v2117
    %v2406 = vunpack.c.l.b16 %v2118
    %v2407 = vunpack.c.l.b16 %v2119
    %v2408 = vunpack.c.l.b16 %v2120
    %v2409 = vunpack.c.l.b16 %v2121
    %v2410 = vunpack.c.l.b16 %v2122
    %v2411 = vunpack.c.l.b16 %v2123
    %v2412 = vunpack.c.l.b16 %v2124
    %v2413 = vunpack.c.l.b16 %v2125
    %v2414 = vunpack.c.l.b16 %v2126
    %v2415 = vunpack.c.l.b16 %v2127
    %v2416 = vunpack.c.l.b16 %v2128
    %v2417 = vunpack.c.l.b16 %v2129
    %v2418 = vunpack.c.l.b16 %v2130
    %v2419 = vunpack.c.l.b16 %v2131
    %v2420 = vunpack.c.l.b16 %v2132
    %v2421 = vunpack.c.l.b16 %v2133
    %v2422 = vunpack.c.l.b16 %v2134
    %v2423 = vunpack.c.l.b16 %v2135
    %v2424 = vunpack.c.l.b16 %v2136
    %v2425 = vunpack.c.l.b16 %v2137
    %v2426 = vunpack.c.l.b16 %v2138
    %v2427 = vunpack.c.l.b16 %v2139
    %v2428 = vunpack.c.l.b16 %v2140
    %v2429 = vunpack.c.l.b16 %v2141
    %v2430 = vunpack.c.l.b16 %v2142
    %v2431 = vunpack.c.l.b16 %v2143
    %v2432 = vunpack.c.l.b16 %v2144
    %v2433 = vunpack.c.l.b16 %v2145
    %v2434 = vunpack.c.l.b16 %v2146
    %v2435 = vunpack.c.l.b16 %v2147
    %v2436 = vunpack.c.l.b16 %v2148
    %v2437 = vunpack.c.l.b16 %v2149
    %v2438 = vunpack.c.l.b16 %v2150
    %v2439 = vunpack.c.l.b16 %v2151
    %v2440 = vunpack.c.l.b16 %v2152
    %v2441 = vunpack.c.l.b16 %v2153
    %v2442 = vunpack.c.l.b16 %v2154
    %v2443 = vunpack.c.l.b16 %v2155
    %v2444 = vunpack.c.l.b16 %v2156
    %v2445 = vunpack.c.l.b16 %v2157
    %v2446 = vunpack.c.l.b16 %v2158
    %v2447 = vunpack.c.l.b16 %v2159
    %v2448 = vunpack.c.l.b16 %v2160
    %v2449 = vunpack.c.l.b16 %v2161
    %v2450 = vunpack.c.l.b16 %v2162
    %v2451 = vunpack.c.l.b16 %v2163
    %v2452 = vunpack.c.l.b16 %v2164
    %v2453 = vunpack.c.l.b16 %v2165
    %v2454 = vunpack.c.l.b16 %v2166
    %v2455 = vunpack.c.l.b16 %v2167
    %v2456 = vunpack.c.l.b16 %v2168
    %v2457 = vunpack.c.l.b16 %v2169
    %v2458 = vunpack.c.l.b16 %v2170
    %v2459 = vunpack.c.l.b16 %v2171
    %v2460 = vunpack.c.l.b16 %v2172
    %v2461 = vunpack.c.l.b16 %v2173
    %v2462 = vunpack.c.l.b16 %v2174
    %v2463 = vunpack.c.l.b16 %v2175
    %v2464 = vunpack.c.l.b16 %v2176
    %v2465 = vunpack.c.l.b16 %v2177
    %v2466 = vunpack.c.l.b16 %v2178
    %v2467 = vunpack.c.l.b16 %v2179
    %v2468 = vunpack.c.l.b16 %v2180
    %v2469 = vunpack.c.l.b16 %v2181
    %v2470 = vunpack.c.l.b16 %v2182
    %v2471 = vunpack.c.l.b16 %v2183
    %v2472 = vunpack.c.l.b16 %v2184
    %v2473 = vunpack.c.l.b16 %v2185
    %v2474 = vunpack.c.l.b16 %v2186
    %v2475 = vunpack.c.l.b16 %v2187
    %v2476 = vunpack.c.l.b16 %v2188
    %v2477 = vunpack.c.l.b16 %v2189
    %v2478 = vunpack.c.l.b16 %v2190
    %v2479 = vunpack.c.l.b16 %v2191
    %v2480 = vunpack.c.l.b16 %v2192
    %v2481 = vunpack.c.l.b16 %v2193
    %v2482 = vunpack.c.l.b16 %v2194
    %v2483 = vunpack.c.l.b16 %v2195
    %v2484 = vunpack.c.l.b16 %v2196
    %v2485 = vunpack.c.l.b16 %v2197
    %v2486 = vunpack.c.l.b16 %v2198
    %v2487 = vunpack.c.l.b16 %v2199
    %v2488 = vunpack.c.l.b16 %v2200
    %v2489 = vunpack.c.l.b16 %v2201
    %v2490 = vunpack.c.l.b16 %v2202
    %v2491 = vunpack.c.l.b16 %v2203
    %v2492 = vunpack.c.l.b16 %v2204
    %v2493 = vpack.c.b16 %v2350, %v2349
    %v2494 = vpack.c.b16 %v2352, %v2351
    %v2495 = vpack.c.b16 %v2354, %v2353
    %v2496 = vpack.c.b16 %v2356, %v2355
    %v2497 = vpack.c.b16 %v2358, %v2357
    %v2498 = vpack.c.b16 %v2360, %v2359
    %v2499 = vpack.c.b16 %v2362, %v2361
    %v2500 = vpack.c.b16 %v2364, %v2363
    %v2501 = vpack.c.b16 %v2366, %v2365
    %v2502 = vpack.c.b16 %v2368, %v2367
    %v2503 = vpack.c.b16 %v2370, %v2369
    %v2504 = vpack.c.b16 %v2372, %v2371
    %v2505 = vpack.c.b16 %v2374, %v2373
    %v2506 = vpack.c.b16 %v2376, %v2375
    %v2507 = vpack.c.b16 %v2378, %v2377
    %v2508 = vpack.c.b16 %v2380, %v2379
    %v2509 = vpack.c.b16 %v2382, %v2381
    %v2510 = vpack.c.b16 %v2384, %v2383
    %v2511 = vpack.c.b16 %v2386, %v2385
    %v2512 = vpack.c.b16 %v2388, %v2387
    %v2513 = vpack.c.b16 %v2390, %v2389
    %v2514 = vpack.c.b16 %v2392, %v2391
    %v2515 = vpack.c.b16 %v2394, %v2393
    %v2516 = vpack.c.b16 %v2396, %v2395
    %v2517 = vpack.c.b16 %v2398, %v2397
    %v2518 = vpack.c.b16 %v2400, %v2399
    %v2519 = vpack.c.b16 %v2402, %v2401
    %v2520 = vpack.c.b16 %v2404, %v2403
    %v2521 = vpack.c.b16 %v2406, %v2405
    %v2522 = vpack.c.b16 %v2408, %v2407
    %v2523 = vpack.c.b16 %v2410, %v2409
    %v2524 = vpack.c.b16 %v2412, %v2411
    %v2525 = vpack.c.b16 %v2414, %v2413
    %v2526 = vpack.c.b16 %v2416, %v2415
    %v2527 = vpack.c.b16 %v2418, %v2417
    %v2528 = vpack.c.b16 %v2420, %v2419
    %v2529 = vpack.c.b16 %v2422, %v2421
    %v2530 = vpack.c.b16 %v2424, %v2423
    %v2531 = vpack.c.b16 %v2426, %v2425
    %v2532 = vpack.c.b16 %v2428, %v2427
    %v2533 = vpack.c.b16 %v2430, %v2429
    %v2534 = vpack.c.b16 %v2432, %v2431
    %v2535 = vpack.c.b16 %v2434, %v2433
    %v2536 = vpack.c.b16 %v2436, %v2435
    %v2537 = vpack.c.b16 %v2438, %v2437
    %v2538 = vpack.c.b16 %v2440, %v2439
    %v2539 = vpack.c.b16 %v2442, %v2441
    %v2540 = vpack.c.b16 %v2444, %v2443
    %v2541 = vpack.c.b16 %v2446, %v2445
    %v2542 = vpack.c.b16 %v2448, %v2447
    %v2543 = vpack.c.b16 %v2450, %v2449
    %v2544 = vpack.c.b16 %v2452, %v2451
    %v2545 = vpack.c.b16 %v2454, %v2453
    %v2546 = vpack.c.b16 %v2456, %v2455
    %v2547 = vpack.c.b16 %v2458, %v2457
    %v2548 = vpack.c.b16 %v2460, %v2459
    %v2549 = vpack.c.b16 %v2462, %v2461
    %v2550 = vpack.c.b16 %v2464, %v2463
    %v2551 = vpack.c.b16 %v2466, %v2465
    %v2552 = vpack.c.b16 %v2468, %v2467
    %v2553 = vpack.c.b16 %v2470, %v2469
    %v2554 = vpack.c.b16 %v2472, %v2471
    %v2555 = vpack.c.b16 %v2474, %v2473
    %v2556 = vpack.c.b16 %v2476, %v2475
    %v2557 = vpack.c.b16 %v2478, %v2477
    %v2558 = vpack.c.b16 %v2480, %v2479
    %v2559 = vpack.c.b16 %v2482, %v2481
    %v2560 = vpack.c.b16 %v2484, %v2483
    %v2561 = vpack.c.b16 %v2486, %v2485
    %v2562 = vpack.c.b16 %v2488, %v2487
    %v2563 = vpack.c.b16 %v2490, %v2489
    %v2564 = vpack.c.b16 %v2492, %v2491
    %2637 = vmatprep.subr.bf16.mxu0 0
    %2638 = vmatpush1.bf16.msra.mxu0 %v2493
    %2639 = vmatprep.subr.bf16.mxu0 0
    %2640 = vmatpush1.bf16.msra.mxu0 %v2494
    %2641 = vmatprep.subr.bf16.mxu0 0
    %2642 = vmatpush1.bf16.msra.mxu0 %v2495
    %2643 = vmatprep.subr.bf16.mxu0 0
    %2644 = vmatpush1.bf16.msra.mxu0 %v2496
    %2645 = vmatprep.subr.bf16.mxu0 0
    %2646 = vmatpush1.bf16.msra.mxu0 %v2497
    %2647 = vmatprep.subr.bf16.mxu0 0
    %2648 = vmatpush1.bf16.msra.mxu0 %v2498
    %2649 = vmatprep.subr.bf16.mxu0 0
    %2650 = vmatpush1.bf16.msra.mxu0 %v2499
    %2651 = vmatprep.subr.bf16.mxu0 0
    %2652 = vmatpush1.bf16.msra.mxu0 %v2500
    %2653 = vmatprep.subr.bf16.mxu0 0
    %2654 = vmatpush1.bf16.msra.mxu0 %v2501
    %2655 = vmatprep.subr.bf16.mxu0 0
    %2656 = vmatpush1.bf16.msra.mxu0 %v2502
    %2657 = vmatprep.subr.bf16.mxu0 0
    %2658 = vmatpush1.bf16.msra.mxu0 %v2503
    %2659 = vmatprep.subr.bf16.mxu0 0
    %2660 = vmatpush1.bf16.msra.mxu0 %v2504
    %2661 = vmatprep.subr.bf16.mxu0 0
    %2662 = vmatpush1.bf16.msra.mxu0 %v2505
    %2663 = vmatprep.subr.bf16.mxu0 0
    %2664 = vmatpush1.bf16.msra.mxu0 %v2506
    %2665 = vmatprep.subr.bf16.mxu0 0
    %2666 = vmatpush1.bf16.msra.mxu0 %v2507
    %2667 = vmatprep.subr.bf16.mxu0 0
    %2668 = vmatpush1.bf16.msra.mxu0 %v2508
    %2669 = vmatprep.mubr.bf16.mxu0 %v1990
    %2670 = vmatmul.mubr.bf16.gmra.mrb[0].mxu0 %v1989
    %v2671 = vpop.f32.mrb[0].mxu0
    %v2672 = vadd.f32 0.0, %v2671
    %v2673 = vpop.f32.mrb[0].mxu0
    %v2674 = vpop.f32.mrb[0].mxu0
    %v2675 = vadd.f32 0.0, %v2674
    %v2676 = vpop.f32.mrb[0].mxu0
    %2677 = vmatprep.mubr.bf16.mxu0 %v1999
    %2678 = vmatmul.mubr.bf16.gmra.mrb[0].mxu0 %v1998
    %v2679 = vpop.f32.mrb[0].mxu0
    %v2680 = vadd.f32 0.0, %v2679
    %v2681 = vpop.f32.mrb[0].mxu0
    %v2682 = vpop.f32.mrb[0].mxu0
    %v2683 = vadd.f32 0.0, %v2682
    %v2684 = vpop.f32.mrb[0].mxu0
    %2685 = vmatprep.mubr.bf16.mxu0 %v2008
    %2686 = vmatmul.mubr.bf16.gmra.mrb[0].mxu0 %v2007
    %v2687 = vpop.f32.mrb[0].mxu0
    %v2688 = vadd.f32 0.0, %v2687
    %v2689 = vpop.f32.mrb[0].mxu0
    %v2690 = vpop.f32.mrb[0].mxu0
    %v2691 = vadd.f32 0.0, %v2690
    %v2692 = vpop.f32.mrb[0].mxu0
    %2693 = vmatprep.mubr.bf16.mxu0 %v2017
    %2694 = vmatmul.mubr.bf16.gmra.mrb[0].mxu0 %v2016
    %v2695 = vpop.f32.mrb[0].mxu0
    %v2696 = vadd.f32 0.0, %v2695
    %v2697 = vpop.f32.mrb[0].mxu0
    %v2698 = vpop.f32.mrb[0].mxu0
    %v2699 = vadd.f32 0.0, %v2698
    %v2700 = vpop.f32.mrb[0].mxu0
    %2701 = vmatprep.mubr.bf16.mxu0 %v2026
    %2702 = vmatmul.mubr.bf16.gmra.mrb[0].mxu0 %v2025
    %v2703 = vpop.f32.mrb[0].mxu0
    %v2704 = vadd.f32 0.0, %v2703
    %v2705 = vpop.f32.mrb[0].mxu0
    %v2706 = vpop.f32.mrb[0].mxu0
    %v2707 = vadd.f32 0.0, %v2706
    %v2708 = vpop.f32.mrb[0].mxu0
    %2709 = vmatprep.mubr.bf16.mxu0 %v2035
    %2710 = vmatmul.mubr.bf16.gmra.mrb[0].mxu0 %v2034
    %v2711 = vpop.f32.mrb[0].mxu0
    %v2712 = vadd.f32 0.0, %v2711
    %v2713 = vpop.f32.mrb[0].mxu0
    %v2714 = vpop.f32.mrb[0].mxu0
    %v2715 = vadd.f32 0.0, %v2714
    %v2716 = vpop.f32.mrb[0].mxu0
    %2717 = vmatprep.mubr.bf16.mxu0 %v2044
    %2718 = vmatmul.mubr.bf16.gmra.mrb[0].mxu0 %v2043
    %v2719 = vpop.f32.mrb[0].mxu0
    %v2720 = vadd.f32 0.0, %v2719
    %v2721 = vpop.f32.mrb[0].mxu0
    %v2722 = vpop.f32.mrb[0].mxu0
    %v2723 = vadd.f32 0.0, %v2722
    %v2724 = vpop.f32.mrb[0].mxu0
    %2725 = vmatprep.mubr.bf16.mxu0 %v2053
    %2726 = vmatmul.mubr.bf16.gmra.mrb[0].mxu0 %v2052
    %v2727 = vpop.f32.mrb[0].mxu0
    %v2728 = vadd.f32 0.0, %v2727
    %v2729 = vpop.f32.mrb[0].mxu0
    %v2730 = vpop.f32.mrb[0].mxu0
    %v2731 = vadd.f32 0.0, %v2730
    %v2732 = vpop.f32.mrb[0].mxu0
    %2733 = vdwg.mxu0
    %2734 = vmatprep.subr.bf16.mxu0 0
    %2735 = vmatpush1.bf16.msra.mxu0 %v2509
    %2736 = vmatprep.subr.bf16.mxu0 0
    %2737 = vmatpush1.bf16.msra.mxu0 %v2510
    %2738 = vmatprep.subr.bf16.mxu0 0
    %2739 = vmatpush1.bf16.msra.mxu0 %v2511
    %2740 = vmatprep.subr.bf16.mxu0 0
    %2741 = vmatpush1.bf16.msra.mxu0 %v2512
    %2742 = vmatprep.subr.bf16.mxu0 0
    %2743 = vmatpush1.bf16.msra.mxu0 %v2513
    %2744 = vmatprep.subr.bf16.mxu0 0
    %2745 = vmatpush1.bf16.msra.mxu0 %v2514
    %2746 = vmatprep.subr.bf16.mxu0 0
    %2747 = vmatpush1.bf16.msra.mxu0 %v2515
    %2748 = vmatprep.subr.bf16.mxu0 0
    %2749 = vmatpush1.bf16.msra.mxu0 %v2516
    %2750 = vmatprep.subr.bf16.mxu0 0
    %2751 = vmatpush1.bf16.msra.mxu0 %v2517
    %2752 = vmatprep.subr.bf16.mxu0 0
    %2753 = vmatpush1.bf16.msra.mxu0 %v2518
    %2754 = vmatprep.subr.bf16.mxu0 0
    %2755 = vmatpush1.bf16.msra.mxu0 %v2519
    %2756 = vmatprep.subr.bf16.mxu0 0
    %2757 = vmatpush1.bf16.msra.mxu0 %v2520
    %2758 = vmatprep.subr.bf16.mxu0 0
    %2759 = vmatpush1.bf16.msra.mxu0 %v2521
    %2760 = vmatprep.subr.bf16.mxu0 0
    %2761 = vmatpush1.bf16.msra.mxu0 %v2522
    %2762 = vmatprep.subr.bf16.mxu0 0
    %2763 = vmatpush1.bf16.msra.mxu0 %v2523
    %2764 = vmatprep.subr.bf16.mxu0 0
    %2765 = vmatpush1.bf16.msra.mxu0 %v2524
    %2766 = vmatprep.mubr.bf16.mxu0 %v1992
    %2767 = vmatmul.mubr.bf16.gmra.mrb[0].mxu0 %v1991
    %v2768 = vpop.f32.mrb[0].mxu0
    %v2769 = vadd.f32 %v2672, %v2768
    %v2770 = vpop.f32.mrb[0].mxu0
    %v2771 = vpop.f32.mrb[0].mxu0
    %v2772 = vadd.f32 %v2675, %v2771
    %v2773 = vpop.f32.mrb[0].mxu0
    %2774 = vmatprep.mubr.bf16.mxu0 %v2001
    %2775 = vmatmul.mubr.bf16.gmra.mrb[0].mxu0 %v2000
    %v2776 = vpop.f32.mrb[0].mxu0
    %v2777 = vadd.f32 %v2680, %v2776
    %v2778 = vpop.f32.mrb[0].mxu0
    %v2779 = vpop.f32.mrb[0].mxu0
    %v2780 = vadd.f32 %v2683, %v2779
    %v2781 = vpop.f32.mrb[0].mxu0
    %2782 = vmatprep.mubr.bf16.mxu0 %v2010
    %2783 = vmatmul.mubr.bf16.gmra.mrb[0].mxu0 %v2009
    %v2784 = vpop.f32.mrb[0].mxu0
    %v2785 = vadd.f32 %v2688, %v2784
    %v2786 = vpop.f32.mrb[0].mxu0
    %v2787 = vpop.f32.mrb[0].mxu0
    %v2788 = vadd.f32 %v2691, %v2787
    %v2789 = vpop.f32.mrb[0].mxu0
    %2790 = vmatprep.mubr.bf16.mxu0 %v2019
    %2791 = vmatmul.mubr.bf16.gmra.mrb[0].mxu0 %v2018
    %v2792 = vpop.f32.mrb[0].mxu0
    %v2793 = vadd.f32 %v2696, %v2792
    %v2794 = vpop.f32.mrb[0].mxu0
    %v2795 = vpop.f32.mrb[0].mxu0
    %v2796 = vadd.f32 %v2699, %v2795
    %v2797 = vpop.f32.mrb[0].mxu0
    %2798 = vmatprep.mubr.bf16.mxu0 %v2028
    %2799 = vmatmul.mubr.bf16.gmra.mrb[0].mxu0 %v2027
    %v2800 = vpop.f32.mrb[0].mxu0
    %v2801 = vadd.f32 %v2704, %v2800
    %v2802 = vpop.f32.mrb[0].mxu0
    %v2803 = vpop.f32.mrb[0].mxu0
    %v2804 = vadd.f32 %v2707, %v2803
    %v2805 = vpop.f32.mrb[0].mxu0
    %2806 = vmatprep.mubr.bf16.mxu0 %v2037
    %2807 = vmatmul.mubr.bf16.gmra.mrb[0].mxu0 %v2036
    %v2808 = vpop.f32.mrb[0].mxu0
    %v2809 = vadd.f32 %v2712, %v2808
    %v2810 = vpop.f32.mrb[0].mxu0
    %v2811 = vpop.f32.mrb[0].mxu0
    %v2812 = vadd.f32 %v2715, %v2811
    %v2813 = vpop.f32.mrb[0].mxu0
    %2814 = vmatprep.mubr.bf16.mxu0 %v2046
    %2815 = vmatmul.mubr.bf16.gmra.mrb[0].mxu0 %v2045
    %v2816 = vpop.f32.mrb[0].mxu0
    %v2817 = vadd.f32 %v2720, %v2816
    %v2818 = vpop.f32.mrb[0].mxu0
    %v2819 = vpop.f32.mrb[0].mxu0
    %v2820 = vadd.f32 %v2723, %v2819
    %v2821 = vpop.f32.mrb[0].mxu0
    %2822 = vmatprep.mubr.bf16.mxu0 %v2055
    %2823 = vmatmul.mubr.bf16.gmra.mrb[0].mxu0 %v2054
    %v2824 = vpop.f32.mrb[0].mxu0
    %v2825 = vadd.f32 %v2728, %v2824
    %v2826 = vpop.f32.mrb[0].mxu0
    %v2827 = vpop.f32.mrb[0].mxu0
    %v2828 = vadd.f32 %v2731, %v2827
    %v2829 = vpop.f32.mrb[0].mxu0
    %2830 = vdwg.mxu0
    %2831 = vmatprep.subr.bf16.mxu0 0
    %2832 = vmatpush1.bf16.msra.mxu0 %v2525
    %2833 = vmatprep.subr.bf16.mxu0 0
    %2834 = vmatpush1.bf16.msra.mxu0 %v2526
    %2835 = vmatprep.subr.bf16.mxu0 0
    %2836 = vmatpush1.bf16.msra.mxu0 %v2527
    %2837 = vmatprep.subr.bf16.mxu0 0
    %2838 = vmatpush1.bf16.msra.mxu0 %v2528
    %2839 = vmatprep.subr.bf16.mxu0 0
    %2840 = vmatpush1.bf16.msra.mxu0 %v2529
    %2841 = vmatprep.subr.bf16.mxu0 0
    %2842 = vmatpush1.bf16.msra.mxu0 %v2530
    %2843 = vmatprep.subr.bf16.mxu0 0
    %2844 = vmatpush1.bf16.msra.mxu0 %v2531
    %2845 = vmatprep.subr.bf16.mxu0 0
    %2846 = vmatpush1.bf16.msra.mxu0 %v2532
    %2847 = vmatprep.subr.bf16.mxu0 0
    %2848 = vmatpush1.bf16.msra.mxu0 %v2533
    %2849 = vmatprep.subr.bf16.mxu0 0
    %2850 = vmatpush1.bf16.msra.mxu0 %v2534
    %2851 = vmatprep.subr.bf16.mxu0 0
    %2852 = vmatpush1.bf16.msra.mxu0 %v2535
    %2853 = vmatprep.subr.bf16.mxu0 0
    %2854 = vmatpush1.bf16.msra.mxu0 %v2536
    %2855 = vmatprep.subr.bf16.mxu0 0
    %2856 = vmatpush1.bf16.msra.mxu0 %v2537
    %2857 = vmatprep.subr.bf16.mxu0 0
    %2858 = vmatpush1.bf16.msra.mxu0 %v2538
    %2859 = vmatprep.subr.bf16.mxu0 0
    %2860 = vmatpush1.bf16.msra.mxu0 %v2539
    %2861 = vmatprep.subr.bf16.mxu0 0
    %2862 = vmatpush1.bf16.msra.mxu0 %v2540
    %2863 = vmatprep.mubr.bf16.mxu0 %v1994
    %2864 = vmatmul.mubr.bf16.gmra.mrb[0].mxu0 %v1993
    %v2865 = vpop.f32.mrb[0].mxu0
    %v2866 = vadd.f32 %v2769, %v2865
    %v2867 = vpop.f32.mrb[0].mxu0
    %v2868 = vpop.f32.mrb[0].mxu0
    %v2869 = vadd.f32 %v2772, %v2868
    %v2870 = vpop.f32.mrb[0].mxu0
    %2871 = vmatprep.mubr.bf16.mxu0 %v2003
    %2872 = vmatmul.mubr.bf16.gmra.mrb[0].mxu0 %v2002
    %v2873 = vpop.f32.mrb[0].mxu0
    %v2874 = vadd.f32 %v2777, %v2873
    %v2875 = vpop.f32.mrb[0].mxu0
    %v2876 = vpop.f32.mrb[0].mxu0
    %v2877 = vadd.f32 %v2780, %v2876
    %v2878 = vpop.f32.mrb[0].mxu0
    %2879 = vmatprep.mubr.bf16.mxu0 %v2012
    %2880 = vmatmul.mubr.bf16.gmra.mrb[0].mxu0 %v2011
    %v2881 = vpop.f32.mrb[0].mxu0
    %v2882 = vadd.f32 %v2785, %v2881
    %v2883 = vpop.f32.mrb[0].mxu0
    %v2884 = vpop.f32.mrb[0].mxu0
    %v2885 = vadd.f32 %v2788, %v2884
    %v2886 = vpop.f32.mrb[0].mxu0
    %2887 = vmatprep.mubr.bf16.mxu0 %v2021
    %2888 = vmatmul.mubr.bf16.gmra.mrb[0].mxu0 %v2020
    %v2889 = vpop.f32.mrb[0].mxu0
    %v2890 = vadd.f32 %v2793, %v2889
    %v2891 = vpop.f32.mrb[0].mxu0
    %v2892 = vpop.f32.mrb[0].mxu0
    %v2893 = vadd.f32 %v2796, %v2892
    %v2894 = vpop.f32.mrb[0].mxu0
    %2895 = vmatprep.mubr.bf16.mxu0 %v2030
    %2896 = vmatmul.mubr.bf16.gmra.mrb[0].mxu0 %v2029
    %v2897 = vpop.f32.mrb[0].mxu0
    %v2898 = vadd.f32 %v2801, %v2897
    %v2899 = vpop.f32.mrb[0].mxu0
    %v2900 = vpop.f32.mrb[0].mxu0
    %v2901 = vadd.f32 %v2804, %v2900
    %v2902 = vpop.f32.mrb[0].mxu0
    %2903 = vmatprep.mubr.bf16.mxu0 %v2039
    %2904 = vmatmul.mubr.bf16.gmra.mrb[0].mxu0 %v2038
    %v2905 = vpop.f32.mrb[0].mxu0
    %v2906 = vadd.f32 %v2809, %v2905
    %v2907 = vpop.f32.mrb[0].mxu0
    %v2908 = vpop.f32.mrb[0].mxu0
    %v2909 = vadd.f32 %v2812, %v2908
    %v2910 = vpop.f32.mrb[0].mxu0
    %2911 = vmatprep.mubr.bf16.mxu0 %v2048
    %2912 = vmatmul.mubr.bf16.gmra.mrb[0].mxu0 %v2047
    %v2913 = vpop.f32.mrb[0].mxu0
    %v2914 = vadd.f32 %v2817, %v2913
    %v2915 = vpop.f32.mrb[0].mxu0
    %v2916 = vpop.f32.mrb[0].mxu0
    %v2917 = vadd.f32 %v2820, %v2916
    %v2918 = vpop.f32.mrb[0].mxu0
    %2919 = vmatprep.mubr.bf16.mxu0 %v2057
    %2920 = vmatmul.mubr.bf16.gmra.mrb[0].mxu0 %v2056
    %v2921 = vpop.f32.mrb[0].mxu0
    %v2922 = vadd.f32 %v2825, %v2921
    %v2923 = vpop.f32.mrb[0].mxu0
    %v2924 = vpop.f32.mrb[0].mxu0
    %v2925 = vadd.f32 %v2828, %v2924
    %v2926 = vpop.f32.mrb[0].mxu0
    %2927 = vdwg.mxu0
    %2928 = vmatprep.subr.bf16.mxu0 0
    %2929 = vmatpush1.bf16.msra.mxu0 %v2541
    %2930 = vmatprep.subr.bf16.mxu0 0
    %2931 = vmatpush1.bf16.msra.mxu0 %v2542
    %2932 = vmatprep.subr.bf16.mxu0 0
    %2933 = vmatpush1.bf16.msra.mxu0 %v2543
    %2934 = vmatprep.subr.bf16.mxu0 0
    %2935 = vmatpush1.bf16.msra.mxu0 %v2544
    %2936 = vmatprep.subr.bf16.mxu0 0
    %2937 = vmatpush1.bf16.msra.mxu0 %v2545
    %2938 = vmatprep.subr.bf16.mxu0 0
    %2939 = vmatpush1.bf16.msra.mxu0 %v2546
    %2940 = vmatprep.subr.bf16.mxu0 0
    %2941 = vmatpush1.bf16.msra.mxu0 %v2547
    %2942 = vmatprep.subr.bf16.mxu0 0
    %2943 = vmatpush1.bf16.msra.mxu0 %v2548
    %2944 = vmatprep.subr.bf16.mxu0 0
    %2945 = vmatpush1.bf16.msra.mxu0 %v2549
    %2946 = vmatprep.subr.bf16.mxu0 0
    %2947 = vmatpush1.bf16.msra.mxu0 %v2550
    %2948 = vmatprep.subr.bf16.mxu0 0
    %2949 = vmatpush1.bf16.msra.mxu0 %v2551
    %2950 = vmatprep.subr.bf16.mxu0 0
    %2951 = vmatpush1.bf16.msra.mxu0 %v2552
    %2952 = vmatprep.subr.bf16.mxu0 0
    %2953 = vmatpush1.bf16.msra.mxu0 %v2553
    %2954 = vmatprep.subr.bf16.mxu0 0
    %2955 = vmatpush1.bf16.msra.mxu0 %v2554
    %2956 = vmatprep.subr.bf16.mxu0 0
    %2957 = vmatpush1.bf16.msra.mxu0 %v2555
    %2958 = vmatprep.subr.bf16.mxu0 0
    %2959 = vmatpush1.bf16.msra.mxu0 %v2556
    %2960 = vmatprep.mubr.bf16.mxu0 %v1996
    %2961 = vmatmul.mubr.bf16.gmra.mrb[0].mxu0 %v1995
    %v2962 = vpop.f32.mrb[0].mxu0
    %v2963 = vadd.f32 %v2866, %v2962
    %v2964 = vpop.f32.mrb[0].mxu0
    %v2965 = vpop.f32.mrb[0].mxu0
    %v2966 = vadd.f32 %v2869, %v2965
    %v2967 = vpop.f32.mrb[0].mxu0
    %2968 = vmatprep.mubr.bf16.mxu0 %v2005
    %2969 = vmatmul.mubr.bf16.gmra.mrb[0].mxu0 %v2004
    %v2970 = vpop.f32.mrb[0].mxu0
    %v2971 = vadd.f32 %v2874, %v2970
    %v2972 = vpop.f32.mrb[0].mxu0
    %v2973 = vpop.f32.mrb[0].mxu0
    %v2974 = vadd.f32 %v2877, %v2973
    %v2975 = vpop.f32.mrb[0].mxu0
    %2976 = vmatprep.mubr.bf16.mxu0 %v2014
    %2977 = vmatmul.mubr.bf16.gmra.mrb[0].mxu0 %v2013
    %v2978 = vpop.f32.mrb[0].mxu0
    %v2979 = vadd.f32 %v2882, %v2978
    %v2980 = vpop.f32.mrb[0].mxu0
    %v2981 = vpop.f32.mrb[0].mxu0
    %v2982 = vadd.f32 %v2885, %v2981
    %v2983 = vpop.f32.mrb[0].mxu0
    %2984 = vmatprep.mubr.bf16.mxu0 %v2023
    %2985 = vmatmul.mubr.bf16.gmra.mrb[0].mxu0 %v2022
    %v2986 = vpop.f32.mrb[0].mxu0
    %v2987 = vadd.f32 %v2890, %v2986
    %v2988 = vpop.f32.mrb[0].mxu0
    %v2989 = vpop.f32.mrb[0].mxu0
    %v2990 = vadd.f32 %v2893, %v2989
    %v2991 = vpop.f32.mrb[0].mxu0
    %2992 = vmatprep.mubr.bf16.mxu0 %v2032
    %2993 = vmatmul.mubr.bf16.gmra.mrb[0].mxu0 %v2031
    %v2994 = vpop.f32.mrb[0].mxu0
    %v2995 = vadd.f32 %v2898, %v2994
    %v2996 = vpop.f32.mrb[0].mxu0
    %v2997 = vpop.f32.mrb[0].mxu0
    %v2998 = vadd.f32 %v2901, %v2997
    %v2999 = vpop.f32.mrb[0].mxu0
    %3000 = vmatprep.mubr.bf16.mxu0 %v2041
    %3001 = vmatmul.mubr.bf16.gmra.mrb[0].mxu0 %v2040
    %v3002 = vpop.f32.mrb[0].mxu0
    %v3003 = vadd.f32 %v2906, %v3002
    %v3004 = vpop.f32.mrb[0].mxu0
    %v3005 = vpop.f32.mrb[0].mxu0
    %v3006 = vadd.f32 %v2909, %v3005
    %v3007 = vpop.f32.mrb[0].mxu0
    %3008 = vmatprep.mubr.bf16.mxu0 %v2050
    %3009 = vmatmul.mubr.bf16.gmra.mrb[0].mxu0 %v2049
    %v3010 = vpop.f32.mrb[0].mxu0
    %v3011 = vadd.f32 %v2914, %v3010
    %v3012 = vpop.f32.mrb[0].mxu0
    %v3013 = vpop.f32.mrb[0].mxu0
    %v3014 = vadd.f32 %v2917, %v3013
    %v3015 = vpop.f32.mrb[0].mxu0
    %3016 = vmatprep.mubr.bf16.mxu0 %v2059
    %3017 = vmatmul.mubr.bf16.gmra.mrb[0].mxu0 %v2058
    %v3018 = vpop.f32.mrb[0].mxu0
    %v3019 = vadd.f32 %v2922, %v3018
    %v3020 = vpop.f32.mrb[0].mxu0
    %v3021 = vpop.f32.mrb[0].mxu0
    %v3022 = vadd.f32 %v2925, %v3021
    %v3023 = vpop.f32.mrb[0].mxu0
    %3024 = vdwg.mxu0
    %3025 = vmatprep.subr.bf16.mxu0 0
    %3026 = vmatpush1.bf16.msra.mxu0 %v2557
    %3027 = vmatprep.subr.bf16.mxu0 0
    %3028 = vmatpush1.bf16.msra.mxu0 %v2558
    %3029 = vmatprep.subr.bf16.mxu0 0
    %3030 = vmatpush1.bf16.msra.mxu0 %v2559
    %3031 = vmatprep.subr.bf16.mxu0 0
    %3032 = vmatpush1.bf16.msra.mxu0 %v2560
    %3033 = vmatprep.subr.bf16.mxu0 0
    %3034 = vmatpush1.bf16.msra.mxu0 %v2561
    %3035 = vmatprep.subr.bf16.mxu0 0
    %3036 = vmatpush1.bf16.msra.mxu0 %v2562
    %3037 = vmatprep.subr.bf16.mxu0 0
    %3038 = vmatpush1.bf16.msra.mxu0 %v2563
    %3039 = vmatprep.subr.bf16.mxu0 0
    %3040 = vmatpush1.bf16.msra.mxu0 %v2564
    %3041 = vmatprep.subr.bf16.mxu0 0
    %3042 = vmatpush1.bf16.msra.mxu0 0
    %3043 = vmatprep.subr.bf16.mxu0 0
    %3044 = vmatpush1.bf16.msra.mxu0 0
    %3045 = vmatprep.subr.bf16.mxu0 0
    %3046 = vmatpush1.bf16.msra.mxu0 0
    %3047 = vmatprep.subr.bf16.mxu0 0
    %3048 = vmatpush1.bf16.msra.mxu0 0
    %3049 = vmatprep.subr.bf16.mxu0 0
    %3050 = vmatpush1.bf16.msra.mxu0 0
    %3051 = vmatprep.subr.bf16.mxu0 0
    %3052 = vmatpush1.bf16.msra.mxu0 0
    %3053 = vmatprep.subr.bf16.mxu0 0
    %3054 = vmatpush1.bf16.msra.mxu0 0
    %3055 = vmatprep.subr.bf16.mxu0 0
    %3056 = vmatpush1.bf16.msra.mxu0 0
    %3057 = vmatprep.mubr.bf16.mxu0 0
    %3058 = vmatmul.mubr.bf16.gmra.mrb[0].mxu0 %v1997
    %v3059 = vpop.f32.mrb[0].mxu0
    %v3060 = vadd.f32 %v2963, %v3059
    %v3061 = vpop.f32.mrb[0].mxu0
    %v3062 = vpop.f32.mrb[0].mxu0
    %v3063 = vadd.f32 %v2966, %v3062
    %v3064 = vpop.f32.mrb[0].mxu0
    %3065 = vmatprep.mubr.bf16.mxu0 0
    %3066 = vmatmul.mubr.bf16.gmra.mrb[0].mxu0 %v2006
    %v3067 = vpop.f32.mrb[0].mxu0
    %v3068 = vadd.f32 %v2971, %v3067
    %v3069 = vpop.f32.mrb[0].mxu0
    %v3070 = vpop.f32.mrb[0].mxu0
    %v3071 = vadd.f32 %v2974, %v3070
    %v3072 = vpop.f32.mrb[0].mxu0
    %3073 = vmatprep.mubr.bf16.mxu0 0
    %3074 = vmatmul.mubr.bf16.gmra.mrb[0].mxu0 %v2015
    %v3075 = vpop.f32.mrb[0].mxu0
    %v3076 = vadd.f32 %v2979, %v3075
    %v3077 = vpop.f32.mrb[0].mxu0
    %v3078 = vpop.f32.mrb[0].mxu0
    %v3079 = vadd.f32 %v2982, %v3078
    %v3080 = vpop.f32.mrb[0].mxu0
    %3081 = vmatprep.mubr.bf16.mxu0 0
    %3082 = vmatmul.mubr.bf16.gmra.mrb[0].mxu0 %v2024
    %v3083 = vpop.f32.mrb[0].mxu0
    %v3084 = vadd.f32 %v2987, %v3083
    %v3085 = vpop.f32.mrb[0].mxu0
    %v3086 = vpop.f32.mrb[0].mxu0
    %v3087 = vadd.f32 %v2990, %v3086
    %v3088 = vpop.f32.mrb[0].mxu0
    %3089 = vmatprep.mubr.bf16.mxu0 0
    %3090 = vmatmul.mubr.bf16.gmra.mrb[0].mxu0 %v2033
    %v3091 = vpop.f32.mrb[0].mxu0
    %v3092 = vadd.f32 %v2995, %v3091
    %v3093 = vpop.f32.mrb[0].mxu0
    %v3094 = vpop.f32.mrb[0].mxu0
    %v3095 = vadd.f32 %v2998, %v3094
    %v3096 = vpop.f32.mrb[0].mxu0
    %3097 = vmatprep.mubr.bf16.mxu0 0
    %3098 = vmatmul.mubr.bf16.gmra.mrb[0].mxu0 %v2042
    %v3099 = vpop.f32.mrb[0].mxu0
    %v3100 = vadd.f32 %v3003, %v3099
    %v3101 = vpop.f32.mrb[0].mxu0
    %v3102 = vpop.f32.mrb[0].mxu0
    %v3103 = vadd.f32 %v3006, %v3102
    %v3104 = vpop.f32.mrb[0].mxu0
    %3105 = vmatprep.mubr.bf16.mxu0 0
    %3106 = vmatmul.mubr.bf16.gmra.mrb[0].mxu0 %v2051
    %v3107 = vpop.f32.mrb[0].mxu0
    %v3108 = vadd.f32 %v3011, %v3107
    %v3109 = vpop.f32.mrb[0].mxu0
    %v3110 = vpop.f32.mrb[0].mxu0
    %v3111 = vadd.f32 %v3014, %v3110
    %v3112 = vpop.f32.mrb[0].mxu0
    %3113 = vmatprep.mubr.bf16.mxu0 0
    %3114 = vmatmul.mubr.bf16.gmra.mrb[0].mxu0 %v2060
    %v3115 = vpop.f32.mrb[0].mxu0
    %v3116 = vadd.f32 %v3019, %v3115
    %v3117 = vpop.f32.mrb[0].mxu0
    %v3118 = vpop.f32.mrb[0].mxu0
    %v3119 = vadd.f32 %v3022, %v3118
    %v3120 = vpop.f32.mrb[0].mxu0
    %3121 = vdwg.mxu0
    %v3122 = vpack.c.bf16 %v3063, %v3060
    %v3123 = vpack.c.bf16 %v3071, %v3068
    %v3124 = vpack.c.bf16 %v3079, %v3076
    %v3125 = vpack.c.bf16 %v3087, %v3084
    %v3126 = vpack.c.bf16 %v3095, %v3092
    %v3127 = vpack.c.bf16 %v3103, %v3100
    %v3128 = vpack.c.bf16 %v3111, %v3108
    %v3129 = vpack.c.bf16 %v3119, %v3116
    %v3138 = vunpack.c.l.b16 %v3122
    %v3139 = vunpack.c.h.b16 %v3122
    %v3140 = vunpack.c.l.b16 %v3123
    %v3141 = vunpack.c.h.b16 %v3123
    %v3142 = vunpack.c.l.b16 %v3124
    %v3143 = vunpack.c.h.b16 %v3124
    %v3144 = vunpack.c.l.b16 %v3125
    %v3145 = vunpack.c.h.b16 %v3125
    %v3146 = vunpack.c.l.b16 %v3126
    %v3147 = vunpack.c.h.b16 %v3126
    %v3148 = vunpack.c.l.b16 %v3127
    %v3149 = vunpack.c.h.b16 %v3127
    %v3150 = vunpack.c.l.b16 %v3128
    %v3151 = vunpack.c.h.b16 %v3128
    %v3152 = vunpack.c.l.b16 %v3129
    %v3153 = vunpack.c.h.b16 %v3129
    %v3154 = vpack.c.b16 %v3138, %v3138
    %v3155 = vpack.c.b16 %v3139, %v3139
    %v3156 = vpack.c.b16 %v3140, %v3140
    %v3157 = vpack.c.b16 %v3141, %v3141
    %v3158 = vpack.c.b16 %v3142, %v3142
    %v3159 = vpack.c.b16 %v3143, %v3143
    %v3160 = vpack.c.b16 %v3144, %v3144
    %v3161 = vpack.c.b16 %v3145, %v3145
    %v3162 = vpack.c.b16 %v3146, %v3146
    %v3163 = vpack.c.b16 %v3147, %v3147
    %v3164 = vpack.c.b16 %v3148, %v3148
    %v3165 = vpack.c.b16 %v3149, %v3149
    %v3166 = vpack.c.b16 %v3150, %v3150
    %v3167 = vpack.c.b16 %v3151, %v3151
    %v3168 = vpack.c.b16 %v3152, %v3152
    %v3169 = vpack.c.b16 %v3153, %v3153
    %3186 = vst [vmem:[#allocation9] sm:$0xf] %v3154
    %3187 = vst [vmem:[#allocation9 + $0x4] sm:$0xf] %v3155
    %3188 = vst [vmem:[#allocation9 + $0x8] sm:$0xf] %v3156
    %3189 = vst [vmem:[#allocation9 + $0xc] sm:$0xf] %v3157
    %3190 = vst [vmem:[#allocation9 + $0x10] sm:$0xf] %v3158
    %3191 = vst [vmem:[#allocation9 + $0x14] sm:$0xf] %v3159
    %3192 = vst [vmem:[#allocation9 + $0x18] sm:$0xf] %v3160
    %3193 = vst [vmem:[#allocation9 + $0x1c] sm:$0xf] %v3161
    %3194 = vst [vmem:[#allocation9 + $0x20] sm:$0xf] %v3162
    %3195 = vst [vmem:[#allocation9 + $0x24] sm:$0xf] %v3163
    %3196 = vst [vmem:[#allocation9 + $0x28] sm:$0xf] %v3164
    %3197 = vst [vmem:[#allocation9 + $0x2c] sm:$0xf] %v3165
    %3198 = vst [vmem:[#allocation9 + $0x30] sm:$0xf] %v3166
    %3199 = vst [vmem:[#allocation9 + $0x34] sm:$0xf] %v3167
    %3200 = vst [vmem:[#allocation9 + $0x38] sm:$0xf] %v3168
    %3201 = vst [vmem:[#allocation9 + $0x3c] sm:$0xf] %v3169
    %v3202 = vunpack.c.l.bf16 %v3122
    %v3203 = vunpack.c.h.bf16 %v3122
    %v3204 = vunpack.c.l.bf16 %v3123
    %v3205 = vunpack.c.h.bf16 %v3123
    %v3206 = vunpack.c.l.bf16 %v3124
    %v3207 = vunpack.c.h.bf16 %v3124
    %v3208 = vunpack.c.l.bf16 %v3125
    %v3209 = vunpack.c.h.bf16 %v3125
    %v3210 = vunpack.c.l.bf16 %v3126
    %v3211 = vunpack.c.h.bf16 %v3126
    %v3212 = vunpack.c.l.bf16 %v3127
    %v3213 = vunpack.c.h.bf16 %v3127
    %v3214 = vunpack.c.l.bf16 %v3128
    %v3215 = vunpack.c.h.bf16 %v3128
    %v3216 = vunpack.c.l.bf16 %v3129
    %v3217 = vunpack.c.h.bf16 %v3129
    %v3218 = vadd.f32 %v3202, %v3203
    %v3219 = vadd.f32 %v3218, %v3204
    %v3220 = vadd.f32 %v3219, %v3205
    %v3221 = vadd.f32 %v3220, %v3206
    %v3222 = vadd.f32 %v3221, %v3207
    %v3223 = vadd.f32 %v3222, %v3208
    %v3224 = vadd.f32 %v3223, %v3209
    %v3225 = vadd.f32 %v3224, %v3210
    %v3226 = vadd.f32 %v3225, %v3211
    %v3227 = vadd.f32 %v3226, %v3212
    %v3228 = vadd.f32 %v3227, %v3213
    %v3229 = vadd.f32 %v3228, %v3214
    %v3230 = vadd.f32 %v3229, %v3215
    %v3231 = vadd.f32 %v3230, %v3216
    %v3232 = vadd.f32 %v3231, %v3217
    %v3233 = vrot.slane %v3232, 4
    %v3234 = vadd.f32 %v3232, %v3233
    %v3235 = vrot.slane %v3234, 2
    %v3236 = vadd.f32 %v3234, %v3235
    %v3237 = vrot.slane %v3236, 1
    %v3238 = vadd.f32 %v3236, %v3237
    %v3239 = vmul.f32 %v3202, %v3202
    %v3240 = vmul.f32 %v3203, %v3203
    %v3241 = vmul.f32 %v3204, %v3204
    %v3242 = vmul.f32 %v3205, %v3205
    %v3243 = vmul.f32 %v3206, %v3206
    %v3244 = vmul.f32 %v3207, %v3207
    %v3245 = vmul.f32 %v3208, %v3208
    %v3246 = vmul.f32 %v3209, %v3209
    %v3247 = vmul.f32 %v3210, %v3210
    %v3248 = vmul.f32 %v3211, %v3211
    %v3249 = vmul.f32 %v3212, %v3212
    %v3250 = vmul.f32 %v3213, %v3213
    %v3251 = vmul.f32 %v3214, %v3214
    %v3252 = vmul.f32 %v3215, %v3215
    %v3253 = vmul.f32 %v3216, %v3216
    %v3254 = vmul.f32 %v3217, %v3217
    %v3255 = vadd.f32 %v3239, %v3240
    %v3256 = vadd.f32 %v3255, %v3241
    %v3257 = vadd.f32 %v3256, %v3242
    %v3258 = vadd.f32 %v3257, %v3243
    %v3259 = vadd.f32 %v3258, %v3244
    %v3260 = vadd.f32 %v3259, %v3245
    %v3261 = vadd.f32 %v3260, %v3246
    %v3262 = vadd.f32 %v3261, %v3247
    %v3263 = vadd.f32 %v3262, %v3248
    %v3264 = vadd.f32 %v3263, %v3249
    %v3265 = vadd.f32 %v3264, %v3250
    %v3266 = vadd.f32 %v3265, %v3251
    %v3267 = vadd.f32 %v3266, %v3252
    %v3268 = vadd.f32 %v3267, %v3253
    %v3269 = vadd.f32 %v3268, %v3254
    %v3270 = vrot.slane %v3269, 4
    %v3271 = vadd.f32 %v3269, %v3270
    %v3272 = vrot.slane %v3271, 2
    %v3273 = vadd.f32 %v3271, %v3272
    %v3274 = vrot.slane %v3273, 1
    %v3275 = vadd.f32 %v3273, %v3274
    %vm3276 = vcmask 1040384
    %v3277 = vsel %vm3276, %v3238, %v3275
    %vm3278 = vcmask 1041408
    %v3279 = vsel %vm3278, %v3277, 0.0
    %3280 = vst [vmem:[#allocation10] sm:$0xff] %v3279
    // Predicated region
    $region18: #{tpu_custom_call.1} parent=1 // pred_check
      _
    $region19: #{tpu_custom_call.1} parent=1 // pred_check_branch
      %3282 = sbr.rel (0) target = $region21
    $region20: #{tpu_custom_call.1} parent=1 // pred_region
      %s3284 = ssub.s32 1024, 1024
      %3285 = vsyncadd [#allocation6], %s3284
      %s3286 = sshll.u32 [#allocation9], 4
      %s3287 = int_to_ptr.vmem [resolvable:$true] %s3286
      %3292 = dma.vmem_to_hbm [thread:$0]  %s3287, 1024, %s2, [#allocation6], 64, 64, 4
    $region21: #{tpu_custom_call.1} parent=1 // pred_fallthru
      _
    // Predicated region
    $region22: #{tpu_custom_call.1} parent=1 // pred_check
      _
    $region23: #{tpu_custom_call.1} parent=1 // pred_check_branch
      %3294 = sbr.rel (0) target = $region25
    $region24: #{tpu_custom_call.1} parent=1 // pred_region
      %s3296 = ssub.s32 128, 128
      %3297 = vsyncadd [#allocation11], %s3296
      %s3299 = sshll.u32 [#allocation10], 4
      %s3300 = int_to_ptr.vmem [resolvable:$true] %s3299
      %3302 = dma.vmem_to_hbm [thread:$0]  %s3300, 128, %s3, [#allocation11]
    $region25: #{tpu_custom_call.1} parent=1 // pred_fallthru
      _
    // Predicated region
    $region26: #{tpu_custom_call.1} parent=1 // pred_check
      _
    $region27: #{tpu_custom_call.1} parent=1 // pred_check_branch
      %3304 = sbr.rel (0) target = $region29
    $region28: #{tpu_custom_call.1} parent=1 // pred_region
      %3305 = dma.done [#allocation6], 1024
    $region29: #{tpu_custom_call.1} parent=1 // pred_fallthru
      _
    // Predicated region
    $region30: #{tpu_custom_call.1} parent=1 // pred_check
      _
    $region31: #{tpu_custom_call.1} parent=1 // pred_check_branch
      %3307 = sbr.rel (0) target = $region33
    $region32: #{tpu_custom_call.1} parent=1 // pred_region
      %3308 = dma.done [#allocation11], 128
    $region33: #{tpu_custom_call.1} parent=1 // pred_fallthru
      _
    %3309 = vsyncpa [#allocation5], 1
    %3310 = vsyncpa [#allocation8], 1
    %3311 = vsyncpa [#allocation6], 1
    %3312 = vsyncpa [#allocation11], 1

</llo_original>
